<compile_context>
chip_gen: v7x
topology: tpu7x:2x2x1
jax: 0.10.0
libtpu: 0.0.40
codegen_flags: <defaults>
</compile_context>

<pallas_src>
import jax
import jax.numpy as jnp
from jax.experimental import pallas as pl
from jax.experimental.pallas import tpu as pltpu

EPS = 1e-3


def _bn_kernel(x_ref, gamma_ref, beta_ref, o_ref):
    # x_ref: (N, tile_c, HW) block; gamma/beta: (tile_c, 1)
    x = x_ref[...].astype(jnp.float32)
    n, _, hw = x.shape
    inv_count = 1.0 / (n * hw)

    # Per-channel mean over (N, HW): lane-axis reduce, then (trivial) batch reduce.
    row_sum = jnp.sum(x, axis=-1, keepdims=True)              # (N, tile_c, 1)
    if n > 1:
        row_sum = jnp.sum(row_sum, axis=0, keepdims=True)     # (1, tile_c, 1)
    mean = row_sum * inv_count                                # (1|N, tile_c, 1)

    xc = x - mean
    sq_sum = jnp.sum(xc * xc, axis=-1, keepdims=True)         # biased variance
    if n > 1:
        sq_sum = jnp.sum(sq_sum, axis=0, keepdims=True)
    var = sq_sum * inv_count

    inv = jax.lax.rsqrt(var + EPS)                            # (1, tile_c, 1)
    # Hoist the per-channel scale: one broadcast multiply instead of two.
    scale = inv * gamma_ref[...]                              # (1, tile_c, 1)
    o_ref[...] = (xc * scale + beta_ref[...]).astype(o_ref.dtype)


def batchnorm2d_pallas(x_nchw, gamma, beta, *, tile_c=1536):
    N, C, H, W = x_nchw.shape
    HW = H * W
    if C % tile_c != 0:
        tile_c = C  # fall back to a single channel tile

    # NCHW -> (N, C, H*W): pure reshape (free view), no transpose.
    x3 = x_nchw.reshape(N, C, HW)
    g2 = gamma.reshape(C, 1).astype(jnp.float32)
    b2 = beta.reshape(C, 1).astype(jnp.float32)

    out3 = pl.pallas_call(
        _bn_kernel,
        out_shape=jax.ShapeDtypeStruct((N, C, HW), x_nchw.dtype),
        grid=(C // tile_c,),
        in_specs=[
            pl.BlockSpec((N, tile_c, HW), lambda j: (0, j, 0)),
            pl.BlockSpec((tile_c, 1), lambda j: (j, 0)),
            pl.BlockSpec((tile_c, 1), lambda j: (j, 0)),
        ],
        out_specs=pl.BlockSpec((N, tile_c, HW), lambda j: (0, j, 0)),
        compiler_params=pltpu.CompilerParams(
            dimension_semantics=("parallel",)),
    )(x3, g2, b2)

    # (N, C, H*W) -> NCHW: again a free reshape.
    return out3.reshape(N, C, H, W)


def _reference(x_nchw, gamma, beta):
    x = x_nchw.astype(jnp.float32)
    mean = jnp.mean(x, axis=(0, 2, 3), keepdims=True)
    var = jnp.mean((x - mean) ** 2, axis=(0, 2, 3), keepdims=True)
    xhat = (x - mean) * jax.lax.rsqrt(var + EPS)
    return xhat * gamma.reshape(1, -1, 1, 1) + beta.reshape(1, -1, 1, 1)


if __name__ == "__main__":
    key = jax.random.PRNGKey(0)
    N, C, H, W = 1, 3072, 7, 7  # shape implied by BatchNorm2d(3072) and x733
    x = jax.random.normal(key, (N, C, H, W), dtype=jnp.float32)

    # Deterministic params matching PyTorch BatchNorm2d default init.
    gamma = jnp.ones((C,), dtype=jnp.float32)
    beta = jnp.zeros((C,), dtype=jnp.float32)

    out = batchnorm2d_pallas(x, gamma, beta)
    out = jax.block_until_ready(out)

    ref = _reference(x, gamma, beta)
    assert out.shape == (N, C, H, W)
    assert jnp.allclose(out, ref, atol=1e-4, rtol=1e-4), "mismatch vs reference"

    print("KERNEL_OK")
</pallas_src>

<mosaic_0001>
module attributes {stable_mosaic.version = 11 : i64} {
  func.func @_bn_kernel(%arg0: i32, %arg1: memref<1x1536x49xf32, #tpu.memory_space<vmem>>, %arg2: memref<1536x1xf32, #tpu.memory_space<vmem>>, %arg3: memref<1536x1xf32, #tpu.memory_space<vmem>>, %arg4: memref<1x1536x49xf32, #tpu.memory_space<vmem>>) attributes {dimension_semantics = [#tpu.dimension_semantics<parallel>], iteration_bounds = array<i64: 2>, scalar_prefetch = 0 : i64, scratch_operands = 0 : i64, tpu.core_type = #tpu.core_type<tc>, window_params = [{transform_indices = @transform_0, window_bounds = array<i64: 1, 1536, 49>}, {transform_indices = @transform_1, window_bounds = array<i64: 1536, 1>}, {transform_indices = @transform_2, window_bounds = array<i64: 1536, 1>}, {transform_indices = @transform_3, window_bounds = array<i64: 1, 1536, 49>}]} {
    %c0 = arith.constant 0 : index
    %c0_0 = arith.constant 0 : index
    %c0_1 = arith.constant 0 : index
    %0 = vector.load %arg1[%c0, %c0_0, %c0_1] : memref<1x1536x49xf32, #tpu.memory_space<vmem>>, vector<1x1536x49xf32>
    %cst = arith.constant dense<0.000000e+00> : vector<1x1536xf32>
    %1 = vector.multi_reduction <add>, %0, %cst [2] : vector<1x1536x49xf32> to vector<1x1536xf32>
    %2 = vector.shape_cast %1 : vector<1x1536xf32> to vector<1x1536x1xf32>
    %cst_2 = arith.constant 0.0204081628 : f32
    %3 = vector.broadcast %cst_2 : f32 to vector<1x1536x1xf32>
    %4 = arith.mulf %2, %3 : vector<1x1536x1xf32>
    %5 = vector.broadcast %4 : vector<1x1536x1xf32> to vector<1x1536x49xf32>
    %6 = arith.subf %0, %5 : vector<1x1536x49xf32>
    %7 = arith.mulf %6, %6 : vector<1x1536x49xf32>
    %cst_3 = arith.constant dense<0.000000e+00> : vector<1x1536xf32>
    %8 = vector.multi_reduction <add>, %7, %cst_3 [2] : vector<1x1536x49xf32> to vector<1x1536xf32>
    %9 = vector.shape_cast %8 : vector<1x1536xf32> to vector<1x1536x1xf32>
    %cst_4 = arith.constant 0.0204081628 : f32
    %10 = vector.broadcast %cst_4 : f32 to vector<1x1536x1xf32>
    %11 = arith.mulf %9, %10 : vector<1x1536x1xf32>
    %cst_5 = arith.constant 1.000000e-03 : f32
    %12 = vector.broadcast %cst_5 : f32 to vector<1x1536x1xf32>
    %13 = arith.addf %11, %12 : vector<1x1536x1xf32>
    %14 = math.rsqrt %13 : vector<1x1536x1xf32>
    %c0_6 = arith.constant 0 : index
    %c0_7 = arith.constant 0 : index
    %15 = vector.load %arg2[%c0_6, %c0_7] : memref<1536x1xf32, #tpu.memory_space<vmem>>, vector<1536x1xf32>
    %16 = vector.shape_cast %15 : vector<1536x1xf32> to vector<1x1536x1xf32>
    %17 = arith.mulf %14, %16 : vector<1x1536x1xf32>
    %18 = vector.broadcast %17 : vector<1x1536x1xf32> to vector<1x1536x49xf32>
    %19 = arith.mulf %6, %18 : vector<1x1536x49xf32>
    %c0_8 = arith.constant 0 : index
    %c0_9 = arith.constant 0 : index
    %20 = vector.load %arg3[%c0_8, %c0_9] : memref<1536x1xf32, #tpu.memory_space<vmem>>, vector<1536x1xf32>
    %21 = vector.shape_cast %20 : vector<1536x1xf32> to vector<1x1536x1xf32>
    %22 = vector.broadcast %21 : vector<1x1536x1xf32> to vector<1x1536x49xf32>
    %23 = arith.addf %19, %22 : vector<1x1536x49xf32>
    %c0_10 = arith.constant 0 : index
    %c0_11 = arith.constant 0 : index
    %c0_12 = arith.constant 0 : index
    %24 = vector.load %arg4[%c0_10, %c0_11, %c0_12] : memref<1x1536x49xf32, #tpu.memory_space<vmem>>, vector<1x1536x49xf32>
    tpu.vector_store %arg4[%c0_10, %c0_11, %c0_12], %23 {strides = array<i32>} : memref<1x1536x49xf32, #tpu.memory_space<vmem>>, vector<1x1536x49xf32>,
    return
  }
  func.func @transform_0(%arg0: i32) -> (i32, i32, i32) {
    %c0_i32 = arith.constant 0 : i32
    %c0_i32_0 = arith.constant 0 : i32
    %c0_i32_1 = arith.constant 0 : i32
    return %c0_i32, %arg0, %c0_i32_0 : i32, i32, i32
  }
  func.func @transform_1(%arg0: i32) -> (i32, i32) {
    %c0_i32 = arith.constant 0 : i32
    %c0_i32_0 = arith.constant 0 : i32
    return %arg0, %c0_i32 : i32, i32
  }
  func.func @transform_2(%arg0: i32) -> (i32, i32) {
    %c0_i32 = arith.constant 0 : i32
    %c0_i32_0 = arith.constant 0 : i32
    return %arg0, %c0_i32 : i32, i32
  }
  func.func @transform_3(%arg0: i32) -> (i32, i32, i32) {
    %c0_i32 = arith.constant 0 : i32
    %c0_i32_0 = arith.constant 0 : i32
    %c0_i32_1 = arith.constant 0 : i32
    return %c0_i32, %arg0, %c0_i32_0 : i32, i32, i32
  }
}

</mosaic_0001>

<llo_original>
// kernel: tpu_custom_call.1
$region0: #{tpu_custom_call.1}
  #allocation0 [shape = 'u32[]', space=smem, size = 0x4, offset = 0x4, fixed_abs, tag = 'smem constant byte address 0x4 - core index']
  #allocation1 [shape = 'u32[144,128]{1,0:T(1,128)}', space=vmem, size = 0x12000, scoped, tag = 'internal scratch']
  %s0 = inlined_call_operand.vmem [shape: f32[1,3072,49], index: 0, kind: input, shape index: {}]
  %s1 = inlined_call_operand.vmem [shape: f32[3072,1], index: 1, kind: input, shape index: {}]
  %s2 = inlined_call_operand.vmem [shape: f32[3072,1], index: 2, kind: input, shape index: {}]
  %s3 = inlined_call_operand.vmem [shape: f32[1,3072,49], index: 3, kind: output, shape index: {}]
  %s4 = sld [smem:[#allocation0]]
  $region45: #{tpu_custom_call.1} parent=0
    _
  %s6 = ssub.s32 1, %s4
  %s7 = scalar_select 0, %s6, %s4
  loop: start=0, step=1, limit=4
  $region2: #{tpu_custom_call.1} parent=0 // loop_pre_header
    _
  $region3: #{tpu_custom_call.1} parent=0 // loop_header
    %s9 = sphi 0, %s13
    %p10 = scmp.ge.s32.totalorder %s9, 4
    %s19 = sphi 0, %s21
    %s22 = sphi 0, %s19
    %s23 = sphi 0, %s22
    %s39 = sphi 0, %s23
    %s45 = sphi 0, %s47
    %s48 = sphi 0, %s45
    %s49 = sphi 0, %s48
    %s65 = sphi 0, %s49
    %s71 = sphi 0, %s73
    %s74 = sphi 0, %s71
    %s75 = sphi 0, %s74
    %s91 = sphi 0, %s75
    %s97 = sphi 0, %s99
    %s100 = sphi 0, %s97
    %s101 = sphi 0, %s100
    %s117 = sphi 0, %s101
  $region4: #{tpu_custom_call.1} parent=0 // loop_header_branch
    %12 = sbr.rel (%p10) target = $region8
  $region5: #{tpu_custom_call.1} parent=0 // loop_body
    %s14 = ssub.s32 %s9, 1
    %s15 = ssub.s32 %s9, 2
    %s16 = sadd.s32 %s9, 1
    %s17 = ssub.s32 %s9, %s16
    %p18 = scmp.eq.s32.totalorder %s17, 0
    %s20 = sadd.s32 %s19, 1
    %s21 = scalar_select %p18, %s19, %s20
    %p24 = pneg %p18
    %p25 = scmp.eq.s32.totalorder %s9, 1
    %p26 = por %p24, %p25
    %p27 = scmp.ne.s32.totalorder %s19, %s22
    %p28 = scmp.eq.s32.totalorder %s9, 0
    %p29 = por %p27, %p28
    %p30 = scmp.ne.s32.totalorder %s19, %s22
    %p31 = scmp.eq.s32.totalorder %s14, 1
    %p32 = por %p30, %p31
    %p33 = scmp.ne.s32.totalorder %s22, %s23
    %p34 = scmp.eq.s32.totalorder %s14, 0
    %p35 = por %p33, %p34
    %p36 = scmp.ne.s32.totalorder %s22, %s23
    %p37 = scmp.eq.s32.totalorder %s15, 1
    %p38 = por %p36, %p37
    %p40 = scmp.ne.s32.totalorder %s23, %s39
    %p41 = scmp.eq.s32.totalorder %s15, 0
    %p42 = por %p40, %p41
    %s43 = ssub.s32 %s9, %s16
    %p44 = scmp.eq.s32.totalorder %s43, 0
    %s46 = sadd.s32 %s45, 1
    %s47 = scalar_select %p44, %s45, %s46
    %p50 = pneg %p44
    %p51 = scmp.eq.s32.totalorder %s9, 1
    %p52 = por %p50, %p51
    %p53 = scmp.ne.s32.totalorder %s45, %s48
    %p54 = scmp.eq.s32.totalorder %s9, 0
    %p55 = por %p53, %p54
    %p56 = scmp.ne.s32.totalorder %s45, %s48
    %p57 = scmp.eq.s32.totalorder %s14, 1
    %p58 = por %p56, %p57
    %p59 = scmp.ne.s32.totalorder %s48, %s49
    %p60 = scmp.eq.s32.totalorder %s14, 0
    %p61 = por %p59, %p60
    %p62 = scmp.ne.s32.totalorder %s48, %s49
    %p63 = scmp.eq.s32.totalorder %s15, 1
    %p64 = por %p62, %p63
    %p66 = scmp.ne.s32.totalorder %s49, %s65
    %p67 = scmp.eq.s32.totalorder %s15, 0
    %p68 = por %p66, %p67
    %s69 = ssub.s32 %s9, %s16
    %p70 = scmp.eq.s32.totalorder %s69, 0
    %s72 = sadd.s32 %s71, 1
    %s73 = scalar_select %p70, %s71, %s72
    %p76 = pneg %p70
    %p77 = scmp.eq.s32.totalorder %s9, 1
    %p78 = por %p76, %p77
    %p79 = scmp.ne.s32.totalorder %s71, %s74
    %p80 = scmp.eq.s32.totalorder %s9, 0
    %p81 = por %p79, %p80
    %p82 = scmp.ne.s32.totalorder %s71, %s74
    %p83 = scmp.eq.s32.totalorder %s14, 1
    %p84 = por %p82, %p83
    %p85 = scmp.ne.s32.totalorder %s74, %s75
    %p86 = scmp.eq.s32.totalorder %s14, 0
    %p87 = por %p85, %p86
    %p88 = scmp.ne.s32.totalorder %s74, %s75
    %p89 = scmp.eq.s32.totalorder %s15, 1
    %p90 = por %p88, %p89
    %p92 = scmp.ne.s32.totalorder %s75, %s91
    %p93 = scmp.eq.s32.totalorder %s15, 0
    %p94 = por %p92, %p93
    %s95 = ssub.s32 %s9, %s16
    %p96 = scmp.eq.s32.totalorder %s95, 0
    %s98 = sadd.s32 %s97, 1
    %s99 = scalar_select %p96, %s97, %s98
    %p102 = pneg %p96
    %p103 = scmp.eq.s32.totalorder %s9, 1
    %p104 = por %p102, %p103
    %p105 = scmp.ne.s32.totalorder %s97, %s100
    %p106 = scmp.eq.s32.totalorder %s9, 0
    %p107 = por %p105, %p106
    %p108 = scmp.ne.s32.totalorder %s97, %s100
    %p109 = scmp.eq.s32.totalorder %s14, 1
    %p110 = por %p108, %p109
    %p111 = scmp.ne.s32.totalorder %s100, %s101
    %p112 = scmp.eq.s32.totalorder %s14, 0
    %p113 = por %p111, %p112
    %p114 = scmp.ne.s32.totalorder %s100, %s101
    %p115 = scmp.eq.s32.totalorder %s15, 1
    %p116 = por %p114, %p115
    %p118 = scmp.ne.s32.totalorder %s101, %s117
    %p119 = scmp.eq.s32.totalorder %s15, 0
    %p120 = por %p118, %p119
    %p121 = scmp.le.s32.totalorder 1, %s9
    %p122 = scmp.lt.s32.totalorder %s9, 3
    %p123 = pnand %p121, %p122
    %p124 = pneg %p123
    // Predicated region
    $region9: #{tpu_custom_call.1} parent=5 // pred_check
      _
    $region10: #{tpu_custom_call.1} parent=5 // pred_check_branch
      %126 = sbr.rel (%p123) target = $region12
    $region11: #{tpu_custom_call.1} parent=5 // pred_region
      %s127 = ssub.s32 %s9, 1
    $region12: #{tpu_custom_call.1} parent=5 // pred_fallthru
      _
    %p128 = scmp.lt.s32.totalorder %s9, 2
    // Predicated region
    $region13: #{tpu_custom_call.1} parent=5 // pred_check
      %p129 = pneg %p128
    $region14: #{tpu_custom_call.1} parent=5 // pred_check_branch
      %131 = sbr.rel (%p129) target = $region16
    $region15: #{tpu_custom_call.1} parent=5 // pred_region
      // Predicated region
      $region17: #{tpu_custom_call.1} parent=15 // pred_check
        %p132 = pneg %p29
      $region18: #{tpu_custom_call.1} parent=15 // pred_check_branch
        %134 = sbr.rel (%p132) target = $region20
      $region19: #{tpu_custom_call.1} parent=15 // pred_region
        %s135 = smul.u32 192, %s9
        %p136 = scmp.lt.s32.totalorder %s135, 383
        %s137 = scalar_select %p136, %s135, 383
        %s138 = smul.addr %s137, 8
        %s139 = scalar_lea.vmem %s0, %s138
        %s140 = smul.u32 192, %s9
      $region20: #{tpu_custom_call.1} parent=15 // pred_fallthru
        _
      // Predicated region
      $region21: #{tpu_custom_call.1} parent=15 // pred_check
        %p141 = pneg %p55
      $region22: #{tpu_custom_call.1} parent=15 // pred_check_branch
        %143 = sbr.rel (%p141) target = $region24
      $region23: #{tpu_custom_call.1} parent=15 // pred_region
        %s144 = smul.u32 192, %s9
        %p145 = scmp.lt.s32.totalorder %s144, 383
        %s146 = scalar_select %p145, %s144, 383
        %s147 = smul.addr %s146, 8
        %s148 = scalar_lea.vmem %s1, %s147
        %s149 = smul.u32 192, %s9
      $region24: #{tpu_custom_call.1} parent=15 // pred_fallthru
        _
      // Predicated region
      $region25: #{tpu_custom_call.1} parent=15 // pred_check
        %p150 = pneg %p81
      $region26: #{tpu_custom_call.1} parent=15 // pred_check_branch
        %152 = sbr.rel (%p150) target = $region28
      $region27: #{tpu_custom_call.1} parent=15 // pred_region
        %s153 = smul.u32 192, %s9
        %p154 = scmp.lt.s32.totalorder %s153, 383
        %s155 = scalar_select %p154, %s153, 383
        %s156 = smul.addr %s155, 8
        %s157 = scalar_lea.vmem %s2, %s156
        %s158 = smul.u32 192, %s9
      $region28: #{tpu_custom_call.1} parent=15 // pred_fallthru
        _
    $region16: #{tpu_custom_call.1} parent=5 // pred_fallthru
      _
    %p159 = scmp.le.s32.totalorder 1, %s9
    %p160 = scmp.lt.s32.totalorder %s9, 3
    %p161 = pnand %p159, %p160
    %p162 = pneg %p161
    // Predicated region
    $region29: #{tpu_custom_call.1} parent=5 // pred_check
      _
    $region30: #{tpu_custom_call.1} parent=5 // pred_check_branch
      %164 = sbr.rel (%p161) target = $region32
    $region31: #{tpu_custom_call.1} parent=5 // pred_region
      %s165 = ssub.s32 %s9, 1
      %s166 = smul.u32 192, %s14
      %p167 = scmp.lt.s32.totalorder %s166, 383
      %s168 = scalar_select %p167, %s166, 383
      %s169 = smul.addr %s168, 8
      %s170 = scalar_lea.vmem %s0, %s169
      %p171 = pneg %p35
      %p172 = pneg %p32
      %s173 = smul.u32 192, %s14
      %p174 = scmp.lt.s32.totalorder %s173, 383
      %s175 = scalar_select %p174, %s173, 383
      %s176 = smul.addr %s175, 8
      %s177 = scalar_lea.vmem %s1, %s176
      %p178 = pneg %p61
      %p179 = pneg %p58
      %s180 = smul.u32 192, %s14
      %p181 = scmp.lt.s32.totalorder %s180, 383
      %s182 = scalar_select %p181, %s180, 383
      %s183 = smul.addr %s182, 8
      %s184 = scalar_lea.vmem %s2, %s183
      %p185 = pneg %p87
      %p186 = pneg %p84
      %p187 = pneg %p113
      %p188 = pneg %p110
      %s189 = smul.u32 192, %s14
      %p190 = scmp.lt.s32.totalorder %s189, 383
      %s191 = scalar_select %p190, %s189, 383
      %s192 = smul.addr %s191, 8
      %s193 = scalar_lea.vmem %s3, %s192
      %s194 = smul.u32 192, %s14
      %p195 = scmp.lt.s32.totalorder %s194, 383
      %s196 = scalar_select %p195, %s194, 383
      %s197 = smul.addr %s196, 8
      %s198 = scalar_lea.vmem %s0, %s197
      %s199 = smul.u32 192, %s14
      %s200 = smul.u32 192, %s14
      %p201 = scmp.lt.s32.totalorder %s200, 383
      %s202 = scalar_select %p201, %s200, 383
      %s203 = smul.addr %s202, 8
      %s204 = scalar_lea.vmem %s1, %s203
      %s205 = smul.u32 192, %s14
      %s206 = smul.u32 192, %s14
      %p207 = scmp.lt.s32.totalorder %s206, 383
      %s208 = scalar_select %p207, %s206, 383
      %s209 = smul.addr %s208, 8
      %s210 = scalar_lea.vmem %s2, %s209
      %s211 = smul.u32 192, %s14
      %s212 = smul.u32 192, %s14
      %p213 = scmp.lt.s32.totalorder %s212, 383
      %s214 = scalar_select %p213, %s212, 383
      %s215 = smul.addr %s214, 8
      %s216 = scalar_lea.vmem %s3, %s215
      %s217 = smul.u32 192, %s14
      %v218 = vld [vmem:[%s198] sm:$0xff]
      %v219 = vld [vmem:[%s198 + $0x8] sm:$0xff]
      %v220 = vld [vmem:[%s198 + $0x10] sm:$0xff]
      %v221 = vld [vmem:[%s198 + $0x18] sm:$0xff]
      %v222 = vld [vmem:[%s198 + $0x20] sm:$0xff]
      %v223 = vld [vmem:[%s198 + $0x28] sm:$0xff]
      %v224 = vld [vmem:[%s198 + $0x30] sm:$0xff]
      %v225 = vld [vmem:[%s198 + $0x38] sm:$0xff]
      %v226 = vld [vmem:[%s198 + $0x40] sm:$0xff]
      %v227 = vld [vmem:[%s198 + $0x48] sm:$0xff]
      %v228 = vld [vmem:[%s198 + $0x50] sm:$0xff]
      %v229 = vld [vmem:[%s198 + $0x58] sm:$0xff]
      %v230 = vld [vmem:[%s198 + $0x60] sm:$0xff]
      %v231 = vld [vmem:[%s198 + $0x68] sm:$0xff]
      %v232 = vld [vmem:[%s198 + $0x70] sm:$0xff]
      %v233 = vld [vmem:[%s198 + $0x78] sm:$0xff]
      %v234 = vld [vmem:[%s198 + $0x80] sm:$0xff]
      %v235 = vld [vmem:[%s198 + $0x88] sm:$0xff]
      %v236 = vld [vmem:[%s198 + $0x90] sm:$0xff]
      %v237 = vld [vmem:[%s198 + $0x98] sm:$0xff]
      %v238 = vld [vmem:[%s198 + $0xa0] sm:$0xff]
      %v239 = vld [vmem:[%s198 + $0xa8] sm:$0xff]
      %v240 = vld [vmem:[%s198 + $0xb0] sm:$0xff]
      %v241 = vld [vmem:[%s198 + $0xb8] sm:$0xff]
      %v242 = vld [vmem:[%s198 + $0xc0] sm:$0xff]
      %v243 = vld [vmem:[%s198 + $0xc8] sm:$0xff]
      %v244 = vld [vmem:[%s198 + $0xd0] sm:$0xff]
      %v245 = vld [vmem:[%s198 + $0xd8] sm:$0xff]
      %v246 = vld [vmem:[%s198 + $0xe0] sm:$0xff]
      %v247 = vld [vmem:[%s198 + $0xe8] sm:$0xff]
      %v248 = vld [vmem:[%s198 + $0xf0] sm:$0xff]
      %v249 = vld [vmem:[%s198 + $0xf8] sm:$0xff]
      %v250 = vld [vmem:[%s198 + $0x100] sm:$0xff]
      %v251 = vld [vmem:[%s198 + $0x108] sm:$0xff]
      %v252 = vld [vmem:[%s198 + $0x110] sm:$0xff]
      %v253 = vld [vmem:[%s198 + $0x118] sm:$0xff]
      %v254 = vld [vmem:[%s198 + $0x120] sm:$0xff]
      %v255 = vld [vmem:[%s198 + $0x128] sm:$0xff]
      %v256 = vld [vmem:[%s198 + $0x130] sm:$0xff]
      %v257 = vld [vmem:[%s198 + $0x138] sm:$0xff]
      %v258 = vld [vmem:[%s198 + $0x140] sm:$0xff]
      %v259 = vld [vmem:[%s198 + $0x148] sm:$0xff]
      %v260 = vld [vmem:[%s198 + $0x150] sm:$0xff]
      %v261 = vld [vmem:[%s198 + $0x158] sm:$0xff]
      %v262 = vld [vmem:[%s198 + $0x160] sm:$0xff]
      %v263 = vld [vmem:[%s198 + $0x168] sm:$0xff]
      %v264 = vld [vmem:[%s198 + $0x170] sm:$0xff]
      %v265 = vld [vmem:[%s198 + $0x178] sm:$0xff]
      %v266 = vld [vmem:[%s198 + $0x180] sm:$0xff]
      %v267 = vld [vmem:[%s198 + $0x188] sm:$0xff]
      %v268 = vld [vmem:[%s198 + $0x190] sm:$0xff]
      %v269 = vld [vmem:[%s198 + $0x198] sm:$0xff]
      %v270 = vld [vmem:[%s198 + $0x1a0] sm:$0xff]
      %v271 = vld [vmem:[%s198 + $0x1a8] sm:$0xff]
      %v272 = vld [vmem:[%s198 + $0x1b0] sm:$0xff]
      %v273 = vld [vmem:[%s198 + $0x1b8] sm:$0xff]
      %v274 = vld [vmem:[%s198 + $0x1c0] sm:$0xff]
      %v275 = vld [vmem:[%s198 + $0x1c8] sm:$0xff]
      %v276 = vld [vmem:[%s198 + $0x1d0] sm:$0xff]
      %v277 = vld [vmem:[%s198 + $0x1d8] sm:$0xff]
      %v278 = vld [vmem:[%s198 + $0x1e0] sm:$0xff]
      %v279 = vld [vmem:[%s198 + $0x1e8] sm:$0xff]
      %v280 = vld [vmem:[%s198 + $0x1f0] sm:$0xff]
      %v281 = vld [vmem:[%s198 + $0x1f8] sm:$0xff]
      %v282 = vld [vmem:[%s198 + $0x200] sm:$0xff]
      %v283 = vld [vmem:[%s198 + $0x208] sm:$0xff]
      %v284 = vld [vmem:[%s198 + $0x210] sm:$0xff]
      %v285 = vld [vmem:[%s198 + $0x218] sm:$0xff]
      %v286 = vld [vmem:[%s198 + $0x220] sm:$0xff]
      %v287 = vld [vmem:[%s198 + $0x228] sm:$0xff]
      %v288 = vld [vmem:[%s198 + $0x230] sm:$0xff]
      %v289 = vld [vmem:[%s198 + $0x238] sm:$0xff]
      %v290 = vld [vmem:[%s198 + $0x240] sm:$0xff]
      %v291 = vld [vmem:[%s198 + $0x248] sm:$0xff]
      %v292 = vld [vmem:[%s198 + $0x250] sm:$0xff]
      %v293 = vld [vmem:[%s198 + $0x258] sm:$0xff]
      %v294 = vld [vmem:[%s198 + $0x260] sm:$0xff]
      %v295 = vld [vmem:[%s198 + $0x268] sm:$0xff]
      %v296 = vld [vmem:[%s198 + $0x270] sm:$0xff]
      %v297 = vld [vmem:[%s198 + $0x278] sm:$0xff]
      %v298 = vld [vmem:[%s198 + $0x280] sm:$0xff]
      %v299 = vld [vmem:[%s198 + $0x288] sm:$0xff]
      %v300 = vld [vmem:[%s198 + $0x290] sm:$0xff]
      %v301 = vld [vmem:[%s198 + $0x298] sm:$0xff]
      %v302 = vld [vmem:[%s198 + $0x2a0] sm:$0xff]
      %v303 = vld [vmem:[%s198 + $0x2a8] sm:$0xff]
      %v304 = vld [vmem:[%s198 + $0x2b0] sm:$0xff]
      %v305 = vld [vmem:[%s198 + $0x2b8] sm:$0xff]
      %v306 = vld [vmem:[%s198 + $0x2c0] sm:$0xff]
      %v307 = vld [vmem:[%s198 + $0x2c8] sm:$0xff]
      %v308 = vld [vmem:[%s198 + $0x2d0] sm:$0xff]
      %v309 = vld [vmem:[%s198 + $0x2d8] sm:$0xff]
      %v310 = vld [vmem:[%s198 + $0x2e0] sm:$0xff]
      %v311 = vld [vmem:[%s198 + $0x2e8] sm:$0xff]
      %v312 = vld [vmem:[%s198 + $0x2f0] sm:$0xff]
      %v313 = vld [vmem:[%s198 + $0x2f8] sm:$0xff]
      %v314 = vld [vmem:[%s198 + $0x300] sm:$0xff]
      %v315 = vld [vmem:[%s198 + $0x308] sm:$0xff]
      %v316 = vld [vmem:[%s198 + $0x310] sm:$0xff]
      %v317 = vld [vmem:[%s198 + $0x318] sm:$0xff]
      %v318 = vld [vmem:[%s198 + $0x320] sm:$0xff]
      %v319 = vld [vmem:[%s198 + $0x328] sm:$0xff]
      %v320 = vld [vmem:[%s198 + $0x330] sm:$0xff]
      %v321 = vld [vmem:[%s198 + $0x338] sm:$0xff]
      %v322 = vld [vmem:[%s198 + $0x340] sm:$0xff]
      %v323 = vld [vmem:[%s198 + $0x348] sm:$0xff]
      %v324 = vld [vmem:[%s198 + $0x350] sm:$0xff]
      %v325 = vld [vmem:[%s198 + $0x358] sm:$0xff]
      %v326 = vld [vmem:[%s198 + $0x360] sm:$0xff]
      %v327 = vld [vmem:[%s198 + $0x368] sm:$0xff]
      %v328 = vld [vmem:[%s198 + $0x370] sm:$0xff]
      %v329 = vld [vmem:[%s198 + $0x378] sm:$0xff]
      %v330 = vld [vmem:[%s198 + $0x380] sm:$0xff]
      %v331 = vld [vmem:[%s198 + $0x388] sm:$0xff]
      %v332 = vld [vmem:[%s198 + $0x390] sm:$0xff]
      %v333 = vld [vmem:[%s198 + $0x398] sm:$0xff]
      %v334 = vld [vmem:[%s198 + $0x3a0] sm:$0xff]
      %v335 = vld [vmem:[%s198 + $0x3a8] sm:$0xff]
      %v336 = vld [vmem:[%s198 + $0x3b0] sm:$0xff]
      %v337 = vld [vmem:[%s198 + $0x3b8] sm:$0xff]
      %v338 = vld [vmem:[%s198 + $0x3c0] sm:$0xff]
      %v339 = vld [vmem:[%s198 + $0x3c8] sm:$0xff]
      %v340 = vld [vmem:[%s198 + $0x3d0] sm:$0xff]
      %v341 = vld [vmem:[%s198 + $0x3d8] sm:$0xff]
      %v342 = vld [vmem:[%s198 + $0x3e0] sm:$0xff]
      %v343 = vld [vmem:[%s198 + $0x3e8] sm:$0xff]
      %v344 = vld [vmem:[%s198 + $0x3f0] sm:$0xff]
      %v345 = vld [vmem:[%s198 + $0x3f8] sm:$0xff]
      %v346 = vld [vmem:[%s198 + $0x400] sm:$0xff]
      %v347 = vld [vmem:[%s198 + $0x408] sm:$0xff]
      %v348 = vld [vmem:[%s198 + $0x410] sm:$0xff]
      %v349 = vld [vmem:[%s198 + $0x418] sm:$0xff]
      %v350 = vld [vmem:[%s198 + $0x420] sm:$0xff]
      %v351 = vld [vmem:[%s198 + $0x428] sm:$0xff]
      %v352 = vld [vmem:[%s198 + $0x430] sm:$0xff]
      %v353 = vld [vmem:[%s198 + $0x438] sm:$0xff]
      %v354 = vld [vmem:[%s198 + $0x440] sm:$0xff]
      %v355 = vld [vmem:[%s198 + $0x448] sm:$0xff]
      %v356 = vld [vmem:[%s198 + $0x450] sm:$0xff]
      %v357 = vld [vmem:[%s198 + $0x458] sm:$0xff]
      %v358 = vld [vmem:[%s198 + $0x460] sm:$0xff]
      %v359 = vld [vmem:[%s198 + $0x468] sm:$0xff]
      %v360 = vld [vmem:[%s198 + $0x470] sm:$0xff]
      %v361 = vld [vmem:[%s198 + $0x478] sm:$0xff]
      %v362 = vld [vmem:[%s198 + $0x480] sm:$0xff]
      %v363 = vld [vmem:[%s198 + $0x488] sm:$0xff]
      %v364 = vld [vmem:[%s198 + $0x490] sm:$0xff]
      %v365 = vld [vmem:[%s198 + $0x498] sm:$0xff]
      %v366 = vld [vmem:[%s198 + $0x4a0] sm:$0xff]
      %v367 = vld [vmem:[%s198 + $0x4a8] sm:$0xff]
      %v368 = vld [vmem:[%s198 + $0x4b0] sm:$0xff]
      %v369 = vld [vmem:[%s198 + $0x4b8] sm:$0xff]
      %v370 = vld [vmem:[%s198 + $0x4c0] sm:$0xff]
      %v371 = vld [vmem:[%s198 + $0x4c8] sm:$0xff]
      %v372 = vld [vmem:[%s198 + $0x4d0] sm:$0xff]
      %v373 = vld [vmem:[%s198 + $0x4d8] sm:$0xff]
      %v374 = vld [vmem:[%s198 + $0x4e0] sm:$0xff]
      %v375 = vld [vmem:[%s198 + $0x4e8] sm:$0xff]
      %v376 = vld [vmem:[%s198 + $0x4f0] sm:$0xff]
      %v377 = vld [vmem:[%s198 + $0x4f8] sm:$0xff]
      %v378 = vld [vmem:[%s198 + $0x500] sm:$0xff]
      %v379 = vld [vmem:[%s198 + $0x508] sm:$0xff]
      %v380 = vld [vmem:[%s198 + $0x510] sm:$0xff]
      %v381 = vld [vmem:[%s198 + $0x518] sm:$0xff]
      %v382 = vld [vmem:[%s198 + $0x520] sm:$0xff]
      %v383 = vld [vmem:[%s198 + $0x528] sm:$0xff]
      %v384 = vld [vmem:[%s198 + $0x530] sm:$0xff]
      %v385 = vld [vmem:[%s198 + $0x538] sm:$0xff]
      %v386 = vld [vmem:[%s198 + $0x540] sm:$0xff]
      %v387 = vld [vmem:[%s198 + $0x548] sm:$0xff]
      %v388 = vld [vmem:[%s198 + $0x550] sm:$0xff]
      %v389 = vld [vmem:[%s198 + $0x558] sm:$0xff]
      %v390 = vld [vmem:[%s198 + $0x560] sm:$0xff]
      %v391 = vld [vmem:[%s198 + $0x568] sm:$0xff]
      %v392 = vld [vmem:[%s198 + $0x570] sm:$0xff]
      %v393 = vld [vmem:[%s198 + $0x578] sm:$0xff]
      %v394 = vld [vmem:[%s198 + $0x580] sm:$0xff]
      %v395 = vld [vmem:[%s198 + $0x588] sm:$0xff]
      %v396 = vld [vmem:[%s198 + $0x590] sm:$0xff]
      %v397 = vld [vmem:[%s198 + $0x598] sm:$0xff]
      %v398 = vld [vmem:[%s198 + $0x5a0] sm:$0xff]
      %v399 = vld [vmem:[%s198 + $0x5a8] sm:$0xff]
      %v400 = vld [vmem:[%s198 + $0x5b0] sm:$0xff]
      %v401 = vld [vmem:[%s198 + $0x5b8] sm:$0xff]
      %v402 = vld [vmem:[%s198 + $0x5c0] sm:$0xff]
      %v403 = vld [vmem:[%s198 + $0x5c8] sm:$0xff]
      %v404 = vld [vmem:[%s198 + $0x5d0] sm:$0xff]
      %v405 = vld [vmem:[%s198 + $0x5d8] sm:$0xff]
      %v406 = vld [vmem:[%s198 + $0x5e0] sm:$0xff]
      %v407 = vld [vmem:[%s198 + $0x5e8] sm:$0xff]
      %v408 = vld [vmem:[%s198 + $0x5f0] sm:$0xff]
      %v409 = vld [vmem:[%s198 + $0x5f8] sm:$0xff]
      %vm410 = vcmask 400384
      %v411 = vsel %vm410, %v218, 0.0
      %412 = vadd.xlane.f32.xlu0 %v411
      %v413 = vpop.xlane.xlu0 %412
      %v414 = vsel %vm410, %v219, 0.0
      %415 = vadd.xlane.f32.xlu0 %v414
      %v416 = vpop.xlane.xlu0 %415
      %v417 = vsel %vm410, %v220, 0.0
      %418 = vadd.xlane.f32.xlu0 %v417
      %v419 = vpop.xlane.xlu0 %418
      %v420 = vsel %vm410, %v221, 0.0
      %421 = vadd.xlane.f32.xlu0 %v420
      %v422 = vpop.xlane.xlu0 %421
      %v423 = vsel %vm410, %v222, 0.0
      %424 = vadd.xlane.f32.xlu0 %v423
      %v425 = vpop.xlane.xlu0 %424
      %v426 = vsel %vm410, %v223, 0.0
      %427 = vadd.xlane.f32.xlu0 %v426
      %v428 = vpop.xlane.xlu0 %427
      %v429 = vsel %vm410, %v224, 0.0
      %430 = vadd.xlane.f32.xlu0 %v429
      %v431 = vpop.xlane.xlu0 %430
      %v432 = vsel %vm410, %v225, 0.0
      %433 = vadd.xlane.f32.xlu0 %v432
      %v434 = vpop.xlane.xlu0 %433
      %v435 = vsel %vm410, %v226, 0.0
      %436 = vadd.xlane.f32.xlu0 %v435
      %v437 = vpop.xlane.xlu0 %436
      %v438 = vsel %vm410, %v227, 0.0
      %439 = vadd.xlane.f32.xlu0 %v438
      %v440 = vpop.xlane.xlu0 %439
      %v441 = vsel %vm410, %v228, 0.0
      %442 = vadd.xlane.f32.xlu0 %v441
      %v443 = vpop.xlane.xlu0 %442
      %v444 = vsel %vm410, %v229, 0.0
      %445 = vadd.xlane.f32.xlu0 %v444
      %v446 = vpop.xlane.xlu0 %445
      %v447 = vsel %vm410, %v230, 0.0
      %448 = vadd.xlane.f32.xlu0 %v447
      %v449 = vpop.xlane.xlu0 %448
      %v450 = vsel %vm410, %v231, 0.0
      %451 = vadd.xlane.f32.xlu0 %v450
      %v452 = vpop.xlane.xlu0 %451
      %v453 = vsel %vm410, %v232, 0.0
      %454 = vadd.xlane.f32.xlu0 %v453
      %v455 = vpop.xlane.xlu0 %454
      %v456 = vsel %vm410, %v233, 0.0
      %457 = vadd.xlane.f32.xlu0 %v456
      %v458 = vpop.xlane.xlu0 %457
      %v459 = vsel %vm410, %v234, 0.0
      %460 = vadd.xlane.f32.xlu0 %v459
      %v461 = vpop.xlane.xlu0 %460
      %v462 = vsel %vm410, %v235, 0.0
      %463 = vadd.xlane.f32.xlu0 %v462
      %v464 = vpop.xlane.xlu0 %463
      %v465 = vsel %vm410, %v236, 0.0
      %466 = vadd.xlane.f32.xlu0 %v465
      %v467 = vpop.xlane.xlu0 %466
      %v468 = vsel %vm410, %v237, 0.0
      %469 = vadd.xlane.f32.xlu0 %v468
      %v470 = vpop.xlane.xlu0 %469
      %v471 = vsel %vm410, %v238, 0.0
      %472 = vadd.xlane.f32.xlu0 %v471
      %v473 = vpop.xlane.xlu0 %472
      %v474 = vsel %vm410, %v239, 0.0
      %475 = vadd.xlane.f32.xlu0 %v474
      %v476 = vpop.xlane.xlu0 %475
      %v477 = vsel %vm410, %v240, 0.0
      %478 = vadd.xlane.f32.xlu0 %v477
      %v479 = vpop.xlane.xlu0 %478
      %v480 = vsel %vm410, %v241, 0.0
      %481 = vadd.xlane.f32.xlu0 %v480
      %v482 = vpop.xlane.xlu0 %481
      %v483 = vsel %vm410, %v242, 0.0
      %484 = vadd.xlane.f32.xlu0 %v483
      %v485 = vpop.xlane.xlu0 %484
      %v486 = vsel %vm410, %v243, 0.0
      %487 = vadd.xlane.f32.xlu0 %v486
      %v488 = vpop.xlane.xlu0 %487
      %v489 = vsel %vm410, %v244, 0.0
      %490 = vadd.xlane.f32.xlu0 %v489
      %v491 = vpop.xlane.xlu0 %490
      %v492 = vsel %vm410, %v245, 0.0
      %493 = vadd.xlane.f32.xlu0 %v492
      %v494 = vpop.xlane.xlu0 %493
      %v495 = vsel %vm410, %v246, 0.0
      %496 = vadd.xlane.f32.xlu0 %v495
      %v497 = vpop.xlane.xlu0 %496
      %v498 = vsel %vm410, %v247, 0.0
      %499 = vadd.xlane.f32.xlu0 %v498
      %v500 = vpop.xlane.xlu0 %499
      %v501 = vsel %vm410, %v248, 0.0
      %502 = vadd.xlane.f32.xlu0 %v501
      %v503 = vpop.xlane.xlu0 %502
      %v504 = vsel %vm410, %v249, 0.0
      %505 = vadd.xlane.f32.xlu0 %v504
      %v506 = vpop.xlane.xlu0 %505
      %v507 = vsel %vm410, %v250, 0.0
      %508 = vadd.xlane.f32.xlu0 %v507
      %v509 = vpop.xlane.xlu0 %508
      %v510 = vsel %vm410, %v251, 0.0
      %511 = vadd.xlane.f32.xlu0 %v510
      %v512 = vpop.xlane.xlu0 %511
      %v513 = vsel %vm410, %v252, 0.0
      %514 = vadd.xlane.f32.xlu0 %v513
      %v515 = vpop.xlane.xlu0 %514
      %v516 = vsel %vm410, %v253, 0.0
      %517 = vadd.xlane.f32.xlu0 %v516
      %v518 = vpop.xlane.xlu0 %517
      %v519 = vsel %vm410, %v254, 0.0
      %520 = vadd.xlane.f32.xlu0 %v519
      %v521 = vpop.xlane.xlu0 %520
      %v522 = vsel %vm410, %v255, 0.0
      %523 = vadd.xlane.f32.xlu0 %v522
      %v524 = vpop.xlane.xlu0 %523
      %v525 = vsel %vm410, %v256, 0.0
      %526 = vadd.xlane.f32.xlu0 %v525
      %v527 = vpop.xlane.xlu0 %526
      %v528 = vsel %vm410, %v257, 0.0
      %529 = vadd.xlane.f32.xlu0 %v528
      %v530 = vpop.xlane.xlu0 %529
      %v531 = vsel %vm410, %v258, 0.0
      %532 = vadd.xlane.f32.xlu0 %v531
      %v533 = vpop.xlane.xlu0 %532
      %v534 = vsel %vm410, %v259, 0.0
      %535 = vadd.xlane.f32.xlu0 %v534
      %v536 = vpop.xlane.xlu0 %535
      %v537 = vsel %vm410, %v260, 0.0
      %538 = vadd.xlane.f32.xlu0 %v537
      %v539 = vpop.xlane.xlu0 %538
      %v540 = vsel %vm410, %v261, 0.0
      %541 = vadd.xlane.f32.xlu0 %v540
      %v542 = vpop.xlane.xlu0 %541
      %v543 = vsel %vm410, %v262, 0.0
      %544 = vadd.xlane.f32.xlu0 %v543
      %v545 = vpop.xlane.xlu0 %544
      %v546 = vsel %vm410, %v263, 0.0
      %547 = vadd.xlane.f32.xlu0 %v546
      %v548 = vpop.xlane.xlu0 %547
      %v549 = vsel %vm410, %v264, 0.0
      %550 = vadd.xlane.f32.xlu0 %v549
      %v551 = vpop.xlane.xlu0 %550
      %v552 = vsel %vm410, %v265, 0.0
      %553 = vadd.xlane.f32.xlu0 %v552
      %v554 = vpop.xlane.xlu0 %553
      %v555 = vsel %vm410, %v266, 0.0
      %556 = vadd.xlane.f32.xlu0 %v555
      %v557 = vpop.xlane.xlu0 %556
      %v558 = vsel %vm410, %v267, 0.0
      %559 = vadd.xlane.f32.xlu0 %v558
      %v560 = vpop.xlane.xlu0 %559
      %v561 = vsel %vm410, %v268, 0.0
      %562 = vadd.xlane.f32.xlu0 %v561
      %v563 = vpop.xlane.xlu0 %562
      %v564 = vsel %vm410, %v269, 0.0
      %565 = vadd.xlane.f32.xlu0 %v564
      %v566 = vpop.xlane.xlu0 %565
      %v567 = vsel %vm410, %v270, 0.0
      %568 = vadd.xlane.f32.xlu0 %v567
      %v569 = vpop.xlane.xlu0 %568
      %v570 = vsel %vm410, %v271, 0.0
      %571 = vadd.xlane.f32.xlu0 %v570
      %v572 = vpop.xlane.xlu0 %571
      %v573 = vsel %vm410, %v272, 0.0
      %574 = vadd.xlane.f32.xlu0 %v573
      %v575 = vpop.xlane.xlu0 %574
      %v576 = vsel %vm410, %v273, 0.0
      %577 = vadd.xlane.f32.xlu0 %v576
      %v578 = vpop.xlane.xlu0 %577
      %v579 = vsel %vm410, %v274, 0.0
      %580 = vadd.xlane.f32.xlu0 %v579
      %v581 = vpop.xlane.xlu0 %580
      %v582 = vsel %vm410, %v275, 0.0
      %583 = vadd.xlane.f32.xlu0 %v582
      %v584 = vpop.xlane.xlu0 %583
      %v585 = vsel %vm410, %v276, 0.0
      %586 = vadd.xlane.f32.xlu0 %v585
      %v587 = vpop.xlane.xlu0 %586
      %v588 = vsel %vm410, %v277, 0.0
      %589 = vadd.xlane.f32.xlu0 %v588
      %v590 = vpop.xlane.xlu0 %589
      %v591 = vsel %vm410, %v278, 0.0
      %592 = vadd.xlane.f32.xlu0 %v591
      %v593 = vpop.xlane.xlu0 %592
      %v594 = vsel %vm410, %v279, 0.0
      %595 = vadd.xlane.f32.xlu0 %v594
      %v596 = vpop.xlane.xlu0 %595
      %v597 = vsel %vm410, %v280, 0.0
      %598 = vadd.xlane.f32.xlu0 %v597
      %v599 = vpop.xlane.xlu0 %598
      %v600 = vsel %vm410, %v281, 0.0
      %601 = vadd.xlane.f32.xlu0 %v600
      %v602 = vpop.xlane.xlu0 %601
      %v603 = vsel %vm410, %v282, 0.0
      %604 = vadd.xlane.f32.xlu0 %v603
      %v605 = vpop.xlane.xlu0 %604
      %v606 = vsel %vm410, %v283, 0.0
      %607 = vadd.xlane.f32.xlu0 %v606
      %v608 = vpop.xlane.xlu0 %607
      %v609 = vsel %vm410, %v284, 0.0
      %610 = vadd.xlane.f32.xlu0 %v609
      %v611 = vpop.xlane.xlu0 %610
      %v612 = vsel %vm410, %v285, 0.0
      %613 = vadd.xlane.f32.xlu0 %v612
      %v614 = vpop.xlane.xlu0 %613
      %v615 = vsel %vm410, %v286, 0.0
      %616 = vadd.xlane.f32.xlu0 %v615
      %v617 = vpop.xlane.xlu0 %616
      %v618 = vsel %vm410, %v287, 0.0
      %619 = vadd.xlane.f32.xlu0 %v618
      %v620 = vpop.xlane.xlu0 %619
      %v621 = vsel %vm410, %v288, 0.0
      %622 = vadd.xlane.f32.xlu0 %v621
      %v623 = vpop.xlane.xlu0 %622
      %v624 = vsel %vm410, %v289, 0.0
      %625 = vadd.xlane.f32.xlu0 %v624
      %v626 = vpop.xlane.xlu0 %625
      %v627 = vsel %vm410, %v290, 0.0
      %628 = vadd.xlane.f32.xlu0 %v627
      %v629 = vpop.xlane.xlu0 %628
      %v630 = vsel %vm410, %v291, 0.0
      %631 = vadd.xlane.f32.xlu0 %v630
      %v632 = vpop.xlane.xlu0 %631
      %v633 = vsel %vm410, %v292, 0.0
      %634 = vadd.xlane.f32.xlu0 %v633
      %v635 = vpop.xlane.xlu0 %634
      %v636 = vsel %vm410, %v293, 0.0
      %637 = vadd.xlane.f32.xlu0 %v636
      %v638 = vpop.xlane.xlu0 %637
      %v639 = vsel %vm410, %v294, 0.0
      %640 = vadd.xlane.f32.xlu0 %v639
      %v641 = vpop.xlane.xlu0 %640
      %v642 = vsel %vm410, %v295, 0.0
      %643 = vadd.xlane.f32.xlu0 %v642
      %v644 = vpop.xlane.xlu0 %643
      %v645 = vsel %vm410, %v296, 0.0
      %646 = vadd.xlane.f32.xlu0 %v645
      %v647 = vpop.xlane.xlu0 %646
      %v648 = vsel %vm410, %v297, 0.0
      %649 = vadd.xlane.f32.xlu0 %v648
      %v650 = vpop.xlane.xlu0 %649
      %v651 = vsel %vm410, %v298, 0.0
      %652 = vadd.xlane.f32.xlu0 %v651
      %v653 = vpop.xlane.xlu0 %652
      %v654 = vsel %vm410, %v299, 0.0
      %655 = vadd.xlane.f32.xlu0 %v654
      %v656 = vpop.xlane.xlu0 %655
      %v657 = vsel %vm410, %v300, 0.0
      %658 = vadd.xlane.f32.xlu0 %v657
      %v659 = vpop.xlane.xlu0 %658
      %v660 = vsel %vm410, %v301, 0.0
      %661 = vadd.xlane.f32.xlu0 %v660
      %v662 = vpop.xlane.xlu0 %661
      %v663 = vsel %vm410, %v302, 0.0
      %664 = vadd.xlane.f32.xlu0 %v663
      %v665 = vpop.xlane.xlu0 %664
      %v666 = vsel %vm410, %v303, 0.0
      %667 = vadd.xlane.f32.xlu0 %v666
      %v668 = vpop.xlane.xlu0 %667
      %v669 = vsel %vm410, %v304, 0.0
      %670 = vadd.xlane.f32.xlu0 %v669
      %v671 = vpop.xlane.xlu0 %670
      %v672 = vsel %vm410, %v305, 0.0
      %673 = vadd.xlane.f32.xlu0 %v672
      %v674 = vpop.xlane.xlu0 %673
      %v675 = vsel %vm410, %v306, 0.0
      %676 = vadd.xlane.f32.xlu0 %v675
      %v677 = vpop.xlane.xlu0 %676
      %v678 = vsel %vm410, %v307, 0.0
      %679 = vadd.xlane.f32.xlu0 %v678
      %v680 = vpop.xlane.xlu0 %679
      %v681 = vsel %vm410, %v308, 0.0
      %682 = vadd.xlane.f32.xlu0 %v681
      %v683 = vpop.xlane.xlu0 %682
      %v684 = vsel %vm410, %v309, 0.0
      %685 = vadd.xlane.f32.xlu0 %v684
      %v686 = vpop.xlane.xlu0 %685
      %v687 = vsel %vm410, %v310, 0.0
      %688 = vadd.xlane.f32.xlu0 %v687
      %v689 = vpop.xlane.xlu0 %688
      %v690 = vsel %vm410, %v311, 0.0
      %691 = vadd.xlane.f32.xlu0 %v690
      %v692 = vpop.xlane.xlu0 %691
      %v693 = vsel %vm410, %v312, 0.0
      %694 = vadd.xlane.f32.xlu0 %v693
      %v695 = vpop.xlane.xlu0 %694
      %v696 = vsel %vm410, %v313, 0.0
      %697 = vadd.xlane.f32.xlu0 %v696
      %v698 = vpop.xlane.xlu0 %697
      %v699 = vsel %vm410, %v314, 0.0
      %700 = vadd.xlane.f32.xlu0 %v699
      %v701 = vpop.xlane.xlu0 %700
      %v702 = vsel %vm410, %v315, 0.0
      %703 = vadd.xlane.f32.xlu0 %v702
      %v704 = vpop.xlane.xlu0 %703
      %v705 = vsel %vm410, %v316, 0.0
      %706 = vadd.xlane.f32.xlu0 %v705
      %v707 = vpop.xlane.xlu0 %706
      %v708 = vsel %vm410, %v317, 0.0
      %709 = vadd.xlane.f32.xlu0 %v708
      %v710 = vpop.xlane.xlu0 %709
      %v711 = vsel %vm410, %v318, 0.0
      %712 = vadd.xlane.f32.xlu0 %v711
      %v713 = vpop.xlane.xlu0 %712
      %v714 = vsel %vm410, %v319, 0.0
      %715 = vadd.xlane.f32.xlu0 %v714
      %v716 = vpop.xlane.xlu0 %715
      %v717 = vsel %vm410, %v320, 0.0
      %718 = vadd.xlane.f32.xlu0 %v717
      %v719 = vpop.xlane.xlu0 %718
      %v720 = vsel %vm410, %v321, 0.0
      %721 = vadd.xlane.f32.xlu0 %v720
      %v722 = vpop.xlane.xlu0 %721
      %v723 = vsel %vm410, %v322, 0.0
      %724 = vadd.xlane.f32.xlu0 %v723
      %v725 = vpop.xlane.xlu0 %724
      %v726 = vsel %vm410, %v323, 0.0
      %727 = vadd.xlane.f32.xlu0 %v726
      %v728 = vpop.xlane.xlu0 %727
      %v729 = vsel %vm410, %v324, 0.0
      %730 = vadd.xlane.f32.xlu0 %v729
      %v731 = vpop.xlane.xlu0 %730
      %v732 = vsel %vm410, %v325, 0.0
      %733 = vadd.xlane.f32.xlu0 %v732
      %v734 = vpop.xlane.xlu0 %733
      %v735 = vsel %vm410, %v326, 0.0
      %736 = vadd.xlane.f32.xlu0 %v735
      %v737 = vpop.xlane.xlu0 %736
      %v738 = vsel %vm410, %v327, 0.0
      %739 = vadd.xlane.f32.xlu0 %v738
      %v740 = vpop.xlane.xlu0 %739
      %v741 = vsel %vm410, %v328, 0.0
      %742 = vadd.xlane.f32.xlu0 %v741
      %v743 = vpop.xlane.xlu0 %742
      %v744 = vsel %vm410, %v329, 0.0
      %745 = vadd.xlane.f32.xlu0 %v744
      %v746 = vpop.xlane.xlu0 %745
      %v747 = vsel %vm410, %v330, 0.0
      %748 = vadd.xlane.f32.xlu0 %v747
      %v749 = vpop.xlane.xlu0 %748
      %v750 = vsel %vm410, %v331, 0.0
      %751 = vadd.xlane.f32.xlu0 %v750
      %v752 = vpop.xlane.xlu0 %751
      %v753 = vsel %vm410, %v332, 0.0
      %754 = vadd.xlane.f32.xlu0 %v753
      %v755 = vpop.xlane.xlu0 %754
      %v756 = vsel %vm410, %v333, 0.0
      %757 = vadd.xlane.f32.xlu0 %v756
      %v758 = vpop.xlane.xlu0 %757
      %v759 = vsel %vm410, %v334, 0.0
      %760 = vadd.xlane.f32.xlu0 %v759
      %v761 = vpop.xlane.xlu0 %760
      %v762 = vsel %vm410, %v335, 0.0
      %763 = vadd.xlane.f32.xlu0 %v762
      %v764 = vpop.xlane.xlu0 %763
      %v765 = vsel %vm410, %v336, 0.0
      %766 = vadd.xlane.f32.xlu0 %v765
      %v767 = vpop.xlane.xlu0 %766
      %v768 = vsel %vm410, %v337, 0.0
      %769 = vadd.xlane.f32.xlu0 %v768
      %v770 = vpop.xlane.xlu0 %769
      %v771 = vsel %vm410, %v338, 0.0
      %772 = vadd.xlane.f32.xlu0 %v771
      %v773 = vpop.xlane.xlu0 %772
      %v774 = vsel %vm410, %v339, 0.0
      %775 = vadd.xlane.f32.xlu0 %v774
      %v776 = vpop.xlane.xlu0 %775
      %v777 = vsel %vm410, %v340, 0.0
      %778 = vadd.xlane.f32.xlu0 %v777
      %v779 = vpop.xlane.xlu0 %778
      %v780 = vsel %vm410, %v341, 0.0
      %781 = vadd.xlane.f32.xlu0 %v780
      %v782 = vpop.xlane.xlu0 %781
      %v783 = vsel %vm410, %v342, 0.0
      %784 = vadd.xlane.f32.xlu0 %v783
      %v785 = vpop.xlane.xlu0 %784
      %v786 = vsel %vm410, %v343, 0.0
      %787 = vadd.xlane.f32.xlu0 %v786
      %v788 = vpop.xlane.xlu0 %787
      %v789 = vsel %vm410, %v344, 0.0
      %790 = vadd.xlane.f32.xlu0 %v789
      %v791 = vpop.xlane.xlu0 %790
      %v792 = vsel %vm410, %v345, 0.0
      %793 = vadd.xlane.f32.xlu0 %v792
      %v794 = vpop.xlane.xlu0 %793
      %v795 = vsel %vm410, %v346, 0.0
      %796 = vadd.xlane.f32.xlu0 %v795
      %v797 = vpop.xlane.xlu0 %796
      %v798 = vsel %vm410, %v347, 0.0
      %799 = vadd.xlane.f32.xlu0 %v798
      %v800 = vpop.xlane.xlu0 %799
      %v801 = vsel %vm410, %v348, 0.0
      %802 = vadd.xlane.f32.xlu0 %v801
      %v803 = vpop.xlane.xlu0 %802
      %v804 = vsel %vm410, %v349, 0.0
      %805 = vadd.xlane.f32.xlu0 %v804
      %v806 = vpop.xlane.xlu0 %805
      %v807 = vsel %vm410, %v350, 0.0
      %808 = vadd.xlane.f32.xlu0 %v807
      %v809 = vpop.xlane.xlu0 %808
      %v810 = vsel %vm410, %v351, 0.0
      %811 = vadd.xlane.f32.xlu0 %v810
      %v812 = vpop.xlane.xlu0 %811
      %v813 = vsel %vm410, %v352, 0.0
      %814 = vadd.xlane.f32.xlu0 %v813
      %v815 = vpop.xlane.xlu0 %814
      %v816 = vsel %vm410, %v353, 0.0
      %817 = vadd.xlane.f32.xlu0 %v816
      %v818 = vpop.xlane.xlu0 %817
      %v819 = vsel %vm410, %v354, 0.0
      %820 = vadd.xlane.f32.xlu0 %v819
      %v821 = vpop.xlane.xlu0 %820
      %v822 = vsel %vm410, %v355, 0.0
      %823 = vadd.xlane.f32.xlu0 %v822
      %v824 = vpop.xlane.xlu0 %823
      %v825 = vsel %vm410, %v356, 0.0
      %826 = vadd.xlane.f32.xlu0 %v825
      %v827 = vpop.xlane.xlu0 %826
      %v828 = vsel %vm410, %v357, 0.0
      %829 = vadd.xlane.f32.xlu0 %v828
      %v830 = vpop.xlane.xlu0 %829
      %v831 = vsel %vm410, %v358, 0.0
      %832 = vadd.xlane.f32.xlu0 %v831
      %v833 = vpop.xlane.xlu0 %832
      %v834 = vsel %vm410, %v359, 0.0
      %835 = vadd.xlane.f32.xlu0 %v834
      %v836 = vpop.xlane.xlu0 %835
      %v837 = vsel %vm410, %v360, 0.0
      %838 = vadd.xlane.f32.xlu0 %v837
      %v839 = vpop.xlane.xlu0 %838
      %v840 = vsel %vm410, %v361, 0.0
      %841 = vadd.xlane.f32.xlu0 %v840
      %v842 = vpop.xlane.xlu0 %841
      %v843 = vsel %vm410, %v362, 0.0
      %844 = vadd.xlane.f32.xlu0 %v843
      %v845 = vpop.xlane.xlu0 %844
      %v846 = vsel %vm410, %v363, 0.0
      %847 = vadd.xlane.f32.xlu0 %v846
      %v848 = vpop.xlane.xlu0 %847
      %v849 = vsel %vm410, %v364, 0.0
      %850 = vadd.xlane.f32.xlu0 %v849
      %v851 = vpop.xlane.xlu0 %850
      %v852 = vsel %vm410, %v365, 0.0
      %853 = vadd.xlane.f32.xlu0 %v852
      %v854 = vpop.xlane.xlu0 %853
      %v855 = vsel %vm410, %v366, 0.0
      %856 = vadd.xlane.f32.xlu0 %v855
      %v857 = vpop.xlane.xlu0 %856
      %v858 = vsel %vm410, %v367, 0.0
      %859 = vadd.xlane.f32.xlu0 %v858
      %v860 = vpop.xlane.xlu0 %859
      %v861 = vsel %vm410, %v368, 0.0
      %862 = vadd.xlane.f32.xlu0 %v861
      %v863 = vpop.xlane.xlu0 %862
      %v864 = vsel %vm410, %v369, 0.0
      %865 = vadd.xlane.f32.xlu0 %v864
      %v866 = vpop.xlane.xlu0 %865
      %v867 = vsel %vm410, %v370, 0.0
      %868 = vadd.xlane.f32.xlu0 %v867
      %v869 = vpop.xlane.xlu0 %868
      %v870 = vsel %vm410, %v371, 0.0
      %871 = vadd.xlane.f32.xlu0 %v870
      %v872 = vpop.xlane.xlu0 %871
      %v873 = vsel %vm410, %v372, 0.0
      %874 = vadd.xlane.f32.xlu0 %v873
      %v875 = vpop.xlane.xlu0 %874
      %v876 = vsel %vm410, %v373, 0.0
      %877 = vadd.xlane.f32.xlu0 %v876
      %v878 = vpop.xlane.xlu0 %877
      %v879 = vsel %vm410, %v374, 0.0
      %880 = vadd.xlane.f32.xlu0 %v879
      %v881 = vpop.xlane.xlu0 %880
      %v882 = vsel %vm410, %v375, 0.0
      %883 = vadd.xlane.f32.xlu0 %v882
      %v884 = vpop.xlane.xlu0 %883
      %v885 = vsel %vm410, %v376, 0.0
      %886 = vadd.xlane.f32.xlu0 %v885
      %v887 = vpop.xlane.xlu0 %886
      %v888 = vsel %vm410, %v377, 0.0
      %889 = vadd.xlane.f32.xlu0 %v888
      %v890 = vpop.xlane.xlu0 %889
      %v891 = vsel %vm410, %v378, 0.0
      %892 = vadd.xlane.f32.xlu0 %v891
      %v893 = vpop.xlane.xlu0 %892
      %v894 = vsel %vm410, %v379, 0.0
      %895 = vadd.xlane.f32.xlu0 %v894
      %v896 = vpop.xlane.xlu0 %895
      %v897 = vsel %vm410, %v380, 0.0
      %898 = vadd.xlane.f32.xlu0 %v897
      %v899 = vpop.xlane.xlu0 %898
      %v900 = vsel %vm410, %v381, 0.0
      %901 = vadd.xlane.f32.xlu0 %v900
      %v902 = vpop.xlane.xlu0 %901
      %v903 = vsel %vm410, %v382, 0.0
      %904 = vadd.xlane.f32.xlu0 %v903
      %v905 = vpop.xlane.xlu0 %904
      %v906 = vsel %vm410, %v383, 0.0
      %907 = vadd.xlane.f32.xlu0 %v906
      %v908 = vpop.xlane.xlu0 %907
      %v909 = vsel %vm410, %v384, 0.0
      %910 = vadd.xlane.f32.xlu0 %v909
      %v911 = vpop.xlane.xlu0 %910
      %v912 = vsel %vm410, %v385, 0.0
      %913 = vadd.xlane.f32.xlu0 %v912
      %v914 = vpop.xlane.xlu0 %913
      %v915 = vsel %vm410, %v386, 0.0
      %916 = vadd.xlane.f32.xlu0 %v915
      %v917 = vpop.xlane.xlu0 %916
      %v918 = vsel %vm410, %v387, 0.0
      %919 = vadd.xlane.f32.xlu0 %v918
      %v920 = vpop.xlane.xlu0 %919
      %v921 = vsel %vm410, %v388, 0.0
      %922 = vadd.xlane.f32.xlu0 %v921
      %v923 = vpop.xlane.xlu0 %922
      %v924 = vsel %vm410, %v389, 0.0
      %925 = vadd.xlane.f32.xlu0 %v924
      %v926 = vpop.xlane.xlu0 %925
      %v927 = vsel %vm410, %v390, 0.0
      %928 = vadd.xlane.f32.xlu0 %v927
      %v929 = vpop.xlane.xlu0 %928
      %v930 = vsel %vm410, %v391, 0.0
      %931 = vadd.xlane.f32.xlu0 %v930
      %v932 = vpop.xlane.xlu0 %931
      %v933 = vsel %vm410, %v392, 0.0
      %934 = vadd.xlane.f32.xlu0 %v933
      %v935 = vpop.xlane.xlu0 %934
      %v936 = vsel %vm410, %v393, 0.0
      %937 = vadd.xlane.f32.xlu0 %v936
      %v938 = vpop.xlane.xlu0 %937
      %v939 = vsel %vm410, %v394, 0.0
      %940 = vadd.xlane.f32.xlu0 %v939
      %v941 = vpop.xlane.xlu0 %940
      %v942 = vsel %vm410, %v395, 0.0
      %943 = vadd.xlane.f32.xlu0 %v942
      %v944 = vpop.xlane.xlu0 %943
      %v945 = vsel %vm410, %v396, 0.0
      %946 = vadd.xlane.f32.xlu0 %v945
      %v947 = vpop.xlane.xlu0 %946
      %v948 = vsel %vm410, %v397, 0.0
      %949 = vadd.xlane.f32.xlu0 %v948
      %v950 = vpop.xlane.xlu0 %949
      %v951 = vsel %vm410, %v398, 0.0
      %952 = vadd.xlane.f32.xlu0 %v951
      %v953 = vpop.xlane.xlu0 %952
      %v954 = vsel %vm410, %v399, 0.0
      %955 = vadd.xlane.f32.xlu0 %v954
      %v956 = vpop.xlane.xlu0 %955
      %v957 = vsel %vm410, %v400, 0.0
      %958 = vadd.xlane.f32.xlu0 %v957
      %v959 = vpop.xlane.xlu0 %958
      %v960 = vsel %vm410, %v401, 0.0
      %961 = vadd.xlane.f32.xlu0 %v960
      %v962 = vpop.xlane.xlu0 %961
      %v963 = vsel %vm410, %v402, 0.0
      %964 = vadd.xlane.f32.xlu0 %v963
      %v965 = vpop.xlane.xlu0 %964
      %v966 = vsel %vm410, %v403, 0.0
      %967 = vadd.xlane.f32.xlu0 %v966
      %v968 = vpop.xlane.xlu0 %967
      %v969 = vsel %vm410, %v404, 0.0
      %970 = vadd.xlane.f32.xlu0 %v969
      %v971 = vpop.xlane.xlu0 %970
      %v972 = vsel %vm410, %v405, 0.0
      %973 = vadd.xlane.f32.xlu0 %v972
      %v974 = vpop.xlane.xlu0 %973
      %v975 = vsel %vm410, %v406, 0.0
      %976 = vadd.xlane.f32.xlu0 %v975
      %v977 = vpop.xlane.xlu0 %976
      %v978 = vsel %vm410, %v407, 0.0
      %979 = vadd.xlane.f32.xlu0 %v978
      %v980 = vpop.xlane.xlu0 %979
      %v981 = vsel %vm410, %v408, 0.0
      %982 = vadd.xlane.f32.xlu0 %v981
      %v983 = vpop.xlane.xlu0 %982
      %v984 = vsel %vm410, %v409, 0.0
      %985 = vadd.xlane.f32.xlu0 %v984
      %v986 = vpop.xlane.xlu0 %985
      %v987 = vmul.f32 %v413, 0.020408163
      %v988 = vmul.f32 %v416, 0.020408163
      %v989 = vmul.f32 %v419, 0.020408163
      %v990 = vmul.f32 %v422, 0.020408163
      %v991 = vmul.f32 %v425, 0.020408163
      %v992 = vmul.f32 %v428, 0.020408163
      %v993 = vmul.f32 %v431, 0.020408163
      %v994 = vmul.f32 %v434, 0.020408163
      %v995 = vmul.f32 %v437, 0.020408163
      %v996 = vmul.f32 %v440, 0.020408163
      %v997 = vmul.f32 %v443, 0.020408163
      %v998 = vmul.f32 %v446, 0.020408163
      %v999 = vmul.f32 %v449, 0.020408163
      %v1000 = vmul.f32 %v452, 0.020408163
      %v1001 = vmul.f32 %v455, 0.020408163
      %v1002 = vmul.f32 %v458, 0.020408163
      %v1003 = vmul.f32 %v461, 0.020408163
      %v1004 = vmul.f32 %v464, 0.020408163
      %v1005 = vmul.f32 %v467, 0.020408163
      %v1006 = vmul.f32 %v470, 0.020408163
      %v1007 = vmul.f32 %v473, 0.020408163
      %v1008 = vmul.f32 %v476, 0.020408163
      %v1009 = vmul.f32 %v479, 0.020408163
      %v1010 = vmul.f32 %v482, 0.020408163
      %v1011 = vmul.f32 %v485, 0.020408163
      %v1012 = vmul.f32 %v488, 0.020408163
      %v1013 = vmul.f32 %v491, 0.020408163
      %v1014 = vmul.f32 %v494, 0.020408163
      %v1015 = vmul.f32 %v497, 0.020408163
      %v1016 = vmul.f32 %v500, 0.020408163
      %v1017 = vmul.f32 %v503, 0.020408163
      %v1018 = vmul.f32 %v506, 0.020408163
      %v1019 = vmul.f32 %v509, 0.020408163
      %v1020 = vmul.f32 %v512, 0.020408163
      %v1021 = vmul.f32 %v515, 0.020408163
      %v1022 = vmul.f32 %v518, 0.020408163
      %v1023 = vmul.f32 %v521, 0.020408163
      %v1024 = vmul.f32 %v524, 0.020408163
      %v1025 = vmul.f32 %v527, 0.020408163
      %v1026 = vmul.f32 %v530, 0.020408163
      %v1027 = vmul.f32 %v533, 0.020408163
      %v1028 = vmul.f32 %v536, 0.020408163
      %v1029 = vmul.f32 %v539, 0.020408163
      %v1030 = vmul.f32 %v542, 0.020408163
      %v1031 = vmul.f32 %v545, 0.020408163
      %v1032 = vmul.f32 %v548, 0.020408163
      %v1033 = vmul.f32 %v551, 0.020408163
      %v1034 = vmul.f32 %v554, 0.020408163
      %v1035 = vmul.f32 %v557, 0.020408163
      %v1036 = vmul.f32 %v560, 0.020408163
      %v1037 = vmul.f32 %v563, 0.020408163
      %v1038 = vmul.f32 %v566, 0.020408163
      %v1039 = vmul.f32 %v569, 0.020408163
      %v1040 = vmul.f32 %v572, 0.020408163
      %v1041 = vmul.f32 %v575, 0.020408163
      %v1042 = vmul.f32 %v578, 0.020408163
      %v1043 = vmul.f32 %v581, 0.020408163
      %v1044 = vmul.f32 %v584, 0.020408163
      %v1045 = vmul.f32 %v587, 0.020408163
      %v1046 = vmul.f32 %v590, 0.020408163
      %v1047 = vmul.f32 %v593, 0.020408163
      %v1048 = vmul.f32 %v596, 0.020408163
      %v1049 = vmul.f32 %v599, 0.020408163
      %v1050 = vmul.f32 %v602, 0.020408163
      %v1051 = vmul.f32 %v605, 0.020408163
      %v1052 = vmul.f32 %v608, 0.020408163
      %v1053 = vmul.f32 %v611, 0.020408163
      %v1054 = vmul.f32 %v614, 0.020408163
      %v1055 = vmul.f32 %v617, 0.020408163
      %v1056 = vmul.f32 %v620, 0.020408163
      %v1057 = vmul.f32 %v623, 0.020408163
      %v1058 = vmul.f32 %v626, 0.020408163
      %v1059 = vmul.f32 %v629, 0.020408163
      %v1060 = vmul.f32 %v632, 0.020408163
      %v1061 = vmul.f32 %v635, 0.020408163
      %v1062 = vmul.f32 %v638, 0.020408163
      %v1063 = vmul.f32 %v641, 0.020408163
      %v1064 = vmul.f32 %v644, 0.020408163
      %v1065 = vmul.f32 %v647, 0.020408163
      %v1066 = vmul.f32 %v650, 0.020408163
      %v1067 = vmul.f32 %v653, 0.020408163
      %v1068 = vmul.f32 %v656, 0.020408163
      %v1069 = vmul.f32 %v659, 0.020408163
      %v1070 = vmul.f32 %v662, 0.020408163
      %v1071 = vmul.f32 %v665, 0.020408163
      %v1072 = vmul.f32 %v668, 0.020408163
      %v1073 = vmul.f32 %v671, 0.020408163
      %v1074 = vmul.f32 %v674, 0.020408163
      %v1075 = vmul.f32 %v677, 0.020408163
      %v1076 = vmul.f32 %v680, 0.020408163
      %v1077 = vmul.f32 %v683, 0.020408163
      %v1078 = vmul.f32 %v686, 0.020408163
      %v1079 = vmul.f32 %v689, 0.020408163
      %v1080 = vmul.f32 %v692, 0.020408163
      %v1081 = vmul.f32 %v695, 0.020408163
      %v1082 = vmul.f32 %v698, 0.020408163
      %v1083 = vmul.f32 %v701, 0.020408163
      %v1084 = vmul.f32 %v704, 0.020408163
      %v1085 = vmul.f32 %v707, 0.020408163
      %v1086 = vmul.f32 %v710, 0.020408163
      %v1087 = vmul.f32 %v713, 0.020408163
      %v1088 = vmul.f32 %v716, 0.020408163
      %v1089 = vmul.f32 %v719, 0.020408163
      %v1090 = vmul.f32 %v722, 0.020408163
      %v1091 = vmul.f32 %v725, 0.020408163
      %v1092 = vmul.f32 %v728, 0.020408163
      %v1093 = vmul.f32 %v731, 0.020408163
      %v1094 = vmul.f32 %v734, 0.020408163
      %v1095 = vmul.f32 %v737, 0.020408163
      %v1096 = vmul.f32 %v740, 0.020408163
      %v1097 = vmul.f32 %v743, 0.020408163
      %v1098 = vmul.f32 %v746, 0.020408163
      %v1099 = vmul.f32 %v749, 0.020408163
      %v1100 = vmul.f32 %v752, 0.020408163
      %v1101 = vmul.f32 %v755, 0.020408163
      %v1102 = vmul.f32 %v758, 0.020408163
      %v1103 = vmul.f32 %v761, 0.020408163
      %v1104 = vmul.f32 %v764, 0.020408163
      %v1105 = vmul.f32 %v767, 0.020408163
      %v1106 = vmul.f32 %v770, 0.020408163
      %v1107 = vmul.f32 %v773, 0.020408163
      %v1108 = vmul.f32 %v776, 0.020408163
      %v1109 = vmul.f32 %v779, 0.020408163
      %v1110 = vmul.f32 %v782, 0.020408163
      %v1111 = vmul.f32 %v785, 0.020408163
      %v1112 = vmul.f32 %v788, 0.020408163
      %v1113 = vmul.f32 %v791, 0.020408163
      %v1114 = vmul.f32 %v794, 0.020408163
      %v1115 = vmul.f32 %v797, 0.020408163
      %v1116 = vmul.f32 %v800, 0.020408163
      %v1117 = vmul.f32 %v803, 0.020408163
      %v1118 = vmul.f32 %v806, 0.020408163
      %v1119 = vmul.f32 %v809, 0.020408163
      %v1120 = vmul.f32 %v812, 0.020408163
      %v1121 = vmul.f32 %v815, 0.020408163
      %v1122 = vmul.f32 %v818, 0.020408163
      %v1123 = vmul.f32 %v821, 0.020408163
      %v1124 = vmul.f32 %v824, 0.020408163
      %v1125 = vmul.f32 %v827, 0.020408163
      %v1126 = vmul.f32 %v830, 0.020408163
      %v1127 = vmul.f32 %v833, 0.020408163
      %v1128 = vmul.f32 %v836, 0.020408163
      %v1129 = vmul.f32 %v839, 0.020408163
      %v1130 = vmul.f32 %v842, 0.020408163
      %v1131 = vmul.f32 %v845, 0.020408163
      %v1132 = vmul.f32 %v848, 0.020408163
      %v1133 = vmul.f32 %v851, 0.020408163
      %v1134 = vmul.f32 %v854, 0.020408163
      %v1135 = vmul.f32 %v857, 0.020408163
      %v1136 = vmul.f32 %v860, 0.020408163
      %v1137 = vmul.f32 %v863, 0.020408163
      %v1138 = vmul.f32 %v866, 0.020408163
      %v1139 = vmul.f32 %v869, 0.020408163
      %v1140 = vmul.f32 %v872, 0.020408163
      %v1141 = vmul.f32 %v875, 0.020408163
      %v1142 = vmul.f32 %v878, 0.020408163
      %v1143 = vmul.f32 %v881, 0.020408163
      %v1144 = vmul.f32 %v884, 0.020408163
      %v1145 = vmul.f32 %v887, 0.020408163
      %v1146 = vmul.f32 %v890, 0.020408163
      %v1147 = vmul.f32 %v893, 0.020408163
      %v1148 = vmul.f32 %v896, 0.020408163
      %v1149 = vmul.f32 %v899, 0.020408163
      %v1150 = vmul.f32 %v902, 0.020408163
      %v1151 = vmul.f32 %v905, 0.020408163
      %v1152 = vmul.f32 %v908, 0.020408163
      %v1153 = vmul.f32 %v911, 0.020408163
      %v1154 = vmul.f32 %v914, 0.020408163
      %v1155 = vmul.f32 %v917, 0.020408163
      %v1156 = vmul.f32 %v920, 0.020408163
      %v1157 = vmul.f32 %v923, 0.020408163
      %v1158 = vmul.f32 %v926, 0.020408163
      %v1159 = vmul.f32 %v929, 0.020408163
      %v1160 = vmul.f32 %v932, 0.020408163
      %v1161 = vmul.f32 %v935, 0.020408163
      %v1162 = vmul.f32 %v938, 0.020408163
      %v1163 = vmul.f32 %v941, 0.020408163
      %v1164 = vmul.f32 %v944, 0.020408163
      %v1165 = vmul.f32 %v947, 0.020408163
      %v1166 = vmul.f32 %v950, 0.020408163
      %v1167 = vmul.f32 %v953, 0.020408163
      %v1168 = vmul.f32 %v956, 0.020408163
      %v1169 = vmul.f32 %v959, 0.020408163
      %v1170 = vmul.f32 %v962, 0.020408163
      %v1171 = vmul.f32 %v965, 0.020408163
      %v1172 = vmul.f32 %v968, 0.020408163
      %v1173 = vmul.f32 %v971, 0.020408163
      %v1174 = vmul.f32 %v974, 0.020408163
      %v1175 = vmul.f32 %v977, 0.020408163
      %v1176 = vmul.f32 %v980, 0.020408163
      %v1177 = vmul.f32 %v983, 0.020408163
      %v1178 = vmul.f32 %v986, 0.020408163
      %v1179 = vsub.f32 %v218, %v987
      %v1180 = vsub.f32 %v219, %v988
      %v1181 = vsub.f32 %v220, %v989
      %v1182 = vsub.f32 %v221, %v990
      %v1183 = vsub.f32 %v222, %v991
      %v1184 = vsub.f32 %v223, %v992
      %v1185 = vsub.f32 %v224, %v993
      %v1186 = vsub.f32 %v225, %v994
      %v1187 = vsub.f32 %v226, %v995
      %v1188 = vsub.f32 %v227, %v996
      %v1189 = vsub.f32 %v228, %v997
      %v1190 = vsub.f32 %v229, %v998
      %v1191 = vsub.f32 %v230, %v999
      %v1192 = vsub.f32 %v231, %v1000
      %v1193 = vsub.f32 %v232, %v1001
      %v1194 = vsub.f32 %v233, %v1002
      %v1195 = vsub.f32 %v234, %v1003
      %v1196 = vsub.f32 %v235, %v1004
      %v1197 = vsub.f32 %v236, %v1005
      %v1198 = vsub.f32 %v237, %v1006
      %v1199 = vsub.f32 %v238, %v1007
      %v1200 = vsub.f32 %v239, %v1008
      %v1201 = vsub.f32 %v240, %v1009
      %v1202 = vsub.f32 %v241, %v1010
      %v1203 = vsub.f32 %v242, %v1011
      %v1204 = vsub.f32 %v243, %v1012
      %v1205 = vsub.f32 %v244, %v1013
      %v1206 = vsub.f32 %v245, %v1014
      %v1207 = vsub.f32 %v246, %v1015
      %v1208 = vsub.f32 %v247, %v1016
      %v1209 = vsub.f32 %v248, %v1017
      %v1210 = vsub.f32 %v249, %v1018
      %v1211 = vsub.f32 %v250, %v1019
      %v1212 = vsub.f32 %v251, %v1020
      %v1213 = vsub.f32 %v252, %v1021
      %v1214 = vsub.f32 %v253, %v1022
      %v1215 = vsub.f32 %v254, %v1023
      %v1216 = vsub.f32 %v255, %v1024
      %v1217 = vsub.f32 %v256, %v1025
      %v1218 = vsub.f32 %v257, %v1026
      %v1219 = vsub.f32 %v258, %v1027
      %v1220 = vsub.f32 %v259, %v1028
      %v1221 = vsub.f32 %v260, %v1029
      %v1222 = vsub.f32 %v261, %v1030
      %v1223 = vsub.f32 %v262, %v1031
      %v1224 = vsub.f32 %v263, %v1032
      %v1225 = vsub.f32 %v264, %v1033
      %v1226 = vsub.f32 %v265, %v1034
      %v1227 = vsub.f32 %v266, %v1035
      %v1228 = vsub.f32 %v267, %v1036
      %v1229 = vsub.f32 %v268, %v1037
      %v1230 = vsub.f32 %v269, %v1038
      %v1231 = vsub.f32 %v270, %v1039
      %v1232 = vsub.f32 %v271, %v1040
      %v1233 = vsub.f32 %v272, %v1041
      %v1234 = vsub.f32 %v273, %v1042
      %v1235 = vsub.f32 %v274, %v1043
      %v1236 = vsub.f32 %v275, %v1044
      %v1237 = vsub.f32 %v276, %v1045
      %v1238 = vsub.f32 %v277, %v1046
      %v1239 = vsub.f32 %v278, %v1047
      %v1240 = vsub.f32 %v279, %v1048
      %v1241 = vsub.f32 %v280, %v1049
      %v1242 = vsub.f32 %v281, %v1050
      %v1243 = vsub.f32 %v282, %v1051
      %v1244 = vsub.f32 %v283, %v1052
      %v1245 = vsub.f32 %v284, %v1053
      %v1246 = vsub.f32 %v285, %v1054
      %v1247 = vsub.f32 %v286, %v1055
      %v1248 = vsub.f32 %v287, %v1056
      %v1249 = vsub.f32 %v288, %v1057
      %v1250 = vsub.f32 %v289, %v1058
      %v1251 = vsub.f32 %v290, %v1059
      %v1252 = vsub.f32 %v291, %v1060
      %v1253 = vsub.f32 %v292, %v1061
      %v1254 = vsub.f32 %v293, %v1062
      %v1255 = vsub.f32 %v294, %v1063
      %v1256 = vsub.f32 %v295, %v1064
      %v1257 = vsub.f32 %v296, %v1065
      %v1258 = vsub.f32 %v297, %v1066
      %v1259 = vsub.f32 %v298, %v1067
      %v1260 = vsub.f32 %v299, %v1068
      %v1261 = vsub.f32 %v300, %v1069
      %v1262 = vsub.f32 %v301, %v1070
      %v1263 = vsub.f32 %v302, %v1071
      %v1264 = vsub.f32 %v303, %v1072
      %v1265 = vsub.f32 %v304, %v1073
      %v1266 = vsub.f32 %v305, %v1074
      %v1267 = vsub.f32 %v306, %v1075
      %v1268 = vsub.f32 %v307, %v1076
      %v1269 = vsub.f32 %v308, %v1077
      %v1270 = vsub.f32 %v309, %v1078
      %v1271 = vsub.f32 %v310, %v1079
      %v1272 = vsub.f32 %v311, %v1080
      %v1273 = vsub.f32 %v312, %v1081
      %v1274 = vsub.f32 %v313, %v1082
      %v1275 = vsub.f32 %v314, %v1083
      %v1276 = vsub.f32 %v315, %v1084
      %v1277 = vsub.f32 %v316, %v1085
      %v1278 = vsub.f32 %v317, %v1086
      %v1279 = vsub.f32 %v318, %v1087
      %v1280 = vsub.f32 %v319, %v1088
      %v1281 = vsub.f32 %v320, %v1089
      %v1282 = vsub.f32 %v321, %v1090
      %v1283 = vsub.f32 %v322, %v1091
      %v1284 = vsub.f32 %v323, %v1092
      %v1285 = vsub.f32 %v324, %v1093
      %v1286 = vsub.f32 %v325, %v1094
      %v1287 = vsub.f32 %v326, %v1095
      %v1288 = vsub.f32 %v327, %v1096
      %v1289 = vsub.f32 %v328, %v1097
      %v1290 = vsub.f32 %v329, %v1098
      %v1291 = vsub.f32 %v330, %v1099
      %v1292 = vsub.f32 %v331, %v1100
      %v1293 = vsub.f32 %v332, %v1101
      %v1294 = vsub.f32 %v333, %v1102
      %v1295 = vsub.f32 %v334, %v1103
      %v1296 = vsub.f32 %v335, %v1104
      %v1297 = vsub.f32 %v336, %v1105
      %v1298 = vsub.f32 %v337, %v1106
      %v1299 = vsub.f32 %v338, %v1107
      %v1300 = vsub.f32 %v339, %v1108
      %v1301 = vsub.f32 %v340, %v1109
      %v1302 = vsub.f32 %v341, %v1110
      %v1303 = vsub.f32 %v342, %v1111
      %v1304 = vsub.f32 %v343, %v1112
      %v1305 = vsub.f32 %v344, %v1113
      %v1306 = vsub.f32 %v345, %v1114
      %v1307 = vsub.f32 %v346, %v1115
      %v1308 = vsub.f32 %v347, %v1116
      %v1309 = vsub.f32 %v348, %v1117
      %v1310 = vsub.f32 %v349, %v1118
      %v1311 = vsub.f32 %v350, %v1119
      %v1312 = vsub.f32 %v351, %v1120
      %v1313 = vsub.f32 %v352, %v1121
      %v1314 = vsub.f32 %v353, %v1122
      %v1315 = vsub.f32 %v354, %v1123
      %v1316 = vsub.f32 %v355, %v1124
      %v1317 = vsub.f32 %v356, %v1125
      %v1318 = vsub.f32 %v357, %v1126
      %v1319 = vsub.f32 %v358, %v1127
      %v1320 = vsub.f32 %v359, %v1128
      %v1321 = vsub.f32 %v360, %v1129
      %v1322 = vsub.f32 %v361, %v1130
      %v1323 = vsub.f32 %v362, %v1131
      %v1324 = vsub.f32 %v363, %v1132
      %v1325 = vsub.f32 %v364, %v1133
      %v1326 = vsub.f32 %v365, %v1134
      %v1327 = vsub.f32 %v366, %v1135
      %v1328 = vsub.f32 %v367, %v1136
      %v1329 = vsub.f32 %v368, %v1137
      %v1330 = vsub.f32 %v369, %v1138
      %v1331 = vsub.f32 %v370, %v1139
      %v1332 = vsub.f32 %v371, %v1140
      %v1333 = vsub.f32 %v372, %v1141
      %v1334 = vsub.f32 %v373, %v1142
      %v1335 = vsub.f32 %v374, %v1143
      %v1336 = vsub.f32 %v375, %v1144
      %v1337 = vsub.f32 %v376, %v1145
      %v1338 = vsub.f32 %v377, %v1146
      %v1339 = vsub.f32 %v378, %v1147
      %v1340 = vsub.f32 %v379, %v1148
      %v1341 = vsub.f32 %v380, %v1149
      %v1342 = vsub.f32 %v381, %v1150
      %v1343 = vsub.f32 %v382, %v1151
      %v1344 = vsub.f32 %v383, %v1152
      %v1345 = vsub.f32 %v384, %v1153
      %v1346 = vsub.f32 %v385, %v1154
      %v1347 = vsub.f32 %v386, %v1155
      %v1348 = vsub.f32 %v387, %v1156
      %v1349 = vsub.f32 %v388, %v1157
      %v1350 = vsub.f32 %v389, %v1158
      %v1351 = vsub.f32 %v390, %v1159
      %v1352 = vsub.f32 %v391, %v1160
      %v1353 = vsub.f32 %v392, %v1161
      %v1354 = vsub.f32 %v393, %v1162
      %v1355 = vsub.f32 %v394, %v1163
      %v1356 = vsub.f32 %v395, %v1164
      %v1357 = vsub.f32 %v396, %v1165
      %v1358 = vsub.f32 %v397, %v1166
      %v1359 = vsub.f32 %v398, %v1167
      %v1360 = vsub.f32 %v399, %v1168
      %v1361 = vsub.f32 %v400, %v1169
      %v1362 = vsub.f32 %v401, %v1170
      %v1363 = vsub.f32 %v402, %v1171
      %v1364 = vsub.f32 %v403, %v1172
      %v1365 = vsub.f32 %v404, %v1173
      %v1366 = vsub.f32 %v405, %v1174
      %v1367 = vsub.f32 %v406, %v1175
      %v1368 = vsub.f32 %v407, %v1176
      %v1369 = vsub.f32 %v408, %v1177
      %v1370 = vsub.f32 %v409, %v1178
      %v1371 = vmul.f32 %v1179, %v1179
      %v1372 = vmul.f32 %v1180, %v1180
      %v1373 = vmul.f32 %v1181, %v1181
      %v1374 = vmul.f32 %v1182, %v1182
      %v1375 = vmul.f32 %v1183, %v1183
      %v1376 = vmul.f32 %v1184, %v1184
      %v1377 = vmul.f32 %v1185, %v1185
      %v1378 = vmul.f32 %v1186, %v1186
      %v1379 = vmul.f32 %v1187, %v1187
      %v1380 = vmul.f32 %v1188, %v1188
      %v1381 = vmul.f32 %v1189, %v1189
      %v1382 = vmul.f32 %v1190, %v1190
      %v1383 = vmul.f32 %v1191, %v1191
      %v1384 = vmul.f32 %v1192, %v1192
      %v1385 = vmul.f32 %v1193, %v1193
      %v1386 = vmul.f32 %v1194, %v1194
      %v1387 = vmul.f32 %v1195, %v1195
      %v1388 = vmul.f32 %v1196, %v1196
      %v1389 = vmul.f32 %v1197, %v1197
      %v1390 = vmul.f32 %v1198, %v1198
      %v1391 = vmul.f32 %v1199, %v1199
      %v1392 = vmul.f32 %v1200, %v1200
      %v1393 = vmul.f32 %v1201, %v1201
      %v1394 = vmul.f32 %v1202, %v1202
      %v1395 = vmul.f32 %v1203, %v1203
      %v1396 = vmul.f32 %v1204, %v1204
      %v1397 = vmul.f32 %v1205, %v1205
      %v1398 = vmul.f32 %v1206, %v1206
      %v1399 = vmul.f32 %v1207, %v1207
      %v1400 = vmul.f32 %v1208, %v1208
      %v1401 = vmul.f32 %v1209, %v1209
      %v1402 = vmul.f32 %v1210, %v1210
      %v1403 = vmul.f32 %v1211, %v1211
      %v1404 = vmul.f32 %v1212, %v1212
      %v1405 = vmul.f32 %v1213, %v1213
      %v1406 = vmul.f32 %v1214, %v1214
      %v1407 = vmul.f32 %v1215, %v1215
      %v1408 = vmul.f32 %v1216, %v1216
      %v1409 = vmul.f32 %v1217, %v1217
      %v1410 = vmul.f32 %v1218, %v1218
      %v1411 = vmul.f32 %v1219, %v1219
      %v1412 = vmul.f32 %v1220, %v1220
      %v1413 = vmul.f32 %v1221, %v1221
      %v1414 = vmul.f32 %v1222, %v1222
      %v1415 = vmul.f32 %v1223, %v1223
      %v1416 = vmul.f32 %v1224, %v1224
      %v1417 = vmul.f32 %v1225, %v1225
      %v1418 = vmul.f32 %v1226, %v1226
      %v1419 = vmul.f32 %v1227, %v1227
      %v1420 = vmul.f32 %v1228, %v1228
      %v1421 = vmul.f32 %v1229, %v1229
      %v1422 = vmul.f32 %v1230, %v1230
      %v1423 = vmul.f32 %v1231, %v1231
      %v1424 = vmul.f32 %v1232, %v1232
      %v1425 = vmul.f32 %v1233, %v1233
      %v1426 = vmul.f32 %v1234, %v1234
      %v1427 = vmul.f32 %v1235, %v1235
      %v1428 = vmul.f32 %v1236, %v1236
      %v1429 = vmul.f32 %v1237, %v1237
      %v1430 = vmul.f32 %v1238, %v1238
      %v1431 = vmul.f32 %v1239, %v1239
      %v1432 = vmul.f32 %v1240, %v1240
      %v1433 = vmul.f32 %v1241, %v1241
      %v1434 = vmul.f32 %v1242, %v1242
      %v1435 = vmul.f32 %v1243, %v1243
      %v1436 = vmul.f32 %v1244, %v1244
      %v1437 = vmul.f32 %v1245, %v1245
      %v1438 = vmul.f32 %v1246, %v1246
      %v1439 = vmul.f32 %v1247, %v1247
      %v1440 = vmul.f32 %v1248, %v1248
      %v1441 = vmul.f32 %v1249, %v1249
      %v1442 = vmul.f32 %v1250, %v1250
      %v1443 = vmul.f32 %v1251, %v1251
      %v1444 = vmul.f32 %v1252, %v1252
      %v1445 = vmul.f32 %v1253, %v1253
      %v1446 = vmul.f32 %v1254, %v1254
      %v1447 = vmul.f32 %v1255, %v1255
      %v1448 = vmul.f32 %v1256, %v1256
      %v1449 = vmul.f32 %v1257, %v1257
      %v1450 = vmul.f32 %v1258, %v1258
      %v1451 = vmul.f32 %v1259, %v1259
      %v1452 = vmul.f32 %v1260, %v1260
      %v1453 = vmul.f32 %v1261, %v1261
      %v1454 = vmul.f32 %v1262, %v1262
      %v1455 = vmul.f32 %v1263, %v1263
      %v1456 = vmul.f32 %v1264, %v1264
      %v1457 = vmul.f32 %v1265, %v1265
      %v1458 = vmul.f32 %v1266, %v1266
      %v1459 = vmul.f32 %v1267, %v1267
      %v1460 = vmul.f32 %v1268, %v1268
      %v1461 = vmul.f32 %v1269, %v1269
      %v1462 = vmul.f32 %v1270, %v1270
      %v1463 = vmul.f32 %v1271, %v1271
      %v1464 = vmul.f32 %v1272, %v1272
      %v1465 = vmul.f32 %v1273, %v1273
      %v1466 = vmul.f32 %v1274, %v1274
      %v1467 = vmul.f32 %v1275, %v1275
      %v1468 = vmul.f32 %v1276, %v1276
      %v1469 = vmul.f32 %v1277, %v1277
      %v1470 = vmul.f32 %v1278, %v1278
      %v1471 = vmul.f32 %v1279, %v1279
      %v1472 = vmul.f32 %v1280, %v1280
      %v1473 = vmul.f32 %v1281, %v1281
      %v1474 = vmul.f32 %v1282, %v1282
      %v1475 = vmul.f32 %v1283, %v1283
      %v1476 = vmul.f32 %v1284, %v1284
      %v1477 = vmul.f32 %v1285, %v1285
      %v1478 = vmul.f32 %v1286, %v1286
      %v1479 = vmul.f32 %v1287, %v1287
      %v1480 = vmul.f32 %v1288, %v1288
      %v1481 = vmul.f32 %v1289, %v1289
      %v1482 = vmul.f32 %v1290, %v1290
      %v1483 = vmul.f32 %v1291, %v1291
      %v1484 = vmul.f32 %v1292, %v1292
      %v1485 = vmul.f32 %v1293, %v1293
      %v1486 = vmul.f32 %v1294, %v1294
      %v1487 = vmul.f32 %v1295, %v1295
      %v1488 = vmul.f32 %v1296, %v1296
      %v1489 = vmul.f32 %v1297, %v1297
      %v1490 = vmul.f32 %v1298, %v1298
      %v1491 = vmul.f32 %v1299, %v1299
      %v1492 = vmul.f32 %v1300, %v1300
      %v1493 = vmul.f32 %v1301, %v1301
      %v1494 = vmul.f32 %v1302, %v1302
      %v1495 = vmul.f32 %v1303, %v1303
      %v1496 = vmul.f32 %v1304, %v1304
      %v1497 = vmul.f32 %v1305, %v1305
      %v1498 = vmul.f32 %v1306, %v1306
      %v1499 = vmul.f32 %v1307, %v1307
      %v1500 = vmul.f32 %v1308, %v1308
      %v1501 = vmul.f32 %v1309, %v1309
      %v1502 = vmul.f32 %v1310, %v1310
      %v1503 = vmul.f32 %v1311, %v1311
      %v1504 = vmul.f32 %v1312, %v1312
      %v1505 = vmul.f32 %v1313, %v1313
      %v1506 = vmul.f32 %v1314, %v1314
      %v1507 = vmul.f32 %v1315, %v1315
      %v1508 = vmul.f32 %v1316, %v1316
      %v1509 = vmul.f32 %v1317, %v1317
      %v1510 = vmul.f32 %v1318, %v1318
      %v1511 = vmul.f32 %v1319, %v1319
      %v1512 = vmul.f32 %v1320, %v1320
      %v1513 = vmul.f32 %v1321, %v1321
      %v1514 = vmul.f32 %v1322, %v1322
      %v1515 = vmul.f32 %v1323, %v1323
      %v1516 = vmul.f32 %v1324, %v1324
      %v1517 = vmul.f32 %v1325, %v1325
      %v1518 = vmul.f32 %v1326, %v1326
      %v1519 = vmul.f32 %v1327, %v1327
      %v1520 = vmul.f32 %v1328, %v1328
      %v1521 = vmul.f32 %v1329, %v1329
      %v1522 = vmul.f32 %v1330, %v1330
      %v1523 = vmul.f32 %v1331, %v1331
      %v1524 = vmul.f32 %v1332, %v1332
      %v1525 = vmul.f32 %v1333, %v1333
      %v1526 = vmul.f32 %v1334, %v1334
      %v1527 = vmul.f32 %v1335, %v1335
      %v1528 = vmul.f32 %v1336, %v1336
      %v1529 = vmul.f32 %v1337, %v1337
      %v1530 = vmul.f32 %v1338, %v1338
      %v1531 = vmul.f32 %v1339, %v1339
      %v1532 = vmul.f32 %v1340, %v1340
      %v1533 = vmul.f32 %v1341, %v1341
      %v1534 = vmul.f32 %v1342, %v1342
      %v1535 = vmul.f32 %v1343, %v1343
      %v1536 = vmul.f32 %v1344, %v1344
      %v1537 = vmul.f32 %v1345, %v1345
      %v1538 = vmul.f32 %v1346, %v1346
      %v1539 = vmul.f32 %v1347, %v1347
      %v1540 = vmul.f32 %v1348, %v1348
      %v1541 = vmul.f32 %v1349, %v1349
      %v1542 = vmul.f32 %v1350, %v1350
      %v1543 = vmul.f32 %v1351, %v1351
      %v1544 = vmul.f32 %v1352, %v1352
      %v1545 = vmul.f32 %v1353, %v1353
      %v1546 = vmul.f32 %v1354, %v1354
      %v1547 = vmul.f32 %v1355, %v1355
      %v1548 = vmul.f32 %v1356, %v1356
      %v1549 = vmul.f32 %v1357, %v1357
      %v1550 = vmul.f32 %v1358, %v1358
      %v1551 = vmul.f32 %v1359, %v1359
      %v1552 = vmul.f32 %v1360, %v1360
      %v1553 = vmul.f32 %v1361, %v1361
      %v1554 = vmul.f32 %v1362, %v1362
      %v1555 = vmul.f32 %v1363, %v1363
      %v1556 = vmul.f32 %v1364, %v1364
      %v1557 = vmul.f32 %v1365, %v1365
      %v1558 = vmul.f32 %v1366, %v1366
      %v1559 = vmul.f32 %v1367, %v1367
      %v1560 = vmul.f32 %v1368, %v1368
      %v1561 = vmul.f32 %v1369, %v1369
      %v1562 = vmul.f32 %v1370, %v1370
      %v1563 = vsel %vm410, %v1371, 0.0
      %1564 = vadd.xlane.f32.xlu0 %v1563
      %v1565 = vpop.xlane.xlu0 %1564
      %v1566 = vsel %vm410, %v1372, 0.0
      %1567 = vadd.xlane.f32.xlu0 %v1566
      %v1568 = vpop.xlane.xlu0 %1567
      %v1569 = vsel %vm410, %v1373, 0.0
      %1570 = vadd.xlane.f32.xlu0 %v1569
      %v1571 = vpop.xlane.xlu0 %1570
      %v1572 = vsel %vm410, %v1374, 0.0
      %1573 = vadd.xlane.f32.xlu0 %v1572
      %v1574 = vpop.xlane.xlu0 %1573
      %v1575 = vsel %vm410, %v1375, 0.0
      %1576 = vadd.xlane.f32.xlu0 %v1575
      %v1577 = vpop.xlane.xlu0 %1576
      %v1578 = vsel %vm410, %v1376, 0.0
      %1579 = vadd.xlane.f32.xlu0 %v1578
      %v1580 = vpop.xlane.xlu0 %1579
      %v1581 = vsel %vm410, %v1377, 0.0
      %1582 = vadd.xlane.f32.xlu0 %v1581
      %v1583 = vpop.xlane.xlu0 %1582
      %v1584 = vsel %vm410, %v1378, 0.0
      %1585 = vadd.xlane.f32.xlu0 %v1584
      %v1586 = vpop.xlane.xlu0 %1585
      %v1587 = vsel %vm410, %v1379, 0.0
      %1588 = vadd.xlane.f32.xlu0 %v1587
      %v1589 = vpop.xlane.xlu0 %1588
      %v1590 = vsel %vm410, %v1380, 0.0
      %1591 = vadd.xlane.f32.xlu0 %v1590
      %v1592 = vpop.xlane.xlu0 %1591
      %v1593 = vsel %vm410, %v1381, 0.0
      %1594 = vadd.xlane.f32.xlu0 %v1593
      %v1595 = vpop.xlane.xlu0 %1594
      %v1596 = vsel %vm410, %v1382, 0.0
      %1597 = vadd.xlane.f32.xlu0 %v1596
      %v1598 = vpop.xlane.xlu0 %1597
      %v1599 = vsel %vm410, %v1383, 0.0
      %1600 = vadd.xlane.f32.xlu0 %v1599
      %v1601 = vpop.xlane.xlu0 %1600
      %v1602 = vsel %vm410, %v1384, 0.0
      %1603 = vadd.xlane.f32.xlu0 %v1602
      %v1604 = vpop.xlane.xlu0 %1603
      %v1605 = vsel %vm410, %v1385, 0.0
      %1606 = vadd.xlane.f32.xlu0 %v1605
      %v1607 = vpop.xlane.xlu0 %1606
      %v1608 = vsel %vm410, %v1386, 0.0
      %1609 = vadd.xlane.f32.xlu0 %v1608
      %v1610 = vpop.xlane.xlu0 %1609
      %v1611 = vsel %vm410, %v1387, 0.0
      %1612 = vadd.xlane.f32.xlu0 %v1611
      %v1613 = vpop.xlane.xlu0 %1612
      %v1614 = vsel %vm410, %v1388, 0.0
      %1615 = vadd.xlane.f32.xlu0 %v1614
      %v1616 = vpop.xlane.xlu0 %1615
      %v1617 = vsel %vm410, %v1389, 0.0
      %1618 = vadd.xlane.f32.xlu0 %v1617
      %v1619 = vpop.xlane.xlu0 %1618
      %v1620 = vsel %vm410, %v1390, 0.0
      %1621 = vadd.xlane.f32.xlu0 %v1620
      %v1622 = vpop.xlane.xlu0 %1621
      %v1623 = vsel %vm410, %v1391, 0.0
      %1624 = vadd.xlane.f32.xlu0 %v1623
      %v1625 = vpop.xlane.xlu0 %1624
      %v1626 = vsel %vm410, %v1392, 0.0
      %1627 = vadd.xlane.f32.xlu0 %v1626
      %v1628 = vpop.xlane.xlu0 %1627
      %v1629 = vsel %vm410, %v1393, 0.0
      %1630 = vadd.xlane.f32.xlu0 %v1629
      %v1631 = vpop.xlane.xlu0 %1630
      %v1632 = vsel %vm410, %v1394, 0.0
      %1633 = vadd.xlane.f32.xlu0 %v1632
      %v1634 = vpop.xlane.xlu0 %1633
      %v1635 = vsel %vm410, %v1395, 0.0
      %1636 = vadd.xlane.f32.xlu0 %v1635
      %v1637 = vpop.xlane.xlu0 %1636
      %v1638 = vsel %vm410, %v1396, 0.0
      %1639 = vadd.xlane.f32.xlu0 %v1638
      %v1640 = vpop.xlane.xlu0 %1639
      %v1641 = vsel %vm410, %v1397, 0.0
      %1642 = vadd.xlane.f32.xlu0 %v1641
      %v1643 = vpop.xlane.xlu0 %1642
      %v1644 = vsel %vm410, %v1398, 0.0
      %1645 = vadd.xlane.f32.xlu0 %v1644
      %v1646 = vpop.xlane.xlu0 %1645
      %v1647 = vsel %vm410, %v1399, 0.0
      %1648 = vadd.xlane.f32.xlu0 %v1647
      %v1649 = vpop.xlane.xlu0 %1648
      %v1650 = vsel %vm410, %v1400, 0.0
      %1651 = vadd.xlane.f32.xlu0 %v1650
      %v1652 = vpop.xlane.xlu0 %1651
      %v1653 = vsel %vm410, %v1401, 0.0
      %1654 = vadd.xlane.f32.xlu0 %v1653
      %v1655 = vpop.xlane.xlu0 %1654
      %v1656 = vsel %vm410, %v1402, 0.0
      %1657 = vadd.xlane.f32.xlu0 %v1656
      %v1658 = vpop.xlane.xlu0 %1657
      %v1659 = vsel %vm410, %v1403, 0.0
      %1660 = vadd.xlane.f32.xlu0 %v1659
      %v1661 = vpop.xlane.xlu0 %1660
      %v1662 = vsel %vm410, %v1404, 0.0
      %1663 = vadd.xlane.f32.xlu0 %v1662
      %v1664 = vpop.xlane.xlu0 %1663
      %v1665 = vsel %vm410, %v1405, 0.0
      %1666 = vadd.xlane.f32.xlu0 %v1665
      %v1667 = vpop.xlane.xlu0 %1666
      %v1668 = vsel %vm410, %v1406, 0.0
      %1669 = vadd.xlane.f32.xlu0 %v1668
      %v1670 = vpop.xlane.xlu0 %1669
      %v1671 = vsel %vm410, %v1407, 0.0
      %1672 = vadd.xlane.f32.xlu0 %v1671
      %v1673 = vpop.xlane.xlu0 %1672
      %v1674 = vsel %vm410, %v1408, 0.0
      %1675 = vadd.xlane.f32.xlu0 %v1674
      %v1676 = vpop.xlane.xlu0 %1675
      %v1677 = vsel %vm410, %v1409, 0.0
      %1678 = vadd.xlane.f32.xlu0 %v1677
      %v1679 = vpop.xlane.xlu0 %1678
      %v1680 = vsel %vm410, %v1410, 0.0
      %1681 = vadd.xlane.f32.xlu0 %v1680
      %v1682 = vpop.xlane.xlu0 %1681
      %v1683 = vsel %vm410, %v1411, 0.0
      %1684 = vadd.xlane.f32.xlu0 %v1683
      %v1685 = vpop.xlane.xlu0 %1684
      %v1686 = vsel %vm410, %v1412, 0.0
      %1687 = vadd.xlane.f32.xlu0 %v1686
      %v1688 = vpop.xlane.xlu0 %1687
      %v1689 = vsel %vm410, %v1413, 0.0
      %1690 = vadd.xlane.f32.xlu0 %v1689
      %v1691 = vpop.xlane.xlu0 %1690
      %v1692 = vsel %vm410, %v1414, 0.0
      %1693 = vadd.xlane.f32.xlu0 %v1692
      %v1694 = vpop.xlane.xlu0 %1693
      %v1695 = vsel %vm410, %v1415, 0.0
      %1696 = vadd.xlane.f32.xlu0 %v1695
      %v1697 = vpop.xlane.xlu0 %1696
      %v1698 = vsel %vm410, %v1416, 0.0
      %1699 = vadd.xlane.f32.xlu0 %v1698
      %v1700 = vpop.xlane.xlu0 %1699
      %v1701 = vsel %vm410, %v1417, 0.0
      %1702 = vadd.xlane.f32.xlu0 %v1701
      %v1703 = vpop.xlane.xlu0 %1702
      %v1704 = vsel %vm410, %v1418, 0.0
      %1705 = vadd.xlane.f32.xlu0 %v1704
      %v1706 = vpop.xlane.xlu0 %1705
      %v1707 = vsel %vm410, %v1419, 0.0
      %1708 = vadd.xlane.f32.xlu0 %v1707
      %v1709 = vpop.xlane.xlu0 %1708
      %v1710 = vsel %vm410, %v1420, 0.0
      %1711 = vadd.xlane.f32.xlu0 %v1710
      %v1712 = vpop.xlane.xlu0 %1711
      %v1713 = vsel %vm410, %v1421, 0.0
      %1714 = vadd.xlane.f32.xlu0 %v1713
      %v1715 = vpop.xlane.xlu0 %1714
      %v1716 = vsel %vm410, %v1422, 0.0
      %1717 = vadd.xlane.f32.xlu0 %v1716
      %v1718 = vpop.xlane.xlu0 %1717
      %v1719 = vsel %vm410, %v1423, 0.0
      %1720 = vadd.xlane.f32.xlu0 %v1719
      %v1721 = vpop.xlane.xlu0 %1720
      %v1722 = vsel %vm410, %v1424, 0.0
      %1723 = vadd.xlane.f32.xlu0 %v1722
      %v1724 = vpop.xlane.xlu0 %1723
      %v1725 = vsel %vm410, %v1425, 0.0
      %1726 = vadd.xlane.f32.xlu0 %v1725
      %v1727 = vpop.xlane.xlu0 %1726
      %v1728 = vsel %vm410, %v1426, 0.0
      %1729 = vadd.xlane.f32.xlu0 %v1728
      %v1730 = vpop.xlane.xlu0 %1729
      %v1731 = vsel %vm410, %v1427, 0.0
      %1732 = vadd.xlane.f32.xlu0 %v1731
      %v1733 = vpop.xlane.xlu0 %1732
      %v1734 = vsel %vm410, %v1428, 0.0
      %1735 = vadd.xlane.f32.xlu0 %v1734
      %v1736 = vpop.xlane.xlu0 %1735
      %v1737 = vsel %vm410, %v1429, 0.0
      %1738 = vadd.xlane.f32.xlu0 %v1737
      %v1739 = vpop.xlane.xlu0 %1738
      %v1740 = vsel %vm410, %v1430, 0.0
      %1741 = vadd.xlane.f32.xlu0 %v1740
      %v1742 = vpop.xlane.xlu0 %1741
      %v1743 = vsel %vm410, %v1431, 0.0
      %1744 = vadd.xlane.f32.xlu0 %v1743
      %v1745 = vpop.xlane.xlu0 %1744
      %v1746 = vsel %vm410, %v1432, 0.0
      %1747 = vadd.xlane.f32.xlu0 %v1746
      %v1748 = vpop.xlane.xlu0 %1747
      %v1749 = vsel %vm410, %v1433, 0.0
      %1750 = vadd.xlane.f32.xlu0 %v1749
      %v1751 = vpop.xlane.xlu0 %1750
      %v1752 = vsel %vm410, %v1434, 0.0
      %1753 = vadd.xlane.f32.xlu0 %v1752
      %v1754 = vpop.xlane.xlu0 %1753
      %v1755 = vsel %vm410, %v1435, 0.0
      %1756 = vadd.xlane.f32.xlu0 %v1755
      %v1757 = vpop.xlane.xlu0 %1756
      %v1758 = vsel %vm410, %v1436, 0.0
      %1759 = vadd.xlane.f32.xlu0 %v1758
      %v1760 = vpop.xlane.xlu0 %1759
      %v1761 = vsel %vm410, %v1437, 0.0
      %1762 = vadd.xlane.f32.xlu0 %v1761
      %v1763 = vpop.xlane.xlu0 %1762
      %v1764 = vsel %vm410, %v1438, 0.0
      %1765 = vadd.xlane.f32.xlu0 %v1764
      %v1766 = vpop.xlane.xlu0 %1765
      %v1767 = vsel %vm410, %v1439, 0.0
      %1768 = vadd.xlane.f32.xlu0 %v1767
      %v1769 = vpop.xlane.xlu0 %1768
      %v1770 = vsel %vm410, %v1440, 0.0
      %1771 = vadd.xlane.f32.xlu0 %v1770
      %v1772 = vpop.xlane.xlu0 %1771
      %v1773 = vsel %vm410, %v1441, 0.0
      %1774 = vadd.xlane.f32.xlu0 %v1773
      %v1775 = vpop.xlane.xlu0 %1774
      %v1776 = vsel %vm410, %v1442, 0.0
      %1777 = vadd.xlane.f32.xlu0 %v1776
      %v1778 = vpop.xlane.xlu0 %1777
      %v1779 = vsel %vm410, %v1443, 0.0
      %1780 = vadd.xlane.f32.xlu0 %v1779
      %v1781 = vpop.xlane.xlu0 %1780
      %v1782 = vsel %vm410, %v1444, 0.0
      %1783 = vadd.xlane.f32.xlu0 %v1782
      %v1784 = vpop.xlane.xlu0 %1783
      %v1785 = vsel %vm410, %v1445, 0.0
      %1786 = vadd.xlane.f32.xlu0 %v1785
      %v1787 = vpop.xlane.xlu0 %1786
      %v1788 = vsel %vm410, %v1446, 0.0
      %1789 = vadd.xlane.f32.xlu0 %v1788
      %v1790 = vpop.xlane.xlu0 %1789
      %v1791 = vsel %vm410, %v1447, 0.0
      %1792 = vadd.xlane.f32.xlu0 %v1791
      %v1793 = vpop.xlane.xlu0 %1792
      %v1794 = vsel %vm410, %v1448, 0.0
      %1795 = vadd.xlane.f32.xlu0 %v1794
      %v1796 = vpop.xlane.xlu0 %1795
      %v1797 = vsel %vm410, %v1449, 0.0
      %1798 = vadd.xlane.f32.xlu0 %v1797
      %v1799 = vpop.xlane.xlu0 %1798
      %v1800 = vsel %vm410, %v1450, 0.0
      %1801 = vadd.xlane.f32.xlu0 %v1800
      %v1802 = vpop.xlane.xlu0 %1801
      %v1803 = vsel %vm410, %v1451, 0.0
      %1804 = vadd.xlane.f32.xlu0 %v1803
      %v1805 = vpop.xlane.xlu0 %1804
      %v1806 = vsel %vm410, %v1452, 0.0
      %1807 = vadd.xlane.f32.xlu0 %v1806
      %v1808 = vpop.xlane.xlu0 %1807
      %v1809 = vsel %vm410, %v1453, 0.0
      %1810 = vadd.xlane.f32.xlu0 %v1809
      %v1811 = vpop.xlane.xlu0 %1810
      %v1812 = vsel %vm410, %v1454, 0.0
      %1813 = vadd.xlane.f32.xlu0 %v1812
      %v1814 = vpop.xlane.xlu0 %1813
      %v1815 = vsel %vm410, %v1455, 0.0
      %1816 = vadd.xlane.f32.xlu0 %v1815
      %v1817 = vpop.xlane.xlu0 %1816
      %v1818 = vsel %vm410, %v1456, 0.0
      %1819 = vadd.xlane.f32.xlu0 %v1818
      %v1820 = vpop.xlane.xlu0 %1819
      %v1821 = vsel %vm410, %v1457, 0.0
      %1822 = vadd.xlane.f32.xlu0 %v1821
      %v1823 = vpop.xlane.xlu0 %1822
      %v1824 = vsel %vm410, %v1458, 0.0
      %1825 = vadd.xlane.f32.xlu0 %v1824
      %v1826 = vpop.xlane.xlu0 %1825
      %v1827 = vsel %vm410, %v1459, 0.0
      %1828 = vadd.xlane.f32.xlu0 %v1827
      %v1829 = vpop.xlane.xlu0 %1828
      %v1830 = vsel %vm410, %v1460, 0.0
      %1831 = vadd.xlane.f32.xlu0 %v1830
      %v1832 = vpop.xlane.xlu0 %1831
      %v1833 = vsel %vm410, %v1461, 0.0
      %1834 = vadd.xlane.f32.xlu0 %v1833
      %v1835 = vpop.xlane.xlu0 %1834
      %v1836 = vsel %vm410, %v1462, 0.0
      %1837 = vadd.xlane.f32.xlu0 %v1836
      %v1838 = vpop.xlane.xlu0 %1837
      %v1839 = vsel %vm410, %v1463, 0.0
      %1840 = vadd.xlane.f32.xlu0 %v1839
      %v1841 = vpop.xlane.xlu0 %1840
      %v1842 = vsel %vm410, %v1464, 0.0
      %1843 = vadd.xlane.f32.xlu0 %v1842
      %v1844 = vpop.xlane.xlu0 %1843
      %v1845 = vsel %vm410, %v1465, 0.0
      %1846 = vadd.xlane.f32.xlu0 %v1845
      %v1847 = vpop.xlane.xlu0 %1846
      %v1848 = vsel %vm410, %v1466, 0.0
      %1849 = vadd.xlane.f32.xlu0 %v1848
      %v1850 = vpop.xlane.xlu0 %1849
      %v1851 = vsel %vm410, %v1467, 0.0
      %1852 = vadd.xlane.f32.xlu0 %v1851
      %v1853 = vpop.xlane.xlu0 %1852
      %v1854 = vsel %vm410, %v1468, 0.0
      %1855 = vadd.xlane.f32.xlu0 %v1854
      %v1856 = vpop.xlane.xlu0 %1855
      %v1857 = vsel %vm410, %v1469, 0.0
      %1858 = vadd.xlane.f32.xlu0 %v1857
      %v1859 = vpop.xlane.xlu0 %1858
      %v1860 = vsel %vm410, %v1470, 0.0
      %1861 = vadd.xlane.f32.xlu0 %v1860
      %v1862 = vpop.xlane.xlu0 %1861
      %v1863 = vsel %vm410, %v1471, 0.0
      %1864 = vadd.xlane.f32.xlu0 %v1863
      %v1865 = vpop.xlane.xlu0 %1864
      %v1866 = vsel %vm410, %v1472, 0.0
      %1867 = vadd.xlane.f32.xlu0 %v1866
      %v1868 = vpop.xlane.xlu0 %1867
      %v1869 = vsel %vm410, %v1473, 0.0
      %1870 = vadd.xlane.f32.xlu0 %v1869
      %v1871 = vpop.xlane.xlu0 %1870
      %v1872 = vsel %vm410, %v1474, 0.0
      %1873 = vadd.xlane.f32.xlu0 %v1872
      %v1874 = vpop.xlane.xlu0 %1873
      %v1875 = vsel %vm410, %v1475, 0.0
      %1876 = vadd.xlane.f32.xlu0 %v1875
      %v1877 = vpop.xlane.xlu0 %1876
      %v1878 = vsel %vm410, %v1476, 0.0
      %1879 = vadd.xlane.f32.xlu0 %v1878
      %v1880 = vpop.xlane.xlu0 %1879
      %v1881 = vsel %vm410, %v1477, 0.0
      %1882 = vadd.xlane.f32.xlu0 %v1881
      %v1883 = vpop.xlane.xlu0 %1882
      %v1884 = vsel %vm410, %v1478, 0.0
      %1885 = vadd.xlane.f32.xlu0 %v1884
      %v1886 = vpop.xlane.xlu0 %1885
      %v1887 = vsel %vm410, %v1479, 0.0
      %1888 = vadd.xlane.f32.xlu0 %v1887
      %v1889 = vpop.xlane.xlu0 %1888
      %v1890 = vsel %vm410, %v1480, 0.0
      %1891 = vadd.xlane.f32.xlu0 %v1890
      %v1892 = vpop.xlane.xlu0 %1891
      %v1893 = vsel %vm410, %v1481, 0.0
      %1894 = vadd.xlane.f32.xlu0 %v1893
      %v1895 = vpop.xlane.xlu0 %1894
      %v1896 = vsel %vm410, %v1482, 0.0
      %1897 = vadd.xlane.f32.xlu0 %v1896
      %v1898 = vpop.xlane.xlu0 %1897
      %v1899 = vsel %vm410, %v1483, 0.0
      %1900 = vadd.xlane.f32.xlu0 %v1899
      %v1901 = vpop.xlane.xlu0 %1900
      %v1902 = vsel %vm410, %v1484, 0.0
      %1903 = vadd.xlane.f32.xlu0 %v1902
      %v1904 = vpop.xlane.xlu0 %1903
      %v1905 = vsel %vm410, %v1485, 0.0
      %1906 = vadd.xlane.f32.xlu0 %v1905
      %v1907 = vpop.xlane.xlu0 %1906
      %v1908 = vsel %vm410, %v1486, 0.0
      %1909 = vadd.xlane.f32.xlu0 %v1908
      %v1910 = vpop.xlane.xlu0 %1909
      %v1911 = vsel %vm410, %v1487, 0.0
      %1912 = vadd.xlane.f32.xlu0 %v1911
      %v1913 = vpop.xlane.xlu0 %1912
      %v1914 = vsel %vm410, %v1488, 0.0
      %1915 = vadd.xlane.f32.xlu0 %v1914
      %v1916 = vpop.xlane.xlu0 %1915
      %v1917 = vsel %vm410, %v1489, 0.0
      %1918 = vadd.xlane.f32.xlu0 %v1917
      %v1919 = vpop.xlane.xlu0 %1918
      %v1920 = vsel %vm410, %v1490, 0.0
      %1921 = vadd.xlane.f32.xlu0 %v1920
      %v1922 = vpop.xlane.xlu0 %1921
      %v1923 = vsel %vm410, %v1491, 0.0
      %1924 = vadd.xlane.f32.xlu0 %v1923
      %v1925 = vpop.xlane.xlu0 %1924
      %v1926 = vsel %vm410, %v1492, 0.0
      %1927 = vadd.xlane.f32.xlu0 %v1926
      %v1928 = vpop.xlane.xlu0 %1927
      %v1929 = vsel %vm410, %v1493, 0.0
      %1930 = vadd.xlane.f32.xlu0 %v1929
      %v1931 = vpop.xlane.xlu0 %1930
      %v1932 = vsel %vm410, %v1494, 0.0
      %1933 = vadd.xlane.f32.xlu0 %v1932
      %v1934 = vpop.xlane.xlu0 %1933
      %v1935 = vsel %vm410, %v1495, 0.0
      %1936 = vadd.xlane.f32.xlu0 %v1935
      %v1937 = vpop.xlane.xlu0 %1936
      %v1938 = vsel %vm410, %v1496, 0.0
      %1939 = vadd.xlane.f32.xlu0 %v1938
      %v1940 = vpop.xlane.xlu0 %1939
      %v1941 = vsel %vm410, %v1497, 0.0
      %1942 = vadd.xlane.f32.xlu0 %v1941
      %v1943 = vpop.xlane.xlu0 %1942
      %v1944 = vsel %vm410, %v1498, 0.0
      %1945 = vadd.xlane.f32.xlu0 %v1944
      %v1946 = vpop.xlane.xlu0 %1945
      %v1947 = vsel %vm410, %v1499, 0.0
      %1948 = vadd.xlane.f32.xlu0 %v1947
      %v1949 = vpop.xlane.xlu0 %1948
      %v1950 = vsel %vm410, %v1500, 0.0
      %1951 = vadd.xlane.f32.xlu0 %v1950
      %v1952 = vpop.xlane.xlu0 %1951
      %v1953 = vsel %vm410, %v1501, 0.0
      %1954 = vadd.xlane.f32.xlu0 %v1953
      %v1955 = vpop.xlane.xlu0 %1954
      %v1956 = vsel %vm410, %v1502, 0.0
      %1957 = vadd.xlane.f32.xlu0 %v1956
      %v1958 = vpop.xlane.xlu0 %1957
      %v1959 = vsel %vm410, %v1503, 0.0
      %1960 = vadd.xlane.f32.xlu0 %v1959
      %v1961 = vpop.xlane.xlu0 %1960
      %v1962 = vsel %vm410, %v1504, 0.0
      %1963 = vadd.xlane.f32.xlu0 %v1962
      %v1964 = vpop.xlane.xlu0 %1963
      %v1965 = vsel %vm410, %v1505, 0.0
      %1966 = vadd.xlane.f32.xlu0 %v1965
      %v1967 = vpop.xlane.xlu0 %1966
      %v1968 = vsel %vm410, %v1506, 0.0
      %1969 = vadd.xlane.f32.xlu0 %v1968
      %v1970 = vpop.xlane.xlu0 %1969
      %v1971 = vsel %vm410, %v1507, 0.0
      %1972 = vadd.xlane.f32.xlu0 %v1971
      %v1973 = vpop.xlane.xlu0 %1972
      %v1974 = vsel %vm410, %v1508, 0.0
      %1975 = vadd.xlane.f32.xlu0 %v1974
      %v1976 = vpop.xlane.xlu0 %1975
      %v1977 = vsel %vm410, %v1509, 0.0
      %1978 = vadd.xlane.f32.xlu0 %v1977
      %v1979 = vpop.xlane.xlu0 %1978
      %v1980 = vsel %vm410, %v1510, 0.0
      %1981 = vadd.xlane.f32.xlu0 %v1980
      %v1982 = vpop.xlane.xlu0 %1981
      %v1983 = vsel %vm410, %v1511, 0.0
      %1984 = vadd.xlane.f32.xlu0 %v1983
      %v1985 = vpop.xlane.xlu0 %1984
      %v1986 = vsel %vm410, %v1512, 0.0
      %1987 = vadd.xlane.f32.xlu0 %v1986
      %v1988 = vpop.xlane.xlu0 %1987
      %v1989 = vsel %vm410, %v1513, 0.0
      %1990 = vadd.xlane.f32.xlu0 %v1989
      %v1991 = vpop.xlane.xlu0 %1990
      %v1992 = vsel %vm410, %v1514, 0.0
      %1993 = vadd.xlane.f32.xlu0 %v1992
      %v1994 = vpop.xlane.xlu0 %1993
      %v1995 = vsel %vm410, %v1515, 0.0
      %1996 = vadd.xlane.f32.xlu0 %v1995
      %v1997 = vpop.xlane.xlu0 %1996
      %v1998 = vsel %vm410, %v1516, 0.0
      %1999 = vadd.xlane.f32.xlu0 %v1998
      %v2000 = vpop.xlane.xlu0 %1999
      %v2001 = vsel %vm410, %v1517, 0.0
      %2002 = vadd.xlane.f32.xlu0 %v2001
      %v2003 = vpop.xlane.xlu0 %2002
      %v2004 = vsel %vm410, %v1518, 0.0
      %2005 = vadd.xlane.f32.xlu0 %v2004
      %v2006 = vpop.xlane.xlu0 %2005
      %v2007 = vsel %vm410, %v1519, 0.0
      %2008 = vadd.xlane.f32.xlu0 %v2007
      %v2009 = vpop.xlane.xlu0 %2008
      %v2010 = vsel %vm410, %v1520, 0.0
      %2011 = vadd.xlane.f32.xlu0 %v2010
      %v2012 = vpop.xlane.xlu0 %2011
      %v2013 = vsel %vm410, %v1521, 0.0
      %2014 = vadd.xlane.f32.xlu0 %v2013
      %v2015 = vpop.xlane.xlu0 %2014
      %v2016 = vsel %vm410, %v1522, 0.0
      %2017 = vadd.xlane.f32.xlu0 %v2016
      %v2018 = vpop.xlane.xlu0 %2017
      %v2019 = vsel %vm410, %v1523, 0.0
      %2020 = vadd.xlane.f32.xlu0 %v2019
      %v2021 = vpop.xlane.xlu0 %2020
      %v2022 = vsel %vm410, %v1524, 0.0
      %2023 = vadd.xlane.f32.xlu0 %v2022
      %v2024 = vpop.xlane.xlu0 %2023
      %v2025 = vsel %vm410, %v1525, 0.0
      %2026 = vadd.xlane.f32.xlu0 %v2025
      %v2027 = vpop.xlane.xlu0 %2026
      %v2028 = vsel %vm410, %v1526, 0.0
      %2029 = vadd.xlane.f32.xlu0 %v2028
      %v2030 = vpop.xlane.xlu0 %2029
      %v2031 = vsel %vm410, %v1527, 0.0
      %2032 = vadd.xlane.f32.xlu0 %v2031
      %v2033 = vpop.xlane.xlu0 %2032
      %v2034 = vsel %vm410, %v1528, 0.0
      %2035 = vadd.xlane.f32.xlu0 %v2034
      %v2036 = vpop.xlane.xlu0 %2035
      %v2037 = vsel %vm410, %v1529, 0.0
      %2038 = vadd.xlane.f32.xlu0 %v2037
      %v2039 = vpop.xlane.xlu0 %2038
      %v2040 = vsel %vm410, %v1530, 0.0
      %2041 = vadd.xlane.f32.xlu0 %v2040
      %v2042 = vpop.xlane.xlu0 %2041
      %v2043 = vsel %vm410, %v1531, 0.0
      %2044 = vadd.xlane.f32.xlu0 %v2043
      %v2045 = vpop.xlane.xlu0 %2044
      %v2046 = vsel %vm410, %v1532, 0.0
      %2047 = vadd.xlane.f32.xlu0 %v2046
      %v2048 = vpop.xlane.xlu0 %2047
      %v2049 = vsel %vm410, %v1533, 0.0
      %2050 = vadd.xlane.f32.xlu0 %v2049
      %v2051 = vpop.xlane.xlu0 %2050
      %v2052 = vsel %vm410, %v1534, 0.0
      %2053 = vadd.xlane.f32.xlu0 %v2052
      %v2054 = vpop.xlane.xlu0 %2053
      %v2055 = vsel %vm410, %v1535, 0.0
      %2056 = vadd.xlane.f32.xlu0 %v2055
      %v2057 = vpop.xlane.xlu0 %2056
      %v2058 = vsel %vm410, %v1536, 0.0
      %2059 = vadd.xlane.f32.xlu0 %v2058
      %v2060 = vpop.xlane.xlu0 %2059
      %v2061 = vsel %vm410, %v1537, 0.0
      %2062 = vadd.xlane.f32.xlu0 %v2061
      %v2063 = vpop.xlane.xlu0 %2062
      %v2064 = vsel %vm410, %v1538, 0.0
      %2065 = vadd.xlane.f32.xlu0 %v2064
      %v2066 = vpop.xlane.xlu0 %2065
      %v2067 = vsel %vm410, %v1539, 0.0
      %2068 = vadd.xlane.f32.xlu0 %v2067
      %v2069 = vpop.xlane.xlu0 %2068
      %v2070 = vsel %vm410, %v1540, 0.0
      %2071 = vadd.xlane.f32.xlu0 %v2070
      %v2072 = vpop.xlane.xlu0 %2071
      %v2073 = vsel %vm410, %v1541, 0.0
      %2074 = vadd.xlane.f32.xlu0 %v2073
      %v2075 = vpop.xlane.xlu0 %2074
      %v2076 = vsel %vm410, %v1542, 0.0
      %2077 = vadd.xlane.f32.xlu0 %v2076
      %v2078 = vpop.xlane.xlu0 %2077
      %v2079 = vsel %vm410, %v1543, 0.0
      %2080 = vadd.xlane.f32.xlu0 %v2079
      %v2081 = vpop.xlane.xlu0 %2080
      %v2082 = vsel %vm410, %v1544, 0.0
      %2083 = vadd.xlane.f32.xlu0 %v2082
      %v2084 = vpop.xlane.xlu0 %2083
      %v2085 = vsel %vm410, %v1545, 0.0
      %2086 = vadd.xlane.f32.xlu0 %v2085
      %v2087 = vpop.xlane.xlu0 %2086
      %v2088 = vsel %vm410, %v1546, 0.0
      %2089 = vadd.xlane.f32.xlu0 %v2088
      %v2090 = vpop.xlane.xlu0 %2089
      %v2091 = vsel %vm410, %v1547, 0.0
      %2092 = vadd.xlane.f32.xlu0 %v2091
      %v2093 = vpop.xlane.xlu0 %2092
      %v2094 = vsel %vm410, %v1548, 0.0
      %2095 = vadd.xlane.f32.xlu0 %v2094
      %v2096 = vpop.xlane.xlu0 %2095
      %v2097 = vsel %vm410, %v1549, 0.0
      %2098 = vadd.xlane.f32.xlu0 %v2097
      %v2099 = vpop.xlane.xlu0 %2098
      %v2100 = vsel %vm410, %v1550, 0.0
      %2101 = vadd.xlane.f32.xlu0 %v2100
      %v2102 = vpop.xlane.xlu0 %2101
      %v2103 = vsel %vm410, %v1551, 0.0
      %2104 = vadd.xlane.f32.xlu0 %v2103
      %v2105 = vpop.xlane.xlu0 %2104
      %v2106 = vsel %vm410, %v1552, 0.0
      %2107 = vadd.xlane.f32.xlu0 %v2106
      %v2108 = vpop.xlane.xlu0 %2107
      %v2109 = vsel %vm410, %v1553, 0.0
      %2110 = vadd.xlane.f32.xlu0 %v2109
      %v2111 = vpop.xlane.xlu0 %2110
      %v2112 = vsel %vm410, %v1554, 0.0
      %2113 = vadd.xlane.f32.xlu0 %v2112
      %v2114 = vpop.xlane.xlu0 %2113
      %v2115 = vsel %vm410, %v1555, 0.0
      %2116 = vadd.xlane.f32.xlu0 %v2115
      %v2117 = vpop.xlane.xlu0 %2116
      %v2118 = vsel %vm410, %v1556, 0.0
      %2119 = vadd.xlane.f32.xlu0 %v2118
      %v2120 = vpop.xlane.xlu0 %2119
      %v2121 = vsel %vm410, %v1557, 0.0
      %2122 = vadd.xlane.f32.xlu0 %v2121
      %v2123 = vpop.xlane.xlu0 %2122
      %v2124 = vsel %vm410, %v1558, 0.0
      %2125 = vadd.xlane.f32.xlu0 %v2124
      %v2126 = vpop.xlane.xlu0 %2125
      %v2127 = vsel %vm410, %v1559, 0.0
      %2128 = vadd.xlane.f32.xlu0 %v2127
      %v2129 = vpop.xlane.xlu0 %2128
      %v2130 = vsel %vm410, %v1560, 0.0
      %2131 = vadd.xlane.f32.xlu0 %v2130
      %v2132 = vpop.xlane.xlu0 %2131
      %v2133 = vsel %vm410, %v1561, 0.0
      %2134 = vadd.xlane.f32.xlu0 %v2133
      %v2135 = vpop.xlane.xlu0 %2134
      %v2136 = vsel %vm410, %v1562, 0.0
      %2137 = vadd.xlane.f32.xlu0 %v2136
      %v2138 = vpop.xlane.xlu0 %2137
      %v2139 = vmul.f32 %v1565, 0.020408163
      %v2140 = vmul.f32 %v1568, 0.020408163
      %v2141 = vmul.f32 %v1571, 0.020408163
      %v2142 = vmul.f32 %v1574, 0.020408163
      %v2143 = vmul.f32 %v1577, 0.020408163
      %v2144 = vmul.f32 %v1580, 0.020408163
      %v2145 = vmul.f32 %v1583, 0.020408163
      %v2146 = vmul.f32 %v1586, 0.020408163
      %v2147 = vmul.f32 %v1589, 0.020408163
      %v2148 = vmul.f32 %v1592, 0.020408163
      %v2149 = vmul.f32 %v1595, 0.020408163
      %v2150 = vmul.f32 %v1598, 0.020408163
      %v2151 = vmul.f32 %v1601, 0.020408163
      %v2152 = vmul.f32 %v1604, 0.020408163
      %v2153 = vmul.f32 %v1607, 0.020408163
      %v2154 = vmul.f32 %v1610, 0.020408163
      %v2155 = vmul.f32 %v1613, 0.020408163
      %v2156 = vmul.f32 %v1616, 0.020408163
      %v2157 = vmul.f32 %v1619, 0.020408163
      %v2158 = vmul.f32 %v1622, 0.020408163
      %v2159 = vmul.f32 %v1625, 0.020408163
      %v2160 = vmul.f32 %v1628, 0.020408163
      %v2161 = vmul.f32 %v1631, 0.020408163
      %v2162 = vmul.f32 %v1634, 0.020408163
      %v2163 = vmul.f32 %v1637, 0.020408163
      %v2164 = vmul.f32 %v1640, 0.020408163
      %v2165 = vmul.f32 %v1643, 0.020408163
      %v2166 = vmul.f32 %v1646, 0.020408163
      %v2167 = vmul.f32 %v1649, 0.020408163
      %v2168 = vmul.f32 %v1652, 0.020408163
      %v2169 = vmul.f32 %v1655, 0.020408163
      %v2170 = vmul.f32 %v1658, 0.020408163
      %v2171 = vmul.f32 %v1661, 0.020408163
      %v2172 = vmul.f32 %v1664, 0.020408163
      %v2173 = vmul.f32 %v1667, 0.020408163
      %v2174 = vmul.f32 %v1670, 0.020408163
      %v2175 = vmul.f32 %v1673, 0.020408163
      %v2176 = vmul.f32 %v1676, 0.020408163
      %v2177 = vmul.f32 %v1679, 0.020408163
      %v2178 = vmul.f32 %v1682, 0.020408163
      %v2179 = vmul.f32 %v1685, 0.020408163
      %v2180 = vmul.f32 %v1688, 0.020408163
      %v2181 = vmul.f32 %v1691, 0.020408163
      %v2182 = vmul.f32 %v1694, 0.020408163
      %v2183 = vmul.f32 %v1697, 0.020408163
      %v2184 = vmul.f32 %v1700, 0.020408163
      %v2185 = vmul.f32 %v1703, 0.020408163
      %v2186 = vmul.f32 %v1706, 0.020408163
      %v2187 = vmul.f32 %v1709, 0.020408163
      %v2188 = vmul.f32 %v1712, 0.020408163
      %v2189 = vmul.f32 %v1715, 0.020408163
      %v2190 = vmul.f32 %v1718, 0.020408163
      %v2191 = vmul.f32 %v1721, 0.020408163
      %v2192 = vmul.f32 %v1724, 0.020408163
      %v2193 = vmul.f32 %v1727, 0.020408163
      %v2194 = vmul.f32 %v1730, 0.020408163
      %v2195 = vmul.f32 %v1733, 0.020408163
      %v2196 = vmul.f32 %v1736, 0.020408163
      %v2197 = vmul.f32 %v1739, 0.020408163
      %v2198 = vmul.f32 %v1742, 0.020408163
      %v2199 = vmul.f32 %v1745, 0.020408163
      %v2200 = vmul.f32 %v1748, 0.020408163
      %v2201 = vmul.f32 %v1751, 0.020408163
      %v2202 = vmul.f32 %v1754, 0.020408163
      %v2203 = vmul.f32 %v1757, 0.020408163
      %v2204 = vmul.f32 %v1760, 0.020408163
      %v2205 = vmul.f32 %v1763, 0.020408163
      %v2206 = vmul.f32 %v1766, 0.020408163
      %v2207 = vmul.f32 %v1769, 0.020408163
      %v2208 = vmul.f32 %v1772, 0.020408163
      %v2209 = vmul.f32 %v1775, 0.020408163
      %v2210 = vmul.f32 %v1778, 0.020408163
      %v2211 = vmul.f32 %v1781, 0.020408163
      %v2212 = vmul.f32 %v1784, 0.020408163
      %v2213 = vmul.f32 %v1787, 0.020408163
      %v2214 = vmul.f32 %v1790, 0.020408163
      %v2215 = vmul.f32 %v1793, 0.020408163
      %v2216 = vmul.f32 %v1796, 0.020408163
      %v2217 = vmul.f32 %v1799, 0.020408163
      %v2218 = vmul.f32 %v1802, 0.020408163
      %v2219 = vmul.f32 %v1805, 0.020408163
      %v2220 = vmul.f32 %v1808, 0.020408163
      %v2221 = vmul.f32 %v1811, 0.020408163
      %v2222 = vmul.f32 %v1814, 0.020408163
      %v2223 = vmul.f32 %v1817, 0.020408163
      %v2224 = vmul.f32 %v1820, 0.020408163
      %v2225 = vmul.f32 %v1823, 0.020408163
      %v2226 = vmul.f32 %v1826, 0.020408163
      %v2227 = vmul.f32 %v1829, 0.020408163
      %v2228 = vmul.f32 %v1832, 0.020408163
      %v2229 = vmul.f32 %v1835, 0.020408163
      %v2230 = vmul.f32 %v1838, 0.020408163
      %v2231 = vmul.f32 %v1841, 0.020408163
      %v2232 = vmul.f32 %v1844, 0.020408163
      %v2233 = vmul.f32 %v1847, 0.020408163
      %v2234 = vmul.f32 %v1850, 0.020408163
      %v2235 = vmul.f32 %v1853, 0.020408163
      %v2236 = vmul.f32 %v1856, 0.020408163
      %v2237 = vmul.f32 %v1859, 0.020408163
      %v2238 = vmul.f32 %v1862, 0.020408163
      %v2239 = vmul.f32 %v1865, 0.020408163
      %v2240 = vmul.f32 %v1868, 0.020408163
      %v2241 = vmul.f32 %v1871, 0.020408163
      %v2242 = vmul.f32 %v1874, 0.020408163
      %v2243 = vmul.f32 %v1877, 0.020408163
      %v2244 = vmul.f32 %v1880, 0.020408163
      %v2245 = vmul.f32 %v1883, 0.020408163
      %v2246 = vmul.f32 %v1886, 0.020408163
      %v2247 = vmul.f32 %v1889, 0.020408163
      %v2248 = vmul.f32 %v1892, 0.020408163
      %v2249 = vmul.f32 %v1895, 0.020408163
      %v2250 = vmul.f32 %v1898, 0.020408163
      %v2251 = vmul.f32 %v1901, 0.020408163
      %v2252 = vmul.f32 %v1904, 0.020408163
      %v2253 = vmul.f32 %v1907, 0.020408163
      %v2254 = vmul.f32 %v1910, 0.020408163
      %v2255 = vmul.f32 %v1913, 0.020408163
      %v2256 = vmul.f32 %v1916, 0.020408163
      %v2257 = vmul.f32 %v1919, 0.020408163
      %v2258 = vmul.f32 %v1922, 0.020408163
      %v2259 = vmul.f32 %v1925, 0.020408163
      %v2260 = vmul.f32 %v1928, 0.020408163
      %v2261 = vmul.f32 %v1931, 0.020408163
      %v2262 = vmul.f32 %v1934, 0.020408163
      %v2263 = vmul.f32 %v1937, 0.020408163
      %v2264 = vmul.f32 %v1940, 0.020408163
      %v2265 = vmul.f32 %v1943, 0.020408163
      %v2266 = vmul.f32 %v1946, 0.020408163
      %v2267 = vmul.f32 %v1949, 0.020408163
      %v2268 = vmul.f32 %v1952, 0.020408163
      %v2269 = vmul.f32 %v1955, 0.020408163
      %v2270 = vmul.f32 %v1958, 0.020408163
      %v2271 = vmul.f32 %v1961, 0.020408163
      %v2272 = vmul.f32 %v1964, 0.020408163
      %v2273 = vmul.f32 %v1967, 0.020408163
      %v2274 = vmul.f32 %v1970, 0.020408163
      %v2275 = vmul.f32 %v1973, 0.020408163
      %v2276 = vmul.f32 %v1976, 0.020408163
      %v2277 = vmul.f32 %v1979, 0.020408163
      %v2278 = vmul.f32 %v1982, 0.020408163
      %v2279 = vmul.f32 %v1985, 0.020408163
      %v2280 = vmul.f32 %v1988, 0.020408163
      %v2281 = vmul.f32 %v1991, 0.020408163
      %v2282 = vmul.f32 %v1994, 0.020408163
      %v2283 = vmul.f32 %v1997, 0.020408163
      %v2284 = vmul.f32 %v2000, 0.020408163
      %v2285 = vmul.f32 %v2003, 0.020408163
      %v2286 = vmul.f32 %v2006, 0.020408163
      %v2287 = vmul.f32 %v2009, 0.020408163
      %v2288 = vmul.f32 %v2012, 0.020408163
      %v2289 = vmul.f32 %v2015, 0.020408163
      %v2290 = vmul.f32 %v2018, 0.020408163
      %v2291 = vmul.f32 %v2021, 0.020408163
      %v2292 = vmul.f32 %v2024, 0.020408163
      %v2293 = vmul.f32 %v2027, 0.020408163
      %v2294 = vmul.f32 %v2030, 0.020408163
      %v2295 = vmul.f32 %v2033, 0.020408163
      %v2296 = vmul.f32 %v2036, 0.020408163
      %v2297 = vmul.f32 %v2039, 0.020408163
      %v2298 = vmul.f32 %v2042, 0.020408163
      %v2299 = vmul.f32 %v2045, 0.020408163
      %v2300 = vmul.f32 %v2048, 0.020408163
      %v2301 = vmul.f32 %v2051, 0.020408163
      %v2302 = vmul.f32 %v2054, 0.020408163
      %v2303 = vmul.f32 %v2057, 0.020408163
      %v2304 = vmul.f32 %v2060, 0.020408163
      %v2305 = vmul.f32 %v2063, 0.020408163
      %v2306 = vmul.f32 %v2066, 0.020408163
      %v2307 = vmul.f32 %v2069, 0.020408163
      %v2308 = vmul.f32 %v2072, 0.020408163
      %v2309 = vmul.f32 %v2075, 0.020408163
      %v2310 = vmul.f32 %v2078, 0.020408163
      %v2311 = vmul.f32 %v2081, 0.020408163
      %v2312 = vmul.f32 %v2084, 0.020408163
      %v2313 = vmul.f32 %v2087, 0.020408163
      %v2314 = vmul.f32 %v2090, 0.020408163
      %v2315 = vmul.f32 %v2093, 0.020408163
      %v2316 = vmul.f32 %v2096, 0.020408163
      %v2317 = vmul.f32 %v2099, 0.020408163
      %v2318 = vmul.f32 %v2102, 0.020408163
      %v2319 = vmul.f32 %v2105, 0.020408163
      %v2320 = vmul.f32 %v2108, 0.020408163
      %v2321 = vmul.f32 %v2111, 0.020408163
      %v2322 = vmul.f32 %v2114, 0.020408163
      %v2323 = vmul.f32 %v2117, 0.020408163
      %v2324 = vmul.f32 %v2120, 0.020408163
      %v2325 = vmul.f32 %v2123, 0.020408163
      %v2326 = vmul.f32 %v2126, 0.020408163
      %v2327 = vmul.f32 %v2129, 0.020408163
      %v2328 = vmul.f32 %v2132, 0.020408163
      %v2329 = vmul.f32 %v2135, 0.020408163
      %v2330 = vmul.f32 %v2138, 0.020408163
      %v2331 = vadd.f32 %v2139, 0.001
      %v2332 = vadd.f32 %v2140, 0.001
      %v2333 = vadd.f32 %v2141, 0.001
      %v2334 = vadd.f32 %v2142, 0.001
      %v2335 = vadd.f32 %v2143, 0.001
      %v2336 = vadd.f32 %v2144, 0.001
      %v2337 = vadd.f32 %v2145, 0.001
      %v2338 = vadd.f32 %v2146, 0.001
      %v2339 = vadd.f32 %v2147, 0.001
      %v2340 = vadd.f32 %v2148, 0.001
      %v2341 = vadd.f32 %v2149, 0.001
      %v2342 = vadd.f32 %v2150, 0.001
      %v2343 = vadd.f32 %v2151, 0.001
      %v2344 = vadd.f32 %v2152, 0.001
      %v2345 = vadd.f32 %v2153, 0.001
      %v2346 = vadd.f32 %v2154, 0.001
      %v2347 = vadd.f32 %v2155, 0.001
      %v2348 = vadd.f32 %v2156, 0.001
      %v2349 = vadd.f32 %v2157, 0.001
      %v2350 = vadd.f32 %v2158, 0.001
      %v2351 = vadd.f32 %v2159, 0.001
      %v2352 = vadd.f32 %v2160, 0.001
      %v2353 = vadd.f32 %v2161, 0.001
      %v2354 = vadd.f32 %v2162, 0.001
      %v2355 = vadd.f32 %v2163, 0.001
      %v2356 = vadd.f32 %v2164, 0.001
      %v2357 = vadd.f32 %v2165, 0.001
      %v2358 = vadd.f32 %v2166, 0.001
      %v2359 = vadd.f32 %v2167, 0.001
      %v2360 = vadd.f32 %v2168, 0.001
      %v2361 = vadd.f32 %v2169, 0.001
      %v2362 = vadd.f32 %v2170, 0.001
      %v2363 = vadd.f32 %v2171, 0.001
      %v2364 = vadd.f32 %v2172, 0.001
      %v2365 = vadd.f32 %v2173, 0.001
      %v2366 = vadd.f32 %v2174, 0.001
      %v2367 = vadd.f32 %v2175, 0.001
      %v2368 = vadd.f32 %v2176, 0.001
      %v2369 = vadd.f32 %v2177, 0.001
      %v2370 = vadd.f32 %v2178, 0.001
      %v2371 = vadd.f32 %v2179, 0.001
      %v2372 = vadd.f32 %v2180, 0.001
      %v2373 = vadd.f32 %v2181, 0.001
      %v2374 = vadd.f32 %v2182, 0.001
      %v2375 = vadd.f32 %v2183, 0.001
      %v2376 = vadd.f32 %v2184, 0.001
      %v2377 = vadd.f32 %v2185, 0.001
      %v2378 = vadd.f32 %v2186, 0.001
      %v2379 = vadd.f32 %v2187, 0.001
      %v2380 = vadd.f32 %v2188, 0.001
      %v2381 = vadd.f32 %v2189, 0.001
      %v2382 = vadd.f32 %v2190, 0.001
      %v2383 = vadd.f32 %v2191, 0.001
      %v2384 = vadd.f32 %v2192, 0.001
      %v2385 = vadd.f32 %v2193, 0.001
      %v2386 = vadd.f32 %v2194, 0.001
      %v2387 = vadd.f32 %v2195, 0.001
      %v2388 = vadd.f32 %v2196, 0.001
      %v2389 = vadd.f32 %v2197, 0.001
      %v2390 = vadd.f32 %v2198, 0.001
      %v2391 = vadd.f32 %v2199, 0.001
      %v2392 = vadd.f32 %v2200, 0.001
      %v2393 = vadd.f32 %v2201, 0.001
      %v2394 = vadd.f32 %v2202, 0.001
      %v2395 = vadd.f32 %v2203, 0.001
      %v2396 = vadd.f32 %v2204, 0.001
      %v2397 = vadd.f32 %v2205, 0.001
      %v2398 = vadd.f32 %v2206, 0.001
      %v2399 = vadd.f32 %v2207, 0.001
      %v2400 = vadd.f32 %v2208, 0.001
      %v2401 = vadd.f32 %v2209, 0.001
      %v2402 = vadd.f32 %v2210, 0.001
      %v2403 = vadd.f32 %v2211, 0.001
      %v2404 = vadd.f32 %v2212, 0.001
      %v2405 = vadd.f32 %v2213, 0.001
      %v2406 = vadd.f32 %v2214, 0.001
      %v2407 = vadd.f32 %v2215, 0.001
      %v2408 = vadd.f32 %v2216, 0.001
      %v2409 = vadd.f32 %v2217, 0.001
      %v2410 = vadd.f32 %v2218, 0.001
      %v2411 = vadd.f32 %v2219, 0.001
      %v2412 = vadd.f32 %v2220, 0.001
      %v2413 = vadd.f32 %v2221, 0.001
      %v2414 = vadd.f32 %v2222, 0.001
      %v2415 = vadd.f32 %v2223, 0.001
      %v2416 = vadd.f32 %v2224, 0.001
      %v2417 = vadd.f32 %v2225, 0.001
      %v2418 = vadd.f32 %v2226, 0.001
      %v2419 = vadd.f32 %v2227, 0.001
      %v2420 = vadd.f32 %v2228, 0.001
      %v2421 = vadd.f32 %v2229, 0.001
      %v2422 = vadd.f32 %v2230, 0.001
      %v2423 = vadd.f32 %v2231, 0.001
      %v2424 = vadd.f32 %v2232, 0.001
      %v2425 = vadd.f32 %v2233, 0.001
      %v2426 = vadd.f32 %v2234, 0.001
      %v2427 = vadd.f32 %v2235, 0.001
      %v2428 = vadd.f32 %v2236, 0.001
      %v2429 = vadd.f32 %v2237, 0.001
      %v2430 = vadd.f32 %v2238, 0.001
      %v2431 = vadd.f32 %v2239, 0.001
      %v2432 = vadd.f32 %v2240, 0.001
      %v2433 = vadd.f32 %v2241, 0.001
      %v2434 = vadd.f32 %v2242, 0.001
      %v2435 = vadd.f32 %v2243, 0.001
      %v2436 = vadd.f32 %v2244, 0.001
      %v2437 = vadd.f32 %v2245, 0.001
      %v2438 = vadd.f32 %v2246, 0.001
      %v2439 = vadd.f32 %v2247, 0.001
      %v2440 = vadd.f32 %v2248, 0.001
      %v2441 = vadd.f32 %v2249, 0.001
      %v2442 = vadd.f32 %v2250, 0.001
      %v2443 = vadd.f32 %v2251, 0.001
      %v2444 = vadd.f32 %v2252, 0.001
      %v2445 = vadd.f32 %v2253, 0.001
      %v2446 = vadd.f32 %v2254, 0.001
      %v2447 = vadd.f32 %v2255, 0.001
      %v2448 = vadd.f32 %v2256, 0.001
      %v2449 = vadd.f32 %v2257, 0.001
      %v2450 = vadd.f32 %v2258, 0.001
      %v2451 = vadd.f32 %v2259, 0.001
      %v2452 = vadd.f32 %v2260, 0.001
      %v2453 = vadd.f32 %v2261, 0.001
      %v2454 = vadd.f32 %v2262, 0.001
      %v2455 = vadd.f32 %v2263, 0.001
      %v2456 = vadd.f32 %v2264, 0.001
      %v2457 = vadd.f32 %v2265, 0.001
      %v2458 = vadd.f32 %v2266, 0.001
      %v2459 = vadd.f32 %v2267, 0.001
      %v2460 = vadd.f32 %v2268, 0.001
      %v2461 = vadd.f32 %v2269, 0.001
      %v2462 = vadd.f32 %v2270, 0.001
      %v2463 = vadd.f32 %v2271, 0.001
      %v2464 = vadd.f32 %v2272, 0.001
      %v2465 = vadd.f32 %v2273, 0.001
      %v2466 = vadd.f32 %v2274, 0.001
      %v2467 = vadd.f32 %v2275, 0.001
      %v2468 = vadd.f32 %v2276, 0.001
      %v2469 = vadd.f32 %v2277, 0.001
      %v2470 = vadd.f32 %v2278, 0.001
      %v2471 = vadd.f32 %v2279, 0.001
      %v2472 = vadd.f32 %v2280, 0.001
      %v2473 = vadd.f32 %v2281, 0.001
      %v2474 = vadd.f32 %v2282, 0.001
      %v2475 = vadd.f32 %v2283, 0.001
      %v2476 = vadd.f32 %v2284, 0.001
      %v2477 = vadd.f32 %v2285, 0.001
      %v2478 = vadd.f32 %v2286, 0.001
      %v2479 = vadd.f32 %v2287, 0.001
      %v2480 = vadd.f32 %v2288, 0.001
      %v2481 = vadd.f32 %v2289, 0.001
      %v2482 = vadd.f32 %v2290, 0.001
      %v2483 = vadd.f32 %v2291, 0.001
      %v2484 = vadd.f32 %v2292, 0.001
      %v2485 = vadd.f32 %v2293, 0.001
      %v2486 = vadd.f32 %v2294, 0.001
      %v2487 = vadd.f32 %v2295, 0.001
      %v2488 = vadd.f32 %v2296, 0.001
      %v2489 = vadd.f32 %v2297, 0.001
      %v2490 = vadd.f32 %v2298, 0.001
      %v2491 = vadd.f32 %v2299, 0.001
      %v2492 = vadd.f32 %v2300, 0.001
      %v2493 = vadd.f32 %v2301, 0.001
      %v2494 = vadd.f32 %v2302, 0.001
      %v2495 = vadd.f32 %v2303, 0.001
      %v2496 = vadd.f32 %v2304, 0.001
      %v2497 = vadd.f32 %v2305, 0.001
      %v2498 = vadd.f32 %v2306, 0.001
      %v2499 = vadd.f32 %v2307, 0.001
      %v2500 = vadd.f32 %v2308, 0.001
      %v2501 = vadd.f32 %v2309, 0.001
      %v2502 = vadd.f32 %v2310, 0.001
      %v2503 = vadd.f32 %v2311, 0.001
      %v2504 = vadd.f32 %v2312, 0.001
      %v2505 = vadd.f32 %v2313, 0.001
      %v2506 = vadd.f32 %v2314, 0.001
      %v2507 = vadd.f32 %v2315, 0.001
      %v2508 = vadd.f32 %v2316, 0.001
      %v2509 = vadd.f32 %v2317, 0.001
      %v2510 = vadd.f32 %v2318, 0.001
      %v2511 = vadd.f32 %v2319, 0.001
      %v2512 = vadd.f32 %v2320, 0.001
      %v2513 = vadd.f32 %v2321, 0.001
      %v2514 = vadd.f32 %v2322, 0.001
      %v2515 = vadd.f32 %v2323, 0.001
      %v2516 = vadd.f32 %v2324, 0.001
      %v2517 = vadd.f32 %v2325, 0.001
      %v2518 = vadd.f32 %v2326, 0.001
      %v2519 = vadd.f32 %v2327, 0.001
      %v2520 = vadd.f32 %v2328, 0.001
      %v2521 = vadd.f32 %v2329, 0.001
      %v2522 = vadd.f32 %v2330, 0.001
      %v2523 = vrsqrt.pop %v2331
      %v2524 = vrsqrt.pop %v2332
      %v2525 = vrsqrt.pop %v2333
      %v2526 = vrsqrt.pop %v2334
      %v2527 = vrsqrt.pop %v2335
      %v2528 = vrsqrt.pop %v2336
      %v2529 = vrsqrt.pop %v2337
      %v2530 = vrsqrt.pop %v2338
      %v2531 = vrsqrt.pop %v2339
      %v2532 = vrsqrt.pop %v2340
      %v2533 = vrsqrt.pop %v2341
      %v2534 = vrsqrt.pop %v2342
      %v2535 = vrsqrt.pop %v2343
      %v2536 = vrsqrt.pop %v2344
      %v2537 = vrsqrt.pop %v2345
      %v2538 = vrsqrt.pop %v2346
      %v2539 = vrsqrt.pop %v2347
      %v2540 = vrsqrt.pop %v2348
      %v2541 = vrsqrt.pop %v2349
      %v2542 = vrsqrt.pop %v2350
      %v2543 = vrsqrt.pop %v2351
      %v2544 = vrsqrt.pop %v2352
      %v2545 = vrsqrt.pop %v2353
      %v2546 = vrsqrt.pop %v2354
      %v2547 = vrsqrt.pop %v2355
      %v2548 = vrsqrt.pop %v2356
      %v2549 = vrsqrt.pop %v2357
      %v2550 = vrsqrt.pop %v2358
      %v2551 = vrsqrt.pop %v2359
      %v2552 = vrsqrt.pop %v2360
      %v2553 = vrsqrt.pop %v2361
      %v2554 = vrsqrt.pop %v2362
      %v2555 = vrsqrt.pop %v2363
      %v2556 = vrsqrt.pop %v2364
      %v2557 = vrsqrt.pop %v2365
      %v2558 = vrsqrt.pop %v2366
      %v2559 = vrsqrt.pop %v2367
      %v2560 = vrsqrt.pop %v2368
      %v2561 = vrsqrt.pop %v2369
      %v2562 = vrsqrt.pop %v2370
      %v2563 = vrsqrt.pop %v2371
      %v2564 = vrsqrt.pop %v2372
      %v2565 = vrsqrt.pop %v2373
      %v2566 = vrsqrt.pop %v2374
      %v2567 = vrsqrt.pop %v2375
      %v2568 = vrsqrt.pop %v2376
      %v2569 = vrsqrt.pop %v2377
      %v2570 = vrsqrt.pop %v2378
      %v2571 = vrsqrt.pop %v2379
      %v2572 = vrsqrt.pop %v2380
      %v2573 = vrsqrt.pop %v2381
      %v2574 = vrsqrt.pop %v2382
      %v2575 = vrsqrt.pop %v2383
      %v2576 = vrsqrt.pop %v2384
      %v2577 = vrsqrt.pop %v2385
      %v2578 = vrsqrt.pop %v2386
      %v2579 = vrsqrt.pop %v2387
      %v2580 = vrsqrt.pop %v2388
      %v2581 = vrsqrt.pop %v2389
      %v2582 = vrsqrt.pop %v2390
      %v2583 = vrsqrt.pop %v2391
      %v2584 = vrsqrt.pop %v2392
      %v2585 = vrsqrt.pop %v2393
      %v2586 = vrsqrt.pop %v2394
      %v2587 = vrsqrt.pop %v2395
      %v2588 = vrsqrt.pop %v2396
      %v2589 = vrsqrt.pop %v2397
      %v2590 = vrsqrt.pop %v2398
      %v2591 = vrsqrt.pop %v2399
      %v2592 = vrsqrt.pop %v2400
      %v2593 = vrsqrt.pop %v2401
      %v2594 = vrsqrt.pop %v2402
      %v2595 = vrsqrt.pop %v2403
      %v2596 = vrsqrt.pop %v2404
      %v2597 = vrsqrt.pop %v2405
      %v2598 = vrsqrt.pop %v2406
      %v2599 = vrsqrt.pop %v2407
      %v2600 = vrsqrt.pop %v2408
      %v2601 = vrsqrt.pop %v2409
      %v2602 = vrsqrt.pop %v2410
      %v2603 = vrsqrt.pop %v2411
      %v2604 = vrsqrt.pop %v2412
      %v2605 = vrsqrt.pop %v2413
      %v2606 = vrsqrt.pop %v2414
      %v2607 = vrsqrt.pop %v2415
      %v2608 = vrsqrt.pop %v2416
      %v2609 = vrsqrt.pop %v2417
      %v2610 = vrsqrt.pop %v2418
      %v2611 = vrsqrt.pop %v2419
      %v2612 = vrsqrt.pop %v2420
      %v2613 = vrsqrt.pop %v2421
      %v2614 = vrsqrt.pop %v2422
      %v2615 = vrsqrt.pop %v2423
      %v2616 = vrsqrt.pop %v2424
      %v2617 = vrsqrt.pop %v2425
      %v2618 = vrsqrt.pop %v2426
      %v2619 = vrsqrt.pop %v2427
      %v2620 = vrsqrt.pop %v2428
      %v2621 = vrsqrt.pop %v2429
      %v2622 = vrsqrt.pop %v2430
      %v2623 = vrsqrt.pop %v2431
      %v2624 = vrsqrt.pop %v2432
      %v2625 = vrsqrt.pop %v2433
      %v2626 = vrsqrt.pop %v2434
      %v2627 = vrsqrt.pop %v2435
      %v2628 = vrsqrt.pop %v2436
      %v2629 = vrsqrt.pop %v2437
      %v2630 = vrsqrt.pop %v2438
      %v2631 = vrsqrt.pop %v2439
      %v2632 = vrsqrt.pop %v2440
      %v2633 = vrsqrt.pop %v2441
      %v2634 = vrsqrt.pop %v2442
      %v2635 = vrsqrt.pop %v2443
      %v2636 = vrsqrt.pop %v2444
      %v2637 = vrsqrt.pop %v2445
      %v2638 = vrsqrt.pop %v2446
      %v2639 = vrsqrt.pop %v2447
      %v2640 = vrsqrt.pop %v2448
      %v2641 = vrsqrt.pop %v2449
      %v2642 = vrsqrt.pop %v2450
      %v2643 = vrsqrt.pop %v2451
      %v2644 = vrsqrt.pop %v2452
      %v2645 = vrsqrt.pop %v2453
      %v2646 = vrsqrt.pop %v2454
      %v2647 = vrsqrt.pop %v2455
      %v2648 = vrsqrt.pop %v2456
      %v2649 = vrsqrt.pop %v2457
      %v2650 = vrsqrt.pop %v2458
      %v2651 = vrsqrt.pop %v2459
      %v2652 = vrsqrt.pop %v2460
      %v2653 = vrsqrt.pop %v2461
      %v2654 = vrsqrt.pop %v2462
      %v2655 = vrsqrt.pop %v2463
      %v2656 = vrsqrt.pop %v2464
      %v2657 = vrsqrt.pop %v2465
      %v2658 = vrsqrt.pop %v2466
      %v2659 = vrsqrt.pop %v2467
      %v2660 = vrsqrt.pop %v2468
      %v2661 = vrsqrt.pop %v2469
      %v2662 = vrsqrt.pop %v2470
      %v2663 = vrsqrt.pop %v2471
      %v2664 = vrsqrt.pop %v2472
      %v2665 = vrsqrt.pop %v2473
      %v2666 = vrsqrt.pop %v2474
      %v2667 = vrsqrt.pop %v2475
      %v2668 = vrsqrt.pop %v2476
      %v2669 = vrsqrt.pop %v2477
      %v2670 = vrsqrt.pop %v2478
      %v2671 = vrsqrt.pop %v2479
      %v2672 = vrsqrt.pop %v2480
      %v2673 = vrsqrt.pop %v2481
      %v2674 = vrsqrt.pop %v2482
      %v2675 = vrsqrt.pop %v2483
      %v2676 = vrsqrt.pop %v2484
      %v2677 = vrsqrt.pop %v2485
      %v2678 = vrsqrt.pop %v2486
      %v2679 = vrsqrt.pop %v2487
      %v2680 = vrsqrt.pop %v2488
      %v2681 = vrsqrt.pop %v2489
      %v2682 = vrsqrt.pop %v2490
      %v2683 = vrsqrt.pop %v2491
      %v2684 = vrsqrt.pop %v2492
      %v2685 = vrsqrt.pop %v2493
      %v2686 = vrsqrt.pop %v2494
      %v2687 = vrsqrt.pop %v2495
      %v2688 = vrsqrt.pop %v2496
      %v2689 = vrsqrt.pop %v2497
      %v2690 = vrsqrt.pop %v2498
      %v2691 = vrsqrt.pop %v2499
      %v2692 = vrsqrt.pop %v2500
      %v2693 = vrsqrt.pop %v2501
      %v2694 = vrsqrt.pop %v2502
      %v2695 = vrsqrt.pop %v2503
      %v2696 = vrsqrt.pop %v2504
      %v2697 = vrsqrt.pop %v2505
      %v2698 = vrsqrt.pop %v2506
      %v2699 = vrsqrt.pop %v2507
      %v2700 = vrsqrt.pop %v2508
      %v2701 = vrsqrt.pop %v2509
      %v2702 = vrsqrt.pop %v2510
      %v2703 = vrsqrt.pop %v2511
      %v2704 = vrsqrt.pop %v2512
      %v2705 = vrsqrt.pop %v2513
      %v2706 = vrsqrt.pop %v2514
      %v2707 = vrsqrt.pop %v2515
      %v2708 = vrsqrt.pop %v2516
      %v2709 = vrsqrt.pop %v2517
      %v2710 = vrsqrt.pop %v2518
      %v2711 = vrsqrt.pop %v2519
      %v2712 = vrsqrt.pop %v2520
      %v2713 = vrsqrt.pop %v2521
      %v2714 = vrsqrt.pop %v2522
      %v2715 = vld [vmem:[%s204] sm:$0xff]
      %v2716 = vld [vmem:[%s204 + $0x8] sm:$0xff]
      %v2717 = vld [vmem:[%s204 + $0x10] sm:$0xff]
      %v2718 = vld [vmem:[%s204 + $0x18] sm:$0xff]
      %v2719 = vld [vmem:[%s204 + $0x20] sm:$0xff]
      %v2720 = vld [vmem:[%s204 + $0x28] sm:$0xff]
      %v2721 = vld [vmem:[%s204 + $0x30] sm:$0xff]
      %v2722 = vld [vmem:[%s204 + $0x38] sm:$0xff]
      %v2723 = vld [vmem:[%s204 + $0x40] sm:$0xff]
      %v2724 = vld [vmem:[%s204 + $0x48] sm:$0xff]
      %v2725 = vld [vmem:[%s204 + $0x50] sm:$0xff]
      %v2726 = vld [vmem:[%s204 + $0x58] sm:$0xff]
      %v2727 = vld [vmem:[%s204 + $0x60] sm:$0xff]
      %v2728 = vld [vmem:[%s204 + $0x68] sm:$0xff]
      %v2729 = vld [vmem:[%s204 + $0x70] sm:$0xff]
      %v2730 = vld [vmem:[%s204 + $0x78] sm:$0xff]
      %v2731 = vld [vmem:[%s204 + $0x80] sm:$0xff]
      %v2732 = vld [vmem:[%s204 + $0x88] sm:$0xff]
      %v2733 = vld [vmem:[%s204 + $0x90] sm:$0xff]
      %v2734 = vld [vmem:[%s204 + $0x98] sm:$0xff]
      %v2735 = vld [vmem:[%s204 + $0xa0] sm:$0xff]
      %v2736 = vld [vmem:[%s204 + $0xa8] sm:$0xff]
      %v2737 = vld [vmem:[%s204 + $0xb0] sm:$0xff]
      %v2738 = vld [vmem:[%s204 + $0xb8] sm:$0xff]
      %v2739 = vld [vmem:[%s204 + $0xc0] sm:$0xff]
      %v2740 = vld [vmem:[%s204 + $0xc8] sm:$0xff]
      %v2741 = vld [vmem:[%s204 + $0xd0] sm:$0xff]
      %v2742 = vld [vmem:[%s204 + $0xd8] sm:$0xff]
      %v2743 = vld [vmem:[%s204 + $0xe0] sm:$0xff]
      %v2744 = vld [vmem:[%s204 + $0xe8] sm:$0xff]
      %v2745 = vld [vmem:[%s204 + $0xf0] sm:$0xff]
      %v2746 = vld [vmem:[%s204 + $0xf8] sm:$0xff]
      %v2747 = vld [vmem:[%s204 + $0x100] sm:$0xff]
      %v2748 = vld [vmem:[%s204 + $0x108] sm:$0xff]
      %v2749 = vld [vmem:[%s204 + $0x110] sm:$0xff]
      %v2750 = vld [vmem:[%s204 + $0x118] sm:$0xff]
      %v2751 = vld [vmem:[%s204 + $0x120] sm:$0xff]
      %v2752 = vld [vmem:[%s204 + $0x128] sm:$0xff]
      %v2753 = vld [vmem:[%s204 + $0x130] sm:$0xff]
      %v2754 = vld [vmem:[%s204 + $0x138] sm:$0xff]
      %v2755 = vld [vmem:[%s204 + $0x140] sm:$0xff]
      %v2756 = vld [vmem:[%s204 + $0x148] sm:$0xff]
      %v2757 = vld [vmem:[%s204 + $0x150] sm:$0xff]
      %v2758 = vld [vmem:[%s204 + $0x158] sm:$0xff]
      %v2759 = vld [vmem:[%s204 + $0x160] sm:$0xff]
      %v2760 = vld [vmem:[%s204 + $0x168] sm:$0xff]
      %v2761 = vld [vmem:[%s204 + $0x170] sm:$0xff]
      %v2762 = vld [vmem:[%s204 + $0x178] sm:$0xff]
      %v2763 = vld [vmem:[%s204 + $0x180] sm:$0xff]
      %v2764 = vld [vmem:[%s204 + $0x188] sm:$0xff]
      %v2765 = vld [vmem:[%s204 + $0x190] sm:$0xff]
      %v2766 = vld [vmem:[%s204 + $0x198] sm:$0xff]
      %v2767 = vld [vmem:[%s204 + $0x1a0] sm:$0xff]
      %v2768 = vld [vmem:[%s204 + $0x1a8] sm:$0xff]
      %v2769 = vld [vmem:[%s204 + $0x1b0] sm:$0xff]
      %v2770 = vld [vmem:[%s204 + $0x1b8] sm:$0xff]
      %v2771 = vld [vmem:[%s204 + $0x1c0] sm:$0xff]
      %v2772 = vld [vmem:[%s204 + $0x1c8] sm:$0xff]
      %v2773 = vld [vmem:[%s204 + $0x1d0] sm:$0xff]
      %v2774 = vld [vmem:[%s204 + $0x1d8] sm:$0xff]
      %v2775 = vld [vmem:[%s204 + $0x1e0] sm:$0xff]
      %v2776 = vld [vmem:[%s204 + $0x1e8] sm:$0xff]
      %v2777 = vld [vmem:[%s204 + $0x1f0] sm:$0xff]
      %v2778 = vld [vmem:[%s204 + $0x1f8] sm:$0xff]
      %v2779 = vld [vmem:[%s204 + $0x200] sm:$0xff]
      %v2780 = vld [vmem:[%s204 + $0x208] sm:$0xff]
      %v2781 = vld [vmem:[%s204 + $0x210] sm:$0xff]
      %v2782 = vld [vmem:[%s204 + $0x218] sm:$0xff]
      %v2783 = vld [vmem:[%s204 + $0x220] sm:$0xff]
      %v2784 = vld [vmem:[%s204 + $0x228] sm:$0xff]
      %v2785 = vld [vmem:[%s204 + $0x230] sm:$0xff]
      %v2786 = vld [vmem:[%s204 + $0x238] sm:$0xff]
      %v2787 = vld [vmem:[%s204 + $0x240] sm:$0xff]
      %v2788 = vld [vmem:[%s204 + $0x248] sm:$0xff]
      %v2789 = vld [vmem:[%s204 + $0x250] sm:$0xff]
      %v2790 = vld [vmem:[%s204 + $0x258] sm:$0xff]
      %v2791 = vld [vmem:[%s204 + $0x260] sm:$0xff]
      %v2792 = vld [vmem:[%s204 + $0x268] sm:$0xff]
      %v2793 = vld [vmem:[%s204 + $0x270] sm:$0xff]
      %v2794 = vld [vmem:[%s204 + $0x278] sm:$0xff]
      %v2795 = vld [vmem:[%s204 + $0x280] sm:$0xff]
      %v2796 = vld [vmem:[%s204 + $0x288] sm:$0xff]
      %v2797 = vld [vmem:[%s204 + $0x290] sm:$0xff]
      %v2798 = vld [vmem:[%s204 + $0x298] sm:$0xff]
      %v2799 = vld [vmem:[%s204 + $0x2a0] sm:$0xff]
      %v2800 = vld [vmem:[%s204 + $0x2a8] sm:$0xff]
      %v2801 = vld [vmem:[%s204 + $0x2b0] sm:$0xff]
      %v2802 = vld [vmem:[%s204 + $0x2b8] sm:$0xff]
      %v2803 = vld [vmem:[%s204 + $0x2c0] sm:$0xff]
      %v2804 = vld [vmem:[%s204 + $0x2c8] sm:$0xff]
      %v2805 = vld [vmem:[%s204 + $0x2d0] sm:$0xff]
      %v2806 = vld [vmem:[%s204 + $0x2d8] sm:$0xff]
      %v2807 = vld [vmem:[%s204 + $0x2e0] sm:$0xff]
      %v2808 = vld [vmem:[%s204 + $0x2e8] sm:$0xff]
      %v2809 = vld [vmem:[%s204 + $0x2f0] sm:$0xff]
      %v2810 = vld [vmem:[%s204 + $0x2f8] sm:$0xff]
      %v2811 = vld [vmem:[%s204 + $0x300] sm:$0xff]
      %v2812 = vld [vmem:[%s204 + $0x308] sm:$0xff]
      %v2813 = vld [vmem:[%s204 + $0x310] sm:$0xff]
      %v2814 = vld [vmem:[%s204 + $0x318] sm:$0xff]
      %v2815 = vld [vmem:[%s204 + $0x320] sm:$0xff]
      %v2816 = vld [vmem:[%s204 + $0x328] sm:$0xff]
      %v2817 = vld [vmem:[%s204 + $0x330] sm:$0xff]
      %v2818 = vld [vmem:[%s204 + $0x338] sm:$0xff]
      %v2819 = vld [vmem:[%s204 + $0x340] sm:$0xff]
      %v2820 = vld [vmem:[%s204 + $0x348] sm:$0xff]
      %v2821 = vld [vmem:[%s204 + $0x350] sm:$0xff]
      %v2822 = vld [vmem:[%s204 + $0x358] sm:$0xff]
      %v2823 = vld [vmem:[%s204 + $0x360] sm:$0xff]
      %v2824 = vld [vmem:[%s204 + $0x368] sm:$0xff]
      %v2825 = vld [vmem:[%s204 + $0x370] sm:$0xff]
      %v2826 = vld [vmem:[%s204 + $0x378] sm:$0xff]
      %v2827 = vld [vmem:[%s204 + $0x380] sm:$0xff]
      %v2828 = vld [vmem:[%s204 + $0x388] sm:$0xff]
      %v2829 = vld [vmem:[%s204 + $0x390] sm:$0xff]
      %v2830 = vld [vmem:[%s204 + $0x398] sm:$0xff]
      %v2831 = vld [vmem:[%s204 + $0x3a0] sm:$0xff]
      %v2832 = vld [vmem:[%s204 + $0x3a8] sm:$0xff]
      %v2833 = vld [vmem:[%s204 + $0x3b0] sm:$0xff]
      %v2834 = vld [vmem:[%s204 + $0x3b8] sm:$0xff]
      %v2835 = vld [vmem:[%s204 + $0x3c0] sm:$0xff]
      %v2836 = vld [vmem:[%s204 + $0x3c8] sm:$0xff]
      %v2837 = vld [vmem:[%s204 + $0x3d0] sm:$0xff]
      %v2838 = vld [vmem:[%s204 + $0x3d8] sm:$0xff]
      %v2839 = vld [vmem:[%s204 + $0x3e0] sm:$0xff]
      %v2840 = vld [vmem:[%s204 + $0x3e8] sm:$0xff]
      %v2841 = vld [vmem:[%s204 + $0x3f0] sm:$0xff]
      %v2842 = vld [vmem:[%s204 + $0x3f8] sm:$0xff]
      %v2843 = vld [vmem:[%s204 + $0x400] sm:$0xff]
      %v2844 = vld [vmem:[%s204 + $0x408] sm:$0xff]
      %v2845 = vld [vmem:[%s204 + $0x410] sm:$0xff]
      %v2846 = vld [vmem:[%s204 + $0x418] sm:$0xff]
      %v2847 = vld [vmem:[%s204 + $0x420] sm:$0xff]
      %v2848 = vld [vmem:[%s204 + $0x428] sm:$0xff]
      %v2849 = vld [vmem:[%s204 + $0x430] sm:$0xff]
      %v2850 = vld [vmem:[%s204 + $0x438] sm:$0xff]
      %v2851 = vld [vmem:[%s204 + $0x440] sm:$0xff]
      %v2852 = vld [vmem:[%s204 + $0x448] sm:$0xff]
      %v2853 = vld [vmem:[%s204 + $0x450] sm:$0xff]
      %v2854 = vld [vmem:[%s204 + $0x458] sm:$0xff]
      %v2855 = vld [vmem:[%s204 + $0x460] sm:$0xff]
      %v2856 = vld [vmem:[%s204 + $0x468] sm:$0xff]
      %v2857 = vld [vmem:[%s204 + $0x470] sm:$0xff]
      %v2858 = vld [vmem:[%s204 + $0x478] sm:$0xff]
      %v2859 = vld [vmem:[%s204 + $0x480] sm:$0xff]
      %v2860 = vld [vmem:[%s204 + $0x488] sm:$0xff]
      %v2861 = vld [vmem:[%s204 + $0x490] sm:$0xff]
      %v2862 = vld [vmem:[%s204 + $0x498] sm:$0xff]
      %v2863 = vld [vmem:[%s204 + $0x4a0] sm:$0xff]
      %v2864 = vld [vmem:[%s204 + $0x4a8] sm:$0xff]
      %v2865 = vld [vmem:[%s204 + $0x4b0] sm:$0xff]
      %v2866 = vld [vmem:[%s204 + $0x4b8] sm:$0xff]
      %v2867 = vld [vmem:[%s204 + $0x4c0] sm:$0xff]
      %v2868 = vld [vmem:[%s204 + $0x4c8] sm:$0xff]
      %v2869 = vld [vmem:[%s204 + $0x4d0] sm:$0xff]
      %v2870 = vld [vmem:[%s204 + $0x4d8] sm:$0xff]
      %v2871 = vld [vmem:[%s204 + $0x4e0] sm:$0xff]
      %v2872 = vld [vmem:[%s204 + $0x4e8] sm:$0xff]
      %v2873 = vld [vmem:[%s204 + $0x4f0] sm:$0xff]
      %v2874 = vld [vmem:[%s204 + $0x4f8] sm:$0xff]
      %v2875 = vld [vmem:[%s204 + $0x500] sm:$0xff]
      %v2876 = vld [vmem:[%s204 + $0x508] sm:$0xff]
      %v2877 = vld [vmem:[%s204 + $0x510] sm:$0xff]
      %v2878 = vld [vmem:[%s204 + $0x518] sm:$0xff]
      %v2879 = vld [vmem:[%s204 + $0x520] sm:$0xff]
      %v2880 = vld [vmem:[%s204 + $0x528] sm:$0xff]
      %v2881 = vld [vmem:[%s204 + $0x530] sm:$0xff]
      %v2882 = vld [vmem:[%s204 + $0x538] sm:$0xff]
      %v2883 = vld [vmem:[%s204 + $0x540] sm:$0xff]
      %v2884 = vld [vmem:[%s204 + $0x548] sm:$0xff]
      %v2885 = vld [vmem:[%s204 + $0x550] sm:$0xff]
      %v2886 = vld [vmem:[%s204 + $0x558] sm:$0xff]
      %v2887 = vld [vmem:[%s204 + $0x560] sm:$0xff]
      %v2888 = vld [vmem:[%s204 + $0x568] sm:$0xff]
      %v2889 = vld [vmem:[%s204 + $0x570] sm:$0xff]
      %v2890 = vld [vmem:[%s204 + $0x578] sm:$0xff]
      %v2891 = vld [vmem:[%s204 + $0x580] sm:$0xff]
      %v2892 = vld [vmem:[%s204 + $0x588] sm:$0xff]
      %v2893 = vld [vmem:[%s204 + $0x590] sm:$0xff]
      %v2894 = vld [vmem:[%s204 + $0x598] sm:$0xff]
      %v2895 = vld [vmem:[%s204 + $0x5a0] sm:$0xff]
      %v2896 = vld [vmem:[%s204 + $0x5a8] sm:$0xff]
      %v2897 = vld [vmem:[%s204 + $0x5b0] sm:$0xff]
      %v2898 = vld [vmem:[%s204 + $0x5b8] sm:$0xff]
      %v2899 = vld [vmem:[%s204 + $0x5c0] sm:$0xff]
      %v2900 = vld [vmem:[%s204 + $0x5c8] sm:$0xff]
      %v2901 = vld [vmem:[%s204 + $0x5d0] sm:$0xff]
      %v2902 = vld [vmem:[%s204 + $0x5d8] sm:$0xff]
      %v2903 = vld [vmem:[%s204 + $0x5e0] sm:$0xff]
      %v2904 = vld [vmem:[%s204 + $0x5e8] sm:$0xff]
      %v2905 = vld [vmem:[%s204 + $0x5f0] sm:$0xff]
      %v2906 = vld [vmem:[%s204 + $0x5f8] sm:$0xff]
      %v2907 = vmul.f32 %v2523, %v2715
      %v2908 = vmul.f32 %v2524, %v2716
      %v2909 = vmul.f32 %v2525, %v2717
      %v2910 = vmul.f32 %v2526, %v2718
      %v2911 = vmul.f32 %v2527, %v2719
      %v2912 = vmul.f32 %v2528, %v2720
      %v2913 = vmul.f32 %v2529, %v2721
      %v2914 = vmul.f32 %v2530, %v2722
      %v2915 = vmul.f32 %v2531, %v2723
      %v2916 = vmul.f32 %v2532, %v2724
      %v2917 = vmul.f32 %v2533, %v2725
      %v2918 = vmul.f32 %v2534, %v2726
      %v2919 = vmul.f32 %v2535, %v2727
      %v2920 = vmul.f32 %v2536, %v2728
      %v2921 = vmul.f32 %v2537, %v2729
      %v2922 = vmul.f32 %v2538, %v2730
      %v2923 = vmul.f32 %v2539, %v2731
      %v2924 = vmul.f32 %v2540, %v2732
      %v2925 = vmul.f32 %v2541, %v2733
      %v2926 = vmul.f32 %v2542, %v2734
      %v2927 = vmul.f32 %v2543, %v2735
      %v2928 = vmul.f32 %v2544, %v2736
      %v2929 = vmul.f32 %v2545, %v2737
      %v2930 = vmul.f32 %v2546, %v2738
      %v2931 = vmul.f32 %v2547, %v2739
      %v2932 = vmul.f32 %v2548, %v2740
      %v2933 = vmul.f32 %v2549, %v2741
      %v2934 = vmul.f32 %v2550, %v2742
      %v2935 = vmul.f32 %v2551, %v2743
      %v2936 = vmul.f32 %v2552, %v2744
      %v2937 = vmul.f32 %v2553, %v2745
      %v2938 = vmul.f32 %v2554, %v2746
      %v2939 = vmul.f32 %v2555, %v2747
      %v2940 = vmul.f32 %v2556, %v2748
      %v2941 = vmul.f32 %v2557, %v2749
      %v2942 = vmul.f32 %v2558, %v2750
      %v2943 = vmul.f32 %v2559, %v2751
      %v2944 = vmul.f32 %v2560, %v2752
      %v2945 = vmul.f32 %v2561, %v2753
      %v2946 = vmul.f32 %v2562, %v2754
      %v2947 = vmul.f32 %v2563, %v2755
      %v2948 = vmul.f32 %v2564, %v2756
      %v2949 = vmul.f32 %v2565, %v2757
      %v2950 = vmul.f32 %v2566, %v2758
      %v2951 = vmul.f32 %v2567, %v2759
      %v2952 = vmul.f32 %v2568, %v2760
      %v2953 = vmul.f32 %v2569, %v2761
      %v2954 = vmul.f32 %v2570, %v2762
      %v2955 = vmul.f32 %v2571, %v2763
      %v2956 = vmul.f32 %v2572, %v2764
      %v2957 = vmul.f32 %v2573, %v2765
      %v2958 = vmul.f32 %v2574, %v2766
      %v2959 = vmul.f32 %v2575, %v2767
      %v2960 = vmul.f32 %v2576, %v2768
      %v2961 = vmul.f32 %v2577, %v2769
      %v2962 = vmul.f32 %v2578, %v2770
      %v2963 = vmul.f32 %v2579, %v2771
      %v2964 = vmul.f32 %v2580, %v2772
      %v2965 = vmul.f32 %v2581, %v2773
      %v2966 = vmul.f32 %v2582, %v2774
      %v2967 = vmul.f32 %v2583, %v2775
      %v2968 = vmul.f32 %v2584, %v2776
      %v2969 = vmul.f32 %v2585, %v2777
      %v2970 = vmul.f32 %v2586, %v2778
      %v2971 = vmul.f32 %v2587, %v2779
      %v2972 = vmul.f32 %v2588, %v2780
      %v2973 = vmul.f32 %v2589, %v2781
      %v2974 = vmul.f32 %v2590, %v2782
      %v2975 = vmul.f32 %v2591, %v2783
      %v2976 = vmul.f32 %v2592, %v2784
      %v2977 = vmul.f32 %v2593, %v2785
      %v2978 = vmul.f32 %v2594, %v2786
      %v2979 = vmul.f32 %v2595, %v2787
      %v2980 = vmul.f32 %v2596, %v2788
      %v2981 = vmul.f32 %v2597, %v2789
      %v2982 = vmul.f32 %v2598, %v2790
      %v2983 = vmul.f32 %v2599, %v2791
      %v2984 = vmul.f32 %v2600, %v2792
      %v2985 = vmul.f32 %v2601, %v2793
      %v2986 = vmul.f32 %v2602, %v2794
      %v2987 = vmul.f32 %v2603, %v2795
      %v2988 = vmul.f32 %v2604, %v2796
      %v2989 = vmul.f32 %v2605, %v2797
      %v2990 = vmul.f32 %v2606, %v2798
      %v2991 = vmul.f32 %v2607, %v2799
      %v2992 = vmul.f32 %v2608, %v2800
      %v2993 = vmul.f32 %v2609, %v2801
      %v2994 = vmul.f32 %v2610, %v2802
      %v2995 = vmul.f32 %v2611, %v2803
      %v2996 = vmul.f32 %v2612, %v2804
      %v2997 = vmul.f32 %v2613, %v2805
      %v2998 = vmul.f32 %v2614, %v2806
      %v2999 = vmul.f32 %v2615, %v2807
      %v3000 = vmul.f32 %v2616, %v2808
      %v3001 = vmul.f32 %v2617, %v2809
      %v3002 = vmul.f32 %v2618, %v2810
      %v3003 = vmul.f32 %v2619, %v2811
      %v3004 = vmul.f32 %v2620, %v2812
      %v3005 = vmul.f32 %v2621, %v2813
      %v3006 = vmul.f32 %v2622, %v2814
      %v3007 = vmul.f32 %v2623, %v2815
      %v3008 = vmul.f32 %v2624, %v2816
      %v3009 = vmul.f32 %v2625, %v2817
      %v3010 = vmul.f32 %v2626, %v2818
      %v3011 = vmul.f32 %v2627, %v2819
      %v3012 = vmul.f32 %v2628, %v2820
      %v3013 = vmul.f32 %v2629, %v2821
      %v3014 = vmul.f32 %v2630, %v2822
      %v3015 = vmul.f32 %v2631, %v2823
      %v3016 = vmul.f32 %v2632, %v2824
      %v3017 = vmul.f32 %v2633, %v2825
      %v3018 = vmul.f32 %v2634, %v2826
      %v3019 = vmul.f32 %v2635, %v2827
      %v3020 = vmul.f32 %v2636, %v2828
      %v3021 = vmul.f32 %v2637, %v2829
      %v3022 = vmul.f32 %v2638, %v2830
      %v3023 = vmul.f32 %v2639, %v2831
      %v3024 = vmul.f32 %v2640, %v2832
      %v3025 = vmul.f32 %v2641, %v2833
      %v3026 = vmul.f32 %v2642, %v2834
      %v3027 = vmul.f32 %v2643, %v2835
      %v3028 = vmul.f32 %v2644, %v2836
      %v3029 = vmul.f32 %v2645, %v2837
      %v3030 = vmul.f32 %v2646, %v2838
      %v3031 = vmul.f32 %v2647, %v2839
      %v3032 = vmul.f32 %v2648, %v2840
      %v3033 = vmul.f32 %v2649, %v2841
      %v3034 = vmul.f32 %v2650, %v2842
      %v3035 = vmul.f32 %v2651, %v2843
      %v3036 = vmul.f32 %v2652, %v2844
      %v3037 = vmul.f32 %v2653, %v2845
      %v3038 = vmul.f32 %v2654, %v2846
      %v3039 = vmul.f32 %v2655, %v2847
      %v3040 = vmul.f32 %v2656, %v2848
      %v3041 = vmul.f32 %v2657, %v2849
      %v3042 = vmul.f32 %v2658, %v2850
      %v3043 = vmul.f32 %v2659, %v2851
      %v3044 = vmul.f32 %v2660, %v2852
      %v3045 = vmul.f32 %v2661, %v2853
      %v3046 = vmul.f32 %v2662, %v2854
      %v3047 = vmul.f32 %v2663, %v2855
      %v3048 = vmul.f32 %v2664, %v2856
      %v3049 = vmul.f32 %v2665, %v2857
      %v3050 = vmul.f32 %v2666, %v2858
      %v3051 = vmul.f32 %v2667, %v2859
      %v3052 = vmul.f32 %v2668, %v2860
      %v3053 = vmul.f32 %v2669, %v2861
      %v3054 = vmul.f32 %v2670, %v2862
      %v3055 = vmul.f32 %v2671, %v2863
      %v3056 = vmul.f32 %v2672, %v2864
      %v3057 = vmul.f32 %v2673, %v2865
      %v3058 = vmul.f32 %v2674, %v2866
      %v3059 = vmul.f32 %v2675, %v2867
      %v3060 = vmul.f32 %v2676, %v2868
      %v3061 = vmul.f32 %v2677, %v2869
      %v3062 = vmul.f32 %v2678, %v2870
      %v3063 = vmul.f32 %v2679, %v2871
      %v3064 = vmul.f32 %v2680, %v2872
      %v3065 = vmul.f32 %v2681, %v2873
      %v3066 = vmul.f32 %v2682, %v2874
      %v3067 = vmul.f32 %v2683, %v2875
      %v3068 = vmul.f32 %v2684, %v2876
      %v3069 = vmul.f32 %v2685, %v2877
      %v3070 = vmul.f32 %v2686, %v2878
      %v3071 = vmul.f32 %v2687, %v2879
      %v3072 = vmul.f32 %v2688, %v2880
      %v3073 = vmul.f32 %v2689, %v2881
      %v3074 = vmul.f32 %v2690, %v2882
      %v3075 = vmul.f32 %v2691, %v2883
      %v3076 = vmul.f32 %v2692, %v2884
      %v3077 = vmul.f32 %v2693, %v2885
      %v3078 = vmul.f32 %v2694, %v2886
      %v3079 = vmul.f32 %v2695, %v2887
      %v3080 = vmul.f32 %v2696, %v2888
      %v3081 = vmul.f32 %v2697, %v2889
      %v3082 = vmul.f32 %v2698, %v2890
      %v3083 = vmul.f32 %v2699, %v2891
      %v3084 = vmul.f32 %v2700, %v2892
      %v3085 = vmul.f32 %v2701, %v2893
      %v3086 = vmul.f32 %v2702, %v2894
      %v3087 = vmul.f32 %v2703, %v2895
      %v3088 = vmul.f32 %v2704, %v2896
      %v3089 = vmul.f32 %v2705, %v2897
      %v3090 = vmul.f32 %v2706, %v2898
      %v3091 = vmul.f32 %v2707, %v2899
      %v3092 = vmul.f32 %v2708, %v2900
      %v3093 = vmul.f32 %v2709, %v2901
      %v3094 = vmul.f32 %v2710, %v2902
      %v3095 = vmul.f32 %v2711, %v2903
      %v3096 = vmul.f32 %v2712, %v2904
      %v3097 = vmul.f32 %v2713, %v2905
      %v3098 = vmul.f32 %v2714, %v2906
      %3100 = vset.pattern.permute.xlu0 0
      %3101 = vperm.xlu0 %3100, %v2907
      %v3102 = vpop.permute.xlu0 %3101
      %3105 = vset.pattern.permute.xlu0 0
      %3106 = vperm.xlu0 %3105, %v2908
      %v3107 = vpop.permute.xlu0 %3106
      %3110 = vset.pattern.permute.xlu0 0
      %3111 = vperm.xlu0 %3110, %v2909
      %v3112 = vpop.permute.xlu0 %3111
      %3115 = vset.pattern.permute.xlu0 0
      %3116 = vperm.xlu0 %3115, %v2910
      %v3117 = vpop.permute.xlu0 %3116
      %3120 = vset.pattern.permute.xlu0 0
      %3121 = vperm.xlu0 %3120, %v2911
      %v3122 = vpop.permute.xlu0 %3121
      %3125 = vset.pattern.permute.xlu0 0
      %3126 = vperm.xlu0 %3125, %v2912
      %v3127 = vpop.permute.xlu0 %3126
      %3130 = vset.pattern.permute.xlu0 0
      %3131 = vperm.xlu0 %3130, %v2913
      %v3132 = vpop.permute.xlu0 %3131
      %3135 = vset.pattern.permute.xlu0 0
      %3136 = vperm.xlu0 %3135, %v2914
      %v3137 = vpop.permute.xlu0 %3136
      %3140 = vset.pattern.permute.xlu0 0
      %3141 = vperm.xlu0 %3140, %v2915
      %v3142 = vpop.permute.xlu0 %3141
      %3145 = vset.pattern.permute.xlu0 0
      %3146 = vperm.xlu0 %3145, %v2916
      %v3147 = vpop.permute.xlu0 %3146
      %3150 = vset.pattern.permute.xlu0 0
      %3151 = vperm.xlu0 %3150, %v2917
      %v3152 = vpop.permute.xlu0 %3151
      %3155 = vset.pattern.permute.xlu0 0
      %3156 = vperm.xlu0 %3155, %v2918
      %v3157 = vpop.permute.xlu0 %3156
      %3160 = vset.pattern.permute.xlu0 0
      %3161 = vperm.xlu0 %3160, %v2919
      %v3162 = vpop.permute.xlu0 %3161
      %3165 = vset.pattern.permute.xlu0 0
      %3166 = vperm.xlu0 %3165, %v2920
      %v3167 = vpop.permute.xlu0 %3166
      %3170 = vset.pattern.permute.xlu0 0
      %3171 = vperm.xlu0 %3170, %v2921
      %v3172 = vpop.permute.xlu0 %3171
      %3175 = vset.pattern.permute.xlu0 0
      %3176 = vperm.xlu0 %3175, %v2922
      %v3177 = vpop.permute.xlu0 %3176
      %3180 = vset.pattern.permute.xlu0 0
      %3181 = vperm.xlu0 %3180, %v2923
      %v3182 = vpop.permute.xlu0 %3181
      %3185 = vset.pattern.permute.xlu0 0
      %3186 = vperm.xlu0 %3185, %v2924
      %v3187 = vpop.permute.xlu0 %3186
      %3190 = vset.pattern.permute.xlu0 0
      %3191 = vperm.xlu0 %3190, %v2925
      %v3192 = vpop.permute.xlu0 %3191
      %3195 = vset.pattern.permute.xlu0 0
      %3196 = vperm.xlu0 %3195, %v2926
      %v3197 = vpop.permute.xlu0 %3196
      %3200 = vset.pattern.permute.xlu0 0
      %3201 = vperm.xlu0 %3200, %v2927
      %v3202 = vpop.permute.xlu0 %3201
      %3205 = vset.pattern.permute.xlu0 0
      %3206 = vperm.xlu0 %3205, %v2928
      %v3207 = vpop.permute.xlu0 %3206
      %3210 = vset.pattern.permute.xlu0 0
      %3211 = vperm.xlu0 %3210, %v2929
      %v3212 = vpop.permute.xlu0 %3211
      %3215 = vset.pattern.permute.xlu0 0
      %3216 = vperm.xlu0 %3215, %v2930
      %v3217 = vpop.permute.xlu0 %3216
      %3220 = vset.pattern.permute.xlu0 0
      %3221 = vperm.xlu0 %3220, %v2931
      %v3222 = vpop.permute.xlu0 %3221
      %3225 = vset.pattern.permute.xlu0 0
      %3226 = vperm.xlu0 %3225, %v2932
      %v3227 = vpop.permute.xlu0 %3226
      %3230 = vset.pattern.permute.xlu0 0
      %3231 = vperm.xlu0 %3230, %v2933
      %v3232 = vpop.permute.xlu0 %3231
      %3235 = vset.pattern.permute.xlu0 0
      %3236 = vperm.xlu0 %3235, %v2934
      %v3237 = vpop.permute.xlu0 %3236
      %3240 = vset.pattern.permute.xlu0 0
      %3241 = vperm.xlu0 %3240, %v2935
      %v3242 = vpop.permute.xlu0 %3241
      %3245 = vset.pattern.permute.xlu0 0
      %3246 = vperm.xlu0 %3245, %v2936
      %v3247 = vpop.permute.xlu0 %3246
      %3250 = vset.pattern.permute.xlu0 0
      %3251 = vperm.xlu0 %3250, %v2937
      %v3252 = vpop.permute.xlu0 %3251
      %3255 = vset.pattern.permute.xlu0 0
      %3256 = vperm.xlu0 %3255, %v2938
      %v3257 = vpop.permute.xlu0 %3256
      %3260 = vset.pattern.permute.xlu0 0
      %3261 = vperm.xlu0 %3260, %v2939
      %v3262 = vpop.permute.xlu0 %3261
      %3265 = vset.pattern.permute.xlu0 0
      %3266 = vperm.xlu0 %3265, %v2940
      %v3267 = vpop.permute.xlu0 %3266
      %3270 = vset.pattern.permute.xlu0 0
      %3271 = vperm.xlu0 %3270, %v2941
      %v3272 = vpop.permute.xlu0 %3271
      %3275 = vset.pattern.permute.xlu0 0
      %3276 = vperm.xlu0 %3275, %v2942
      %v3277 = vpop.permute.xlu0 %3276
      %3280 = vset.pattern.permute.xlu0 0
      %3281 = vperm.xlu0 %3280, %v2943
      %v3282 = vpop.permute.xlu0 %3281
      %3285 = vset.pattern.permute.xlu0 0
      %3286 = vperm.xlu0 %3285, %v2944
      %v3287 = vpop.permute.xlu0 %3286
      %3290 = vset.pattern.permute.xlu0 0
      %3291 = vperm.xlu0 %3290, %v2945
      %v3292 = vpop.permute.xlu0 %3291
      %3295 = vset.pattern.permute.xlu0 0
      %3296 = vperm.xlu0 %3295, %v2946
      %v3297 = vpop.permute.xlu0 %3296
      %3300 = vset.pattern.permute.xlu0 0
      %3301 = vperm.xlu0 %3300, %v2947
      %v3302 = vpop.permute.xlu0 %3301
      %3305 = vset.pattern.permute.xlu0 0
      %3306 = vperm.xlu0 %3305, %v2948
      %v3307 = vpop.permute.xlu0 %3306
      %3310 = vset.pattern.permute.xlu0 0
      %3311 = vperm.xlu0 %3310, %v2949
      %v3312 = vpop.permute.xlu0 %3311
      %3315 = vset.pattern.permute.xlu0 0
      %3316 = vperm.xlu0 %3315, %v2950
      %v3317 = vpop.permute.xlu0 %3316
      %3320 = vset.pattern.permute.xlu0 0
      %3321 = vperm.xlu0 %3320, %v2951
      %v3322 = vpop.permute.xlu0 %3321
      %3325 = vset.pattern.permute.xlu0 0
      %3326 = vperm.xlu0 %3325, %v2952
      %v3327 = vpop.permute.xlu0 %3326
      %3330 = vset.pattern.permute.xlu0 0
      %3331 = vperm.xlu0 %3330, %v2953
      %v3332 = vpop.permute.xlu0 %3331
      %3335 = vset.pattern.permute.xlu0 0
      %3336 = vperm.xlu0 %3335, %v2954
      %v3337 = vpop.permute.xlu0 %3336
      %3340 = vset.pattern.permute.xlu0 0
      %3341 = vperm.xlu0 %3340, %v2955
      %v3342 = vpop.permute.xlu0 %3341
      %3345 = vset.pattern.permute.xlu0 0
      %3346 = vperm.xlu0 %3345, %v2956
      %v3347 = vpop.permute.xlu0 %3346
      %3350 = vset.pattern.permute.xlu0 0
      %3351 = vperm.xlu0 %3350, %v2957
      %v3352 = vpop.permute.xlu0 %3351
      %3355 = vset.pattern.permute.xlu0 0
      %3356 = vperm.xlu0 %3355, %v2958
      %v3357 = vpop.permute.xlu0 %3356
      %3360 = vset.pattern.permute.xlu0 0
      %3361 = vperm.xlu0 %3360, %v2959
      %v3362 = vpop.permute.xlu0 %3361
      %3365 = vset.pattern.permute.xlu0 0
      %3366 = vperm.xlu0 %3365, %v2960
      %v3367 = vpop.permute.xlu0 %3366
      %3370 = vset.pattern.permute.xlu0 0
      %3371 = vperm.xlu0 %3370, %v2961
      %v3372 = vpop.permute.xlu0 %3371
      %3375 = vset.pattern.permute.xlu0 0
      %3376 = vperm.xlu0 %3375, %v2962
      %v3377 = vpop.permute.xlu0 %3376
      %3380 = vset.pattern.permute.xlu0 0
      %3381 = vperm.xlu0 %3380, %v2963
      %v3382 = vpop.permute.xlu0 %3381
      %3385 = vset.pattern.permute.xlu0 0
      %3386 = vperm.xlu0 %3385, %v2964
      %v3387 = vpop.permute.xlu0 %3386
      %3390 = vset.pattern.permute.xlu0 0
      %3391 = vperm.xlu0 %3390, %v2965
      %v3392 = vpop.permute.xlu0 %3391
      %3395 = vset.pattern.permute.xlu0 0
      %3396 = vperm.xlu0 %3395, %v2966
      %v3397 = vpop.permute.xlu0 %3396
      %3400 = vset.pattern.permute.xlu0 0
      %3401 = vperm.xlu0 %3400, %v2967
      %v3402 = vpop.permute.xlu0 %3401
      %3405 = vset.pattern.permute.xlu0 0
      %3406 = vperm.xlu0 %3405, %v2968
      %v3407 = vpop.permute.xlu0 %3406
      %3410 = vset.pattern.permute.xlu0 0
      %3411 = vperm.xlu0 %3410, %v2969
      %v3412 = vpop.permute.xlu0 %3411
      %3415 = vset.pattern.permute.xlu0 0
      %3416 = vperm.xlu0 %3415, %v2970
      %v3417 = vpop.permute.xlu0 %3416
      %3420 = vset.pattern.permute.xlu0 0
      %3421 = vperm.xlu0 %3420, %v2971
      %v3422 = vpop.permute.xlu0 %3421
      %3425 = vset.pattern.permute.xlu0 0
      %3426 = vperm.xlu0 %3425, %v2972
      %v3427 = vpop.permute.xlu0 %3426
      %3430 = vset.pattern.permute.xlu0 0
      %3431 = vperm.xlu0 %3430, %v2973
      %v3432 = vpop.permute.xlu0 %3431
      %3435 = vset.pattern.permute.xlu0 0
      %3436 = vperm.xlu0 %3435, %v2974
      %v3437 = vpop.permute.xlu0 %3436
      %3440 = vset.pattern.permute.xlu0 0
      %3441 = vperm.xlu0 %3440, %v2975
      %v3442 = vpop.permute.xlu0 %3441
      %3445 = vset.pattern.permute.xlu0 0
      %3446 = vperm.xlu0 %3445, %v2976
      %v3447 = vpop.permute.xlu0 %3446
      %3450 = vset.pattern.permute.xlu0 0
      %3451 = vperm.xlu0 %3450, %v2977
      %v3452 = vpop.permute.xlu0 %3451
      %3455 = vset.pattern.permute.xlu0 0
      %3456 = vperm.xlu0 %3455, %v2978
      %v3457 = vpop.permute.xlu0 %3456
      %3460 = vset.pattern.permute.xlu0 0
      %3461 = vperm.xlu0 %3460, %v2979
      %v3462 = vpop.permute.xlu0 %3461
      %3465 = vset.pattern.permute.xlu0 0
      %3466 = vperm.xlu0 %3465, %v2980
      %v3467 = vpop.permute.xlu0 %3466
      %3470 = vset.pattern.permute.xlu0 0
      %3471 = vperm.xlu0 %3470, %v2981
      %v3472 = vpop.permute.xlu0 %3471
      %3475 = vset.pattern.permute.xlu0 0
      %3476 = vperm.xlu0 %3475, %v2982
      %v3477 = vpop.permute.xlu0 %3476
      %3480 = vset.pattern.permute.xlu0 0
      %3481 = vperm.xlu0 %3480, %v2983
      %v3482 = vpop.permute.xlu0 %3481
      %3485 = vset.pattern.permute.xlu0 0
      %3486 = vperm.xlu0 %3485, %v2984
      %v3487 = vpop.permute.xlu0 %3486
      %3490 = vset.pattern.permute.xlu0 0
      %3491 = vperm.xlu0 %3490, %v2985
      %v3492 = vpop.permute.xlu0 %3491
      %3495 = vset.pattern.permute.xlu0 0
      %3496 = vperm.xlu0 %3495, %v2986
      %v3497 = vpop.permute.xlu0 %3496
      %3500 = vset.pattern.permute.xlu0 0
      %3501 = vperm.xlu0 %3500, %v2987
      %v3502 = vpop.permute.xlu0 %3501
      %3505 = vset.pattern.permute.xlu0 0
      %3506 = vperm.xlu0 %3505, %v2988
      %v3507 = vpop.permute.xlu0 %3506
      %3510 = vset.pattern.permute.xlu0 0
      %3511 = vperm.xlu0 %3510, %v2989
      %v3512 = vpop.permute.xlu0 %3511
      %3515 = vset.pattern.permute.xlu0 0
      %3516 = vperm.xlu0 %3515, %v2990
      %v3517 = vpop.permute.xlu0 %3516
      %3520 = vset.pattern.permute.xlu0 0
      %3521 = vperm.xlu0 %3520, %v2991
      %v3522 = vpop.permute.xlu0 %3521
      %3525 = vset.pattern.permute.xlu0 0
      %3526 = vperm.xlu0 %3525, %v2992
      %v3527 = vpop.permute.xlu0 %3526
      %3530 = vset.pattern.permute.xlu0 0
      %3531 = vperm.xlu0 %3530, %v2993
      %v3532 = vpop.permute.xlu0 %3531
      %3535 = vset.pattern.permute.xlu0 0
      %3536 = vperm.xlu0 %3535, %v2994
      %v3537 = vpop.permute.xlu0 %3536
      %3540 = vset.pattern.permute.xlu0 0
      %3541 = vperm.xlu0 %3540, %v2995
      %v3542 = vpop.permute.xlu0 %3541
      %3545 = vset.pattern.permute.xlu0 0
      %3546 = vperm.xlu0 %3545, %v2996
      %v3547 = vpop.permute.xlu0 %3546
      %3550 = vset.pattern.permute.xlu0 0
      %3551 = vperm.xlu0 %3550, %v2997
      %v3552 = vpop.permute.xlu0 %3551
      %3555 = vset.pattern.permute.xlu0 0
      %3556 = vperm.xlu0 %3555, %v2998
      %v3557 = vpop.permute.xlu0 %3556
      %3560 = vset.pattern.permute.xlu0 0
      %3561 = vperm.xlu0 %3560, %v2999
      %v3562 = vpop.permute.xlu0 %3561
      %3565 = vset.pattern.permute.xlu0 0
      %3566 = vperm.xlu0 %3565, %v3000
      %v3567 = vpop.permute.xlu0 %3566
      %3570 = vset.pattern.permute.xlu0 0
      %3571 = vperm.xlu0 %3570, %v3001
      %v3572 = vpop.permute.xlu0 %3571
      %3575 = vset.pattern.permute.xlu0 0
      %3576 = vperm.xlu0 %3575, %v3002
      %v3577 = vpop.permute.xlu0 %3576
      %3580 = vset.pattern.permute.xlu0 0
      %3581 = vperm.xlu0 %3580, %v3003
      %v3582 = vpop.permute.xlu0 %3581
      %3585 = vset.pattern.permute.xlu0 0
      %3586 = vperm.xlu0 %3585, %v3004
      %v3587 = vpop.permute.xlu0 %3586
      %3590 = vset.pattern.permute.xlu0 0
      %3591 = vperm.xlu0 %3590, %v3005
      %v3592 = vpop.permute.xlu0 %3591
      %3595 = vset.pattern.permute.xlu0 0
      %3596 = vperm.xlu0 %3595, %v3006
      %v3597 = vpop.permute.xlu0 %3596
      %3600 = vset.pattern.permute.xlu0 0
      %3601 = vperm.xlu0 %3600, %v3007
      %v3602 = vpop.permute.xlu0 %3601
      %3605 = vset.pattern.permute.xlu0 0
      %3606 = vperm.xlu0 %3605, %v3008
      %v3607 = vpop.permute.xlu0 %3606
      %3610 = vset.pattern.permute.xlu0 0
      %3611 = vperm.xlu0 %3610, %v3009
      %v3612 = vpop.permute.xlu0 %3611
      %3615 = vset.pattern.permute.xlu0 0
      %3616 = vperm.xlu0 %3615, %v3010
      %v3617 = vpop.permute.xlu0 %3616
      %3620 = vset.pattern.permute.xlu0 0
      %3621 = vperm.xlu0 %3620, %v3011
      %v3622 = vpop.permute.xlu0 %3621
      %3625 = vset.pattern.permute.xlu0 0
      %3626 = vperm.xlu0 %3625, %v3012
      %v3627 = vpop.permute.xlu0 %3626
      %3630 = vset.pattern.permute.xlu0 0
      %3631 = vperm.xlu0 %3630, %v3013
      %v3632 = vpop.permute.xlu0 %3631
      %3635 = vset.pattern.permute.xlu0 0
      %3636 = vperm.xlu0 %3635, %v3014
      %v3637 = vpop.permute.xlu0 %3636
      %3640 = vset.pattern.permute.xlu0 0
      %3641 = vperm.xlu0 %3640, %v3015
      %v3642 = vpop.permute.xlu0 %3641
      %3645 = vset.pattern.permute.xlu0 0
      %3646 = vperm.xlu0 %3645, %v3016
      %v3647 = vpop.permute.xlu0 %3646
      %3650 = vset.pattern.permute.xlu0 0
      %3651 = vperm.xlu0 %3650, %v3017
      %v3652 = vpop.permute.xlu0 %3651
      %3655 = vset.pattern.permute.xlu0 0
      %3656 = vperm.xlu0 %3655, %v3018
      %v3657 = vpop.permute.xlu0 %3656
      %3660 = vset.pattern.permute.xlu0 0
      %3661 = vperm.xlu0 %3660, %v3019
      %v3662 = vpop.permute.xlu0 %3661
      %3665 = vset.pattern.permute.xlu0 0
      %3666 = vperm.xlu0 %3665, %v3020
      %v3667 = vpop.permute.xlu0 %3666
      %3670 = vset.pattern.permute.xlu0 0
      %3671 = vperm.xlu0 %3670, %v3021
      %v3672 = vpop.permute.xlu0 %3671
      %3675 = vset.pattern.permute.xlu0 0
      %3676 = vperm.xlu0 %3675, %v3022
      %v3677 = vpop.permute.xlu0 %3676
      %3680 = vset.pattern.permute.xlu0 0
      %3681 = vperm.xlu0 %3680, %v3023
      %v3682 = vpop.permute.xlu0 %3681
      %3685 = vset.pattern.permute.xlu0 0
      %3686 = vperm.xlu0 %3685, %v3024
      %v3687 = vpop.permute.xlu0 %3686
      %3690 = vset.pattern.permute.xlu0 0
      %3691 = vperm.xlu0 %3690, %v3025
      %v3692 = vpop.permute.xlu0 %3691
      %3695 = vset.pattern.permute.xlu0 0
      %3696 = vperm.xlu0 %3695, %v3026
      %v3697 = vpop.permute.xlu0 %3696
      %3700 = vset.pattern.permute.xlu0 0
      %3701 = vperm.xlu0 %3700, %v3027
      %v3702 = vpop.permute.xlu0 %3701
      %3705 = vset.pattern.permute.xlu0 0
      %3706 = vperm.xlu0 %3705, %v3028
      %v3707 = vpop.permute.xlu0 %3706
      %3710 = vset.pattern.permute.xlu0 0
      %3711 = vperm.xlu0 %3710, %v3029
      %v3712 = vpop.permute.xlu0 %3711
      %3715 = vset.pattern.permute.xlu0 0
      %3716 = vperm.xlu0 %3715, %v3030
      %v3717 = vpop.permute.xlu0 %3716
      %3720 = vset.pattern.permute.xlu0 0
      %3721 = vperm.xlu0 %3720, %v3031
      %v3722 = vpop.permute.xlu0 %3721
      %3725 = vset.pattern.permute.xlu0 0
      %3726 = vperm.xlu0 %3725, %v3032
      %v3727 = vpop.permute.xlu0 %3726
      %3730 = vset.pattern.permute.xlu0 0
      %3731 = vperm.xlu0 %3730, %v3033
      %v3732 = vpop.permute.xlu0 %3731
      %3735 = vset.pattern.permute.xlu0 0
      %3736 = vperm.xlu0 %3735, %v3034
      %v3737 = vpop.permute.xlu0 %3736
      %3740 = vset.pattern.permute.xlu0 0
      %3741 = vperm.xlu0 %3740, %v3035
      %v3742 = vpop.permute.xlu0 %3741
      %3745 = vset.pattern.permute.xlu0 0
      %3746 = vperm.xlu0 %3745, %v3036
      %v3747 = vpop.permute.xlu0 %3746
      %3750 = vset.pattern.permute.xlu0 0
      %3751 = vperm.xlu0 %3750, %v3037
      %v3752 = vpop.permute.xlu0 %3751
      %3755 = vset.pattern.permute.xlu0 0
      %3756 = vperm.xlu0 %3755, %v3038
      %v3757 = vpop.permute.xlu0 %3756
      %3760 = vset.pattern.permute.xlu0 0
      %3761 = vperm.xlu0 %3760, %v3039
      %v3762 = vpop.permute.xlu0 %3761
      %3765 = vset.pattern.permute.xlu0 0
      %3766 = vperm.xlu0 %3765, %v3040
      %v3767 = vpop.permute.xlu0 %3766
      %3770 = vset.pattern.permute.xlu0 0
      %3771 = vperm.xlu0 %3770, %v3041
      %v3772 = vpop.permute.xlu0 %3771
      %3775 = vset.pattern.permute.xlu0 0
      %3776 = vperm.xlu0 %3775, %v3042
      %v3777 = vpop.permute.xlu0 %3776
      %3780 = vset.pattern.permute.xlu0 0
      %3781 = vperm.xlu0 %3780, %v3043
      %v3782 = vpop.permute.xlu0 %3781
      %3785 = vset.pattern.permute.xlu0 0
      %3786 = vperm.xlu0 %3785, %v3044
      %v3787 = vpop.permute.xlu0 %3786
      %3790 = vset.pattern.permute.xlu0 0
      %3791 = vperm.xlu0 %3790, %v3045
      %v3792 = vpop.permute.xlu0 %3791
      %3795 = vset.pattern.permute.xlu0 0
      %3796 = vperm.xlu0 %3795, %v3046
      %v3797 = vpop.permute.xlu0 %3796
      %3800 = vset.pattern.permute.xlu0 0
      %3801 = vperm.xlu0 %3800, %v3047
      %v3802 = vpop.permute.xlu0 %3801
      %3805 = vset.pattern.permute.xlu0 0
      %3806 = vperm.xlu0 %3805, %v3048
      %v3807 = vpop.permute.xlu0 %3806
      %3810 = vset.pattern.permute.xlu0 0
      %3811 = vperm.xlu0 %3810, %v3049
      %v3812 = vpop.permute.xlu0 %3811
      %3815 = vset.pattern.permute.xlu0 0
      %3816 = vperm.xlu0 %3815, %v3050
      %v3817 = vpop.permute.xlu0 %3816
      %3820 = vset.pattern.permute.xlu0 0
      %3821 = vperm.xlu0 %3820, %v3051
      %v3822 = vpop.permute.xlu0 %3821
      %3825 = vset.pattern.permute.xlu0 0
      %3826 = vperm.xlu0 %3825, %v3052
      %v3827 = vpop.permute.xlu0 %3826
      %3830 = vset.pattern.permute.xlu0 0
      %3831 = vperm.xlu0 %3830, %v3053
      %v3832 = vpop.permute.xlu0 %3831
      %3835 = vset.pattern.permute.xlu0 0
      %3836 = vperm.xlu0 %3835, %v3054
      %v3837 = vpop.permute.xlu0 %3836
      %3840 = vset.pattern.permute.xlu0 0
      %3841 = vperm.xlu0 %3840, %v3055
      %v3842 = vpop.permute.xlu0 %3841
      %3845 = vset.pattern.permute.xlu0 0
      %3846 = vperm.xlu0 %3845, %v3056
      %v3847 = vpop.permute.xlu0 %3846
      %3850 = vset.pattern.permute.xlu0 0
      %3851 = vperm.xlu0 %3850, %v3057
      %v3852 = vpop.permute.xlu0 %3851
      %3855 = vset.pattern.permute.xlu0 0
      %3856 = vperm.xlu0 %3855, %v3058
      %v3857 = vpop.permute.xlu0 %3856
      %3860 = vset.pattern.permute.xlu0 0
      %3861 = vperm.xlu0 %3860, %v3059
      %v3862 = vpop.permute.xlu0 %3861
      %3865 = vset.pattern.permute.xlu0 0
      %3866 = vperm.xlu0 %3865, %v3060
      %v3867 = vpop.permute.xlu0 %3866
      %3870 = vset.pattern.permute.xlu0 0
      %3871 = vperm.xlu0 %3870, %v3061
      %v3872 = vpop.permute.xlu0 %3871
      %3875 = vset.pattern.permute.xlu0 0
      %3876 = vperm.xlu0 %3875, %v3062
      %v3877 = vpop.permute.xlu0 %3876
      %3880 = vset.pattern.permute.xlu0 0
      %3881 = vperm.xlu0 %3880, %v3063
      %v3882 = vpop.permute.xlu0 %3881
      %3885 = vset.pattern.permute.xlu0 0
      %3886 = vperm.xlu0 %3885, %v3064
      %v3887 = vpop.permute.xlu0 %3886
      %3890 = vset.pattern.permute.xlu0 0
      %3891 = vperm.xlu0 %3890, %v3065
      %v3892 = vpop.permute.xlu0 %3891
      %3895 = vset.pattern.permute.xlu0 0
      %3896 = vperm.xlu0 %3895, %v3066
      %v3897 = vpop.permute.xlu0 %3896
      %3900 = vset.pattern.permute.xlu0 0
      %3901 = vperm.xlu0 %3900, %v3067
      %v3902 = vpop.permute.xlu0 %3901
      %3905 = vset.pattern.permute.xlu0 0
      %3906 = vperm.xlu0 %3905, %v3068
      %v3907 = vpop.permute.xlu0 %3906
      %3910 = vset.pattern.permute.xlu0 0
      %3911 = vperm.xlu0 %3910, %v3069
      %v3912 = vpop.permute.xlu0 %3911
      %3915 = vset.pattern.permute.xlu0 0
      %3916 = vperm.xlu0 %3915, %v3070
      %v3917 = vpop.permute.xlu0 %3916
      %3920 = vset.pattern.permute.xlu0 0
      %3921 = vperm.xlu0 %3920, %v3071
      %v3922 = vpop.permute.xlu0 %3921
      %3925 = vset.pattern.permute.xlu0 0
      %3926 = vperm.xlu0 %3925, %v3072
      %v3927 = vpop.permute.xlu0 %3926
      %3930 = vset.pattern.permute.xlu0 0
      %3931 = vperm.xlu0 %3930, %v3073
      %v3932 = vpop.permute.xlu0 %3931
      %3935 = vset.pattern.permute.xlu0 0
      %3936 = vperm.xlu0 %3935, %v3074
      %v3937 = vpop.permute.xlu0 %3936
      %3940 = vset.pattern.permute.xlu0 0
      %3941 = vperm.xlu0 %3940, %v3075
      %v3942 = vpop.permute.xlu0 %3941
      %3945 = vset.pattern.permute.xlu0 0
      %3946 = vperm.xlu0 %3945, %v3076
      %v3947 = vpop.permute.xlu0 %3946
      %3950 = vset.pattern.permute.xlu0 0
      %3951 = vperm.xlu0 %3950, %v3077
      %v3952 = vpop.permute.xlu0 %3951
      %3955 = vset.pattern.permute.xlu0 0
      %3956 = vperm.xlu0 %3955, %v3078
      %v3957 = vpop.permute.xlu0 %3956
      %3960 = vset.pattern.permute.xlu0 0
      %3961 = vperm.xlu0 %3960, %v3079
      %v3962 = vpop.permute.xlu0 %3961
      %3965 = vset.pattern.permute.xlu0 0
      %3966 = vperm.xlu0 %3965, %v3080
      %v3967 = vpop.permute.xlu0 %3966
      %3970 = vset.pattern.permute.xlu0 0
      %3971 = vperm.xlu0 %3970, %v3081
      %v3972 = vpop.permute.xlu0 %3971
      %3975 = vset.pattern.permute.xlu0 0
      %3976 = vperm.xlu0 %3975, %v3082
      %v3977 = vpop.permute.xlu0 %3976
      %3980 = vset.pattern.permute.xlu0 0
      %3981 = vperm.xlu0 %3980, %v3083
      %v3982 = vpop.permute.xlu0 %3981
      %3985 = vset.pattern.permute.xlu0 0
      %3986 = vperm.xlu0 %3985, %v3084
      %v3987 = vpop.permute.xlu0 %3986
      %3990 = vset.pattern.permute.xlu0 0
      %3991 = vperm.xlu0 %3990, %v3085
      %v3992 = vpop.permute.xlu0 %3991
      %3995 = vset.pattern.permute.xlu0 0
      %3996 = vperm.xlu0 %3995, %v3086
      %v3997 = vpop.permute.xlu0 %3996
      %4000 = vset.pattern.permute.xlu0 0
      %4001 = vperm.xlu0 %4000, %v3087
      %v4002 = vpop.permute.xlu0 %4001
      %4005 = vset.pattern.permute.xlu0 0
      %4006 = vperm.xlu0 %4005, %v3088
      %v4007 = vpop.permute.xlu0 %4006
      %4010 = vset.pattern.permute.xlu0 0
      %4011 = vperm.xlu0 %4010, %v3089
      %v4012 = vpop.permute.xlu0 %4011
      %4015 = vset.pattern.permute.xlu0 0
      %4016 = vperm.xlu0 %4015, %v3090
      %v4017 = vpop.permute.xlu0 %4016
      %4020 = vset.pattern.permute.xlu0 0
      %4021 = vperm.xlu0 %4020, %v3091
      %v4022 = vpop.permute.xlu0 %4021
      %4025 = vset.pattern.permute.xlu0 0
      %4026 = vperm.xlu0 %4025, %v3092
      %v4027 = vpop.permute.xlu0 %4026
      %4030 = vset.pattern.permute.xlu0 0
      %4031 = vperm.xlu0 %4030, %v3093
      %v4032 = vpop.permute.xlu0 %4031
      %4035 = vset.pattern.permute.xlu0 0
      %4036 = vperm.xlu0 %4035, %v3094
      %v4037 = vpop.permute.xlu0 %4036
      %4040 = vset.pattern.permute.xlu0 0
      %4041 = vperm.xlu0 %4040, %v3095
      %v4042 = vpop.permute.xlu0 %4041
      %4045 = vset.pattern.permute.xlu0 0
      %4046 = vperm.xlu0 %4045, %v3096
      %v4047 = vpop.permute.xlu0 %4046
      %4050 = vset.pattern.permute.xlu0 0
      %4051 = vperm.xlu0 %4050, %v3097
      %v4052 = vpop.permute.xlu0 %4051
      %4055 = vset.pattern.permute.xlu0 0
      %4056 = vperm.xlu0 %4055, %v3098
      %v4057 = vpop.permute.xlu0 %4056
      %v4059 = vmul.f32 %v1179, %v3102
      %v4060 = vmul.f32 %v1180, %v3107
      %v4061 = vmul.f32 %v1181, %v3112
      %v4062 = vmul.f32 %v1182, %v3117
      %v4063 = vmul.f32 %v1183, %v3122
      %v4064 = vmul.f32 %v1184, %v3127
      %v4065 = vmul.f32 %v1185, %v3132
      %v4066 = vmul.f32 %v1186, %v3137
      %v4067 = vmul.f32 %v1187, %v3142
      %v4068 = vmul.f32 %v1188, %v3147
      %v4069 = vmul.f32 %v1189, %v3152
      %v4070 = vmul.f32 %v1190, %v3157
      %v4071 = vmul.f32 %v1191, %v3162
      %v4072 = vmul.f32 %v1192, %v3167
      %v4073 = vmul.f32 %v1193, %v3172
      %v4074 = vmul.f32 %v1194, %v3177
      %v4075 = vmul.f32 %v1195, %v3182
      %v4076 = vmul.f32 %v1196, %v3187
      %v4077 = vmul.f32 %v1197, %v3192
      %v4078 = vmul.f32 %v1198, %v3197
      %v4079 = vmul.f32 %v1199, %v3202
      %v4080 = vmul.f32 %v1200, %v3207
      %v4081 = vmul.f32 %v1201, %v3212
      %v4082 = vmul.f32 %v1202, %v3217
      %v4083 = vmul.f32 %v1203, %v3222
      %v4084 = vmul.f32 %v1204, %v3227
      %v4085 = vmul.f32 %v1205, %v3232
      %v4086 = vmul.f32 %v1206, %v3237
      %v4087 = vmul.f32 %v1207, %v3242
      %v4088 = vmul.f32 %v1208, %v3247
      %v4089 = vmul.f32 %v1209, %v3252
      %v4090 = vmul.f32 %v1210, %v3257
      %v4091 = vmul.f32 %v1211, %v3262
      %v4092 = vmul.f32 %v1212, %v3267
      %v4093 = vmul.f32 %v1213, %v3272
      %v4094 = vmul.f32 %v1214, %v3277
      %v4095 = vmul.f32 %v1215, %v3282
      %v4096 = vmul.f32 %v1216, %v3287
      %v4097 = vmul.f32 %v1217, %v3292
      %v4098 = vmul.f32 %v1218, %v3297
      %v4099 = vmul.f32 %v1219, %v3302
      %v4100 = vmul.f32 %v1220, %v3307
      %v4101 = vmul.f32 %v1221, %v3312
      %v4102 = vmul.f32 %v1222, %v3317
      %v4103 = vmul.f32 %v1223, %v3322
      %v4104 = vmul.f32 %v1224, %v3327
      %v4105 = vmul.f32 %v1225, %v3332
      %v4106 = vmul.f32 %v1226, %v3337
      %v4107 = vmul.f32 %v1227, %v3342
      %v4108 = vmul.f32 %v1228, %v3347
      %v4109 = vmul.f32 %v1229, %v3352
      %v4110 = vmul.f32 %v1230, %v3357
      %v4111 = vmul.f32 %v1231, %v3362
      %v4112 = vmul.f32 %v1232, %v3367
      %v4113 = vmul.f32 %v1233, %v3372
      %v4114 = vmul.f32 %v1234, %v3377
      %v4115 = vmul.f32 %v1235, %v3382
      %v4116 = vmul.f32 %v1236, %v3387
      %v4117 = vmul.f32 %v1237, %v3392
      %v4118 = vmul.f32 %v1238, %v3397
      %v4119 = vmul.f32 %v1239, %v3402
      %v4120 = vmul.f32 %v1240, %v3407
      %v4121 = vmul.f32 %v1241, %v3412
      %v4122 = vmul.f32 %v1242, %v3417
      %v4123 = vmul.f32 %v1243, %v3422
      %v4124 = vmul.f32 %v1244, %v3427
      %v4125 = vmul.f32 %v1245, %v3432
      %v4126 = vmul.f32 %v1246, %v3437
      %v4127 = vmul.f32 %v1247, %v3442
      %v4128 = vmul.f32 %v1248, %v3447
      %v4129 = vmul.f32 %v1249, %v3452
      %v4130 = vmul.f32 %v1250, %v3457
      %v4131 = vmul.f32 %v1251, %v3462
      %v4132 = vmul.f32 %v1252, %v3467
      %v4133 = vmul.f32 %v1253, %v3472
      %v4134 = vmul.f32 %v1254, %v3477
      %v4135 = vmul.f32 %v1255, %v3482
      %v4136 = vmul.f32 %v1256, %v3487
      %v4137 = vmul.f32 %v1257, %v3492
      %v4138 = vmul.f32 %v1258, %v3497
      %v4139 = vmul.f32 %v1259, %v3502
      %v4140 = vmul.f32 %v1260, %v3507
      %v4141 = vmul.f32 %v1261, %v3512
      %v4142 = vmul.f32 %v1262, %v3517
      %v4143 = vmul.f32 %v1263, %v3522
      %v4144 = vmul.f32 %v1264, %v3527
      %v4145 = vmul.f32 %v1265, %v3532
      %v4146 = vmul.f32 %v1266, %v3537
      %v4147 = vmul.f32 %v1267, %v3542
      %v4148 = vmul.f32 %v1268, %v3547
      %v4149 = vmul.f32 %v1269, %v3552
      %v4150 = vmul.f32 %v1270, %v3557
      %v4151 = vmul.f32 %v1271, %v3562
      %v4152 = vmul.f32 %v1272, %v3567
      %v4153 = vmul.f32 %v1273, %v3572
      %v4154 = vmul.f32 %v1274, %v3577
      %v4155 = vmul.f32 %v1275, %v3582
      %v4156 = vmul.f32 %v1276, %v3587
      %v4157 = vmul.f32 %v1277, %v3592
      %v4158 = vmul.f32 %v1278, %v3597
      %v4159 = vmul.f32 %v1279, %v3602
      %v4160 = vmul.f32 %v1280, %v3607
      %v4161 = vmul.f32 %v1281, %v3612
      %v4162 = vmul.f32 %v1282, %v3617
      %v4163 = vmul.f32 %v1283, %v3622
      %v4164 = vmul.f32 %v1284, %v3627
      %v4165 = vmul.f32 %v1285, %v3632
      %v4166 = vmul.f32 %v1286, %v3637
      %v4167 = vmul.f32 %v1287, %v3642
      %v4168 = vmul.f32 %v1288, %v3647
      %v4169 = vmul.f32 %v1289, %v3652
      %v4170 = vmul.f32 %v1290, %v3657
      %v4171 = vmul.f32 %v1291, %v3662
      %v4172 = vmul.f32 %v1292, %v3667
      %v4173 = vmul.f32 %v1293, %v3672
      %v4174 = vmul.f32 %v1294, %v3677
      %v4175 = vmul.f32 %v1295, %v3682
      %v4176 = vmul.f32 %v1296, %v3687
      %v4177 = vmul.f32 %v1297, %v3692
      %v4178 = vmul.f32 %v1298, %v3697
      %v4179 = vmul.f32 %v1299, %v3702
      %v4180 = vmul.f32 %v1300, %v3707
      %v4181 = vmul.f32 %v1301, %v3712
      %v4182 = vmul.f32 %v1302, %v3717
      %v4183 = vmul.f32 %v1303, %v3722
      %v4184 = vmul.f32 %v1304, %v3727
      %v4185 = vmul.f32 %v1305, %v3732
      %v4186 = vmul.f32 %v1306, %v3737
      %v4187 = vmul.f32 %v1307, %v3742
      %v4188 = vmul.f32 %v1308, %v3747
      %v4189 = vmul.f32 %v1309, %v3752
      %v4190 = vmul.f32 %v1310, %v3757
      %v4191 = vmul.f32 %v1311, %v3762
      %v4192 = vmul.f32 %v1312, %v3767
      %v4193 = vmul.f32 %v1313, %v3772
      %v4194 = vmul.f32 %v1314, %v3777
      %v4195 = vmul.f32 %v1315, %v3782
      %v4196 = vmul.f32 %v1316, %v3787
      %v4197 = vmul.f32 %v1317, %v3792
      %v4198 = vmul.f32 %v1318, %v3797
      %v4199 = vmul.f32 %v1319, %v3802
      %v4200 = vmul.f32 %v1320, %v3807
      %v4201 = vmul.f32 %v1321, %v3812
      %v4202 = vmul.f32 %v1322, %v3817
      %v4203 = vmul.f32 %v1323, %v3822
      %v4204 = vmul.f32 %v1324, %v3827
      %v4205 = vmul.f32 %v1325, %v3832
      %v4206 = vmul.f32 %v1326, %v3837
      %v4207 = vmul.f32 %v1327, %v3842
      %v4208 = vmul.f32 %v1328, %v3847
      %v4209 = vmul.f32 %v1329, %v3852
      %v4210 = vmul.f32 %v1330, %v3857
      %v4211 = vmul.f32 %v1331, %v3862
      %v4212 = vmul.f32 %v1332, %v3867
      %v4213 = vmul.f32 %v1333, %v3872
      %v4214 = vmul.f32 %v1334, %v3877
      %v4215 = vmul.f32 %v1335, %v3882
      %v4216 = vmul.f32 %v1336, %v3887
      %v4217 = vmul.f32 %v1337, %v3892
      %v4218 = vmul.f32 %v1338, %v3897
      %v4219 = vmul.f32 %v1339, %v3902
      %v4220 = vmul.f32 %v1340, %v3907
      %v4221 = vmul.f32 %v1341, %v3912
      %v4222 = vmul.f32 %v1342, %v3917
      %v4223 = vmul.f32 %v1343, %v3922
      %v4224 = vmul.f32 %v1344, %v3927
      %v4225 = vmul.f32 %v1345, %v3932
      %v4226 = vmul.f32 %v1346, %v3937
      %v4227 = vmul.f32 %v1347, %v3942
      %v4228 = vmul.f32 %v1348, %v3947
      %v4229 = vmul.f32 %v1349, %v3952
      %v4230 = vmul.f32 %v1350, %v3957
      %v4231 = vmul.f32 %v1351, %v3962
      %v4232 = vmul.f32 %v1352, %v3967
      %v4233 = vmul.f32 %v1353, %v3972
      %v4234 = vmul.f32 %v1354, %v3977
      %v4235 = vmul.f32 %v1355, %v3982
      %v4236 = vmul.f32 %v1356, %v3987
      %v4237 = vmul.f32 %v1357, %v3992
      %v4238 = vmul.f32 %v1358, %v3997
      %v4239 = vmul.f32 %v1359, %v4002
      %v4240 = vmul.f32 %v1360, %v4007
      %v4241 = vmul.f32 %v1361, %v4012
      %v4242 = vmul.f32 %v1362, %v4017
      %v4243 = vmul.f32 %v1363, %v4022
      %v4244 = vmul.f32 %v1364, %v4027
      %v4245 = vmul.f32 %v1365, %v4032
      %v4246 = vmul.f32 %v1366, %v4037
      %v4247 = vmul.f32 %v1367, %v4042
      %v4248 = vmul.f32 %v1368, %v4047
      %v4249 = vmul.f32 %v1369, %v4052
      %v4250 = vmul.f32 %v1370, %v4057
      %v4251 = vld [vmem:[%s210] sm:$0xff]
      %v4252 = vld [vmem:[%s210 + $0x8] sm:$0xff]
      %v4253 = vld [vmem:[%s210 + $0x10] sm:$0xff]
      %v4254 = vld [vmem:[%s210 + $0x18] sm:$0xff]
      %v4255 = vld [vmem:[%s210 + $0x20] sm:$0xff]
      %v4256 = vld [vmem:[%s210 + $0x28] sm:$0xff]
      %v4257 = vld [vmem:[%s210 + $0x30] sm:$0xff]
      %v4258 = vld [vmem:[%s210 + $0x38] sm:$0xff]
      %v4259 = vld [vmem:[%s210 + $0x40] sm:$0xff]
      %v4260 = vld [vmem:[%s210 + $0x48] sm:$0xff]
      %v4261 = vld [vmem:[%s210 + $0x50] sm:$0xff]
      %v4262 = vld [vmem:[%s210 + $0x58] sm:$0xff]
      %v4263 = vld [vmem:[%s210 + $0x60] sm:$0xff]
      %v4264 = vld [vmem:[%s210 + $0x68] sm:$0xff]
      %v4265 = vld [vmem:[%s210 + $0x70] sm:$0xff]
      %v4266 = vld [vmem:[%s210 + $0x78] sm:$0xff]
      %v4267 = vld [vmem:[%s210 + $0x80] sm:$0xff]
      %v4268 = vld [vmem:[%s210 + $0x88] sm:$0xff]
      %v4269 = vld [vmem:[%s210 + $0x90] sm:$0xff]
      %v4270 = vld [vmem:[%s210 + $0x98] sm:$0xff]
      %v4271 = vld [vmem:[%s210 + $0xa0] sm:$0xff]
      %v4272 = vld [vmem:[%s210 + $0xa8] sm:$0xff]
      %v4273 = vld [vmem:[%s210 + $0xb0] sm:$0xff]
      %v4274 = vld [vmem:[%s210 + $0xb8] sm:$0xff]
      %v4275 = vld [vmem:[%s210 + $0xc0] sm:$0xff]
      %v4276 = vld [vmem:[%s210 + $0xc8] sm:$0xff]
      %v4277 = vld [vmem:[%s210 + $0xd0] sm:$0xff]
      %v4278 = vld [vmem:[%s210 + $0xd8] sm:$0xff]
      %v4279 = vld [vmem:[%s210 + $0xe0] sm:$0xff]
      %v4280 = vld [vmem:[%s210 + $0xe8] sm:$0xff]
      %v4281 = vld [vmem:[%s210 + $0xf0] sm:$0xff]
      %v4282 = vld [vmem:[%s210 + $0xf8] sm:$0xff]
      %v4283 = vld [vmem:[%s210 + $0x100] sm:$0xff]
      %v4284 = vld [vmem:[%s210 + $0x108] sm:$0xff]
      %v4285 = vld [vmem:[%s210 + $0x110] sm:$0xff]
      %v4286 = vld [vmem:[%s210 + $0x118] sm:$0xff]
      %v4287 = vld [vmem:[%s210 + $0x120] sm:$0xff]
      %v4288 = vld [vmem:[%s210 + $0x128] sm:$0xff]
      %v4289 = vld [vmem:[%s210 + $0x130] sm:$0xff]
      %v4290 = vld [vmem:[%s210 + $0x138] sm:$0xff]
      %v4291 = vld [vmem:[%s210 + $0x140] sm:$0xff]
      %v4292 = vld [vmem:[%s210 + $0x148] sm:$0xff]
      %v4293 = vld [vmem:[%s210 + $0x150] sm:$0xff]
      %v4294 = vld [vmem:[%s210 + $0x158] sm:$0xff]
      %v4295 = vld [vmem:[%s210 + $0x160] sm:$0xff]
      %v4296 = vld [vmem:[%s210 + $0x168] sm:$0xff]
      %v4297 = vld [vmem:[%s210 + $0x170] sm:$0xff]
      %v4298 = vld [vmem:[%s210 + $0x178] sm:$0xff]
      %v4299 = vld [vmem:[%s210 + $0x180] sm:$0xff]
      %v4300 = vld [vmem:[%s210 + $0x188] sm:$0xff]
      %v4301 = vld [vmem:[%s210 + $0x190] sm:$0xff]
      %v4302 = vld [vmem:[%s210 + $0x198] sm:$0xff]
      %v4303 = vld [vmem:[%s210 + $0x1a0] sm:$0xff]
      %v4304 = vld [vmem:[%s210 + $0x1a8] sm:$0xff]
      %v4305 = vld [vmem:[%s210 + $0x1b0] sm:$0xff]
      %v4306 = vld [vmem:[%s210 + $0x1b8] sm:$0xff]
      %v4307 = vld [vmem:[%s210 + $0x1c0] sm:$0xff]
      %v4308 = vld [vmem:[%s210 + $0x1c8] sm:$0xff]
      %v4309 = vld [vmem:[%s210 + $0x1d0] sm:$0xff]
      %v4310 = vld [vmem:[%s210 + $0x1d8] sm:$0xff]
      %v4311 = vld [vmem:[%s210 + $0x1e0] sm:$0xff]
      %v4312 = vld [vmem:[%s210 + $0x1e8] sm:$0xff]
      %v4313 = vld [vmem:[%s210 + $0x1f0] sm:$0xff]
      %v4314 = vld [vmem:[%s210 + $0x1f8] sm:$0xff]
      %v4315 = vld [vmem:[%s210 + $0x200] sm:$0xff]
      %v4316 = vld [vmem:[%s210 + $0x208] sm:$0xff]
      %v4317 = vld [vmem:[%s210 + $0x210] sm:$0xff]
      %v4318 = vld [vmem:[%s210 + $0x218] sm:$0xff]
      %v4319 = vld [vmem:[%s210 + $0x220] sm:$0xff]
      %v4320 = vld [vmem:[%s210 + $0x228] sm:$0xff]
      %v4321 = vld [vmem:[%s210 + $0x230] sm:$0xff]
      %v4322 = vld [vmem:[%s210 + $0x238] sm:$0xff]
      %v4323 = vld [vmem:[%s210 + $0x240] sm:$0xff]
      %v4324 = vld [vmem:[%s210 + $0x248] sm:$0xff]
      %v4325 = vld [vmem:[%s210 + $0x250] sm:$0xff]
      %v4326 = vld [vmem:[%s210 + $0x258] sm:$0xff]
      %v4327 = vld [vmem:[%s210 + $0x260] sm:$0xff]
      %v4328 = vld [vmem:[%s210 + $0x268] sm:$0xff]
      %v4329 = vld [vmem:[%s210 + $0x270] sm:$0xff]
      %v4330 = vld [vmem:[%s210 + $0x278] sm:$0xff]
      %v4331 = vld [vmem:[%s210 + $0x280] sm:$0xff]
      %v4332 = vld [vmem:[%s210 + $0x288] sm:$0xff]
      %v4333 = vld [vmem:[%s210 + $0x290] sm:$0xff]
      %v4334 = vld [vmem:[%s210 + $0x298] sm:$0xff]
      %v4335 = vld [vmem:[%s210 + $0x2a0] sm:$0xff]
      %v4336 = vld [vmem:[%s210 + $0x2a8] sm:$0xff]
      %v4337 = vld [vmem:[%s210 + $0x2b0] sm:$0xff]
      %v4338 = vld [vmem:[%s210 + $0x2b8] sm:$0xff]
      %v4339 = vld [vmem:[%s210 + $0x2c0] sm:$0xff]
      %v4340 = vld [vmem:[%s210 + $0x2c8] sm:$0xff]
      %v4341 = vld [vmem:[%s210 + $0x2d0] sm:$0xff]
      %v4342 = vld [vmem:[%s210 + $0x2d8] sm:$0xff]
      %v4343 = vld [vmem:[%s210 + $0x2e0] sm:$0xff]
      %v4344 = vld [vmem:[%s210 + $0x2e8] sm:$0xff]
      %v4345 = vld [vmem:[%s210 + $0x2f0] sm:$0xff]
      %v4346 = vld [vmem:[%s210 + $0x2f8] sm:$0xff]
      %v4347 = vld [vmem:[%s210 + $0x300] sm:$0xff]
      %v4348 = vld [vmem:[%s210 + $0x308] sm:$0xff]
      %v4349 = vld [vmem:[%s210 + $0x310] sm:$0xff]
      %v4350 = vld [vmem:[%s210 + $0x318] sm:$0xff]
      %v4351 = vld [vmem:[%s210 + $0x320] sm:$0xff]
      %v4352 = vld [vmem:[%s210 + $0x328] sm:$0xff]
      %v4353 = vld [vmem:[%s210 + $0x330] sm:$0xff]
      %v4354 = vld [vmem:[%s210 + $0x338] sm:$0xff]
      %v4355 = vld [vmem:[%s210 + $0x340] sm:$0xff]
      %v4356 = vld [vmem:[%s210 + $0x348] sm:$0xff]
      %v4357 = vld [vmem:[%s210 + $0x350] sm:$0xff]
      %v4358 = vld [vmem:[%s210 + $0x358] sm:$0xff]
      %v4359 = vld [vmem:[%s210 + $0x360] sm:$0xff]
      %v4360 = vld [vmem:[%s210 + $0x368] sm:$0xff]
      %v4361 = vld [vmem:[%s210 + $0x370] sm:$0xff]
      %v4362 = vld [vmem:[%s210 + $0x378] sm:$0xff]
      %v4363 = vld [vmem:[%s210 + $0x380] sm:$0xff]
      %v4364 = vld [vmem:[%s210 + $0x388] sm:$0xff]
      %v4365 = vld [vmem:[%s210 + $0x390] sm:$0xff]
      %v4366 = vld [vmem:[%s210 + $0x398] sm:$0xff]
      %v4367 = vld [vmem:[%s210 + $0x3a0] sm:$0xff]
      %v4368 = vld [vmem:[%s210 + $0x3a8] sm:$0xff]
      %v4369 = vld [vmem:[%s210 + $0x3b0] sm:$0xff]
      %v4370 = vld [vmem:[%s210 + $0x3b8] sm:$0xff]
      %v4371 = vld [vmem:[%s210 + $0x3c0] sm:$0xff]
      %v4372 = vld [vmem:[%s210 + $0x3c8] sm:$0xff]
      %v4373 = vld [vmem:[%s210 + $0x3d0] sm:$0xff]
      %v4374 = vld [vmem:[%s210 + $0x3d8] sm:$0xff]
      %v4375 = vld [vmem:[%s210 + $0x3e0] sm:$0xff]
      %v4376 = vld [vmem:[%s210 + $0x3e8] sm:$0xff]
      %v4377 = vld [vmem:[%s210 + $0x3f0] sm:$0xff]
      %v4378 = vld [vmem:[%s210 + $0x3f8] sm:$0xff]
      %v4379 = vld [vmem:[%s210 + $0x400] sm:$0xff]
      %v4380 = vld [vmem:[%s210 + $0x408] sm:$0xff]
      %v4381 = vld [vmem:[%s210 + $0x410] sm:$0xff]
      %v4382 = vld [vmem:[%s210 + $0x418] sm:$0xff]
      %v4383 = vld [vmem:[%s210 + $0x420] sm:$0xff]
      %v4384 = vld [vmem:[%s210 + $0x428] sm:$0xff]
      %v4385 = vld [vmem:[%s210 + $0x430] sm:$0xff]
      %v4386 = vld [vmem:[%s210 + $0x438] sm:$0xff]
      %v4387 = vld [vmem:[%s210 + $0x440] sm:$0xff]
      %v4388 = vld [vmem:[%s210 + $0x448] sm:$0xff]
      %v4389 = vld [vmem:[%s210 + $0x450] sm:$0xff]
      %v4390 = vld [vmem:[%s210 + $0x458] sm:$0xff]
      %v4391 = vld [vmem:[%s210 + $0x460] sm:$0xff]
      %v4392 = vld [vmem:[%s210 + $0x468] sm:$0xff]
      %v4393 = vld [vmem:[%s210 + $0x470] sm:$0xff]
      %v4394 = vld [vmem:[%s210 + $0x478] sm:$0xff]
      %v4395 = vld [vmem:[%s210 + $0x480] sm:$0xff]
      %v4396 = vld [vmem:[%s210 + $0x488] sm:$0xff]
      %v4397 = vld [vmem:[%s210 + $0x490] sm:$0xff]
      %v4398 = vld [vmem:[%s210 + $0x498] sm:$0xff]
      %v4399 = vld [vmem:[%s210 + $0x4a0] sm:$0xff]
      %v4400 = vld [vmem:[%s210 + $0x4a8] sm:$0xff]
      %v4401 = vld [vmem:[%s210 + $0x4b0] sm:$0xff]
      %v4402 = vld [vmem:[%s210 + $0x4b8] sm:$0xff]
      %v4403 = vld [vmem:[%s210 + $0x4c0] sm:$0xff]
      %v4404 = vld [vmem:[%s210 + $0x4c8] sm:$0xff]
      %v4405 = vld [vmem:[%s210 + $0x4d0] sm:$0xff]
      %v4406 = vld [vmem:[%s210 + $0x4d8] sm:$0xff]
      %v4407 = vld [vmem:[%s210 + $0x4e0] sm:$0xff]
      %v4408 = vld [vmem:[%s210 + $0x4e8] sm:$0xff]
      %v4409 = vld [vmem:[%s210 + $0x4f0] sm:$0xff]
      %v4410 = vld [vmem:[%s210 + $0x4f8] sm:$0xff]
      %v4411 = vld [vmem:[%s210 + $0x500] sm:$0xff]
      %v4412 = vld [vmem:[%s210 + $0x508] sm:$0xff]
      %v4413 = vld [vmem:[%s210 + $0x510] sm:$0xff]
      %v4414 = vld [vmem:[%s210 + $0x518] sm:$0xff]
      %v4415 = vld [vmem:[%s210 + $0x520] sm:$0xff]
      %v4416 = vld [vmem:[%s210 + $0x528] sm:$0xff]
      %v4417 = vld [vmem:[%s210 + $0x530] sm:$0xff]
      %v4418 = vld [vmem:[%s210 + $0x538] sm:$0xff]
      %v4419 = vld [vmem:[%s210 + $0x540] sm:$0xff]
      %v4420 = vld [vmem:[%s210 + $0x548] sm:$0xff]
      %v4421 = vld [vmem:[%s210 + $0x550] sm:$0xff]
      %v4422 = vld [vmem:[%s210 + $0x558] sm:$0xff]
      %v4423 = vld [vmem:[%s210 + $0x560] sm:$0xff]
      %v4424 = vld [vmem:[%s210 + $0x568] sm:$0xff]
      %v4425 = vld [vmem:[%s210 + $0x570] sm:$0xff]
      %v4426 = vld [vmem:[%s210 + $0x578] sm:$0xff]
      %v4427 = vld [vmem:[%s210 + $0x580] sm:$0xff]
      %v4428 = vld [vmem:[%s210 + $0x588] sm:$0xff]
      %v4429 = vld [vmem:[%s210 + $0x590] sm:$0xff]
      %v4430 = vld [vmem:[%s210 + $0x598] sm:$0xff]
      %v4431 = vld [vmem:[%s210 + $0x5a0] sm:$0xff]
      %v4432 = vld [vmem:[%s210 + $0x5a8] sm:$0xff]
      %v4433 = vld [vmem:[%s210 + $0x5b0] sm:$0xff]
      %v4434 = vld [vmem:[%s210 + $0x5b8] sm:$0xff]
      %v4435 = vld [vmem:[%s210 + $0x5c0] sm:$0xff]
      %v4436 = vld [vmem:[%s210 + $0x5c8] sm:$0xff]
      %v4437 = vld [vmem:[%s210 + $0x5d0] sm:$0xff]
      %v4438 = vld [vmem:[%s210 + $0x5d8] sm:$0xff]
      %v4439 = vld [vmem:[%s210 + $0x5e0] sm:$0xff]
      %v4440 = vld [vmem:[%s210 + $0x5e8] sm:$0xff]
      %v4441 = vld [vmem:[%s210 + $0x5f0] sm:$0xff]
      %v4442 = vld [vmem:[%s210 + $0x5f8] sm:$0xff]
      %4444 = vset.pattern.permute.xlu0 0
      %4445 = vperm.xlu0 %4444, %v4251
      %v4446 = vpop.permute.xlu0 %4445
      %4449 = vset.pattern.permute.xlu0 0
      %4450 = vperm.xlu0 %4449, %v4252
      %v4451 = vpop.permute.xlu0 %4450
      %4454 = vset.pattern.permute.xlu0 0
      %4455 = vperm.xlu0 %4454, %v4253
      %v4456 = vpop.permute.xlu0 %4455
      %4459 = vset.pattern.permute.xlu0 0
      %4460 = vperm.xlu0 %4459, %v4254
      %v4461 = vpop.permute.xlu0 %4460
      %4464 = vset.pattern.permute.xlu0 0
      %4465 = vperm.xlu0 %4464, %v4255
      %v4466 = vpop.permute.xlu0 %4465
      %4469 = vset.pattern.permute.xlu0 0
      %4470 = vperm.xlu0 %4469, %v4256
      %v4471 = vpop.permute.xlu0 %4470
      %4474 = vset.pattern.permute.xlu0 0
      %4475 = vperm.xlu0 %4474, %v4257
      %v4476 = vpop.permute.xlu0 %4475
      %4479 = vset.pattern.permute.xlu0 0
      %4480 = vperm.xlu0 %4479, %v4258
      %v4481 = vpop.permute.xlu0 %4480
      %4484 = vset.pattern.permute.xlu0 0
      %4485 = vperm.xlu0 %4484, %v4259
      %v4486 = vpop.permute.xlu0 %4485
      %4489 = vset.pattern.permute.xlu0 0
      %4490 = vperm.xlu0 %4489, %v4260
      %v4491 = vpop.permute.xlu0 %4490
      %4494 = vset.pattern.permute.xlu0 0
      %4495 = vperm.xlu0 %4494, %v4261
      %v4496 = vpop.permute.xlu0 %4495
      %4499 = vset.pattern.permute.xlu0 0
      %4500 = vperm.xlu0 %4499, %v4262
      %v4501 = vpop.permute.xlu0 %4500
      %4504 = vset.pattern.permute.xlu0 0
      %4505 = vperm.xlu0 %4504, %v4263
      %v4506 = vpop.permute.xlu0 %4505
      %4509 = vset.pattern.permute.xlu0 0
      %4510 = vperm.xlu0 %4509, %v4264
      %v4511 = vpop.permute.xlu0 %4510
      %4514 = vset.pattern.permute.xlu0 0
      %4515 = vperm.xlu0 %4514, %v4265
      %v4516 = vpop.permute.xlu0 %4515
      %4519 = vset.pattern.permute.xlu0 0
      %4520 = vperm.xlu0 %4519, %v4266
      %v4521 = vpop.permute.xlu0 %4520
      %4524 = vset.pattern.permute.xlu0 0
      %4525 = vperm.xlu0 %4524, %v4267
      %v4526 = vpop.permute.xlu0 %4525
      %4529 = vset.pattern.permute.xlu0 0
      %4530 = vperm.xlu0 %4529, %v4268
      %v4531 = vpop.permute.xlu0 %4530
      %4534 = vset.pattern.permute.xlu0 0
      %4535 = vperm.xlu0 %4534, %v4269
      %v4536 = vpop.permute.xlu0 %4535
      %4539 = vset.pattern.permute.xlu0 0
      %4540 = vperm.xlu0 %4539, %v4270
      %v4541 = vpop.permute.xlu0 %4540
      %4544 = vset.pattern.permute.xlu0 0
      %4545 = vperm.xlu0 %4544, %v4271
      %v4546 = vpop.permute.xlu0 %4545
      %4549 = vset.pattern.permute.xlu0 0
      %4550 = vperm.xlu0 %4549, %v4272
      %v4551 = vpop.permute.xlu0 %4550
      %4554 = vset.pattern.permute.xlu0 0
      %4555 = vperm.xlu0 %4554, %v4273
      %v4556 = vpop.permute.xlu0 %4555
      %4559 = vset.pattern.permute.xlu0 0
      %4560 = vperm.xlu0 %4559, %v4274
      %v4561 = vpop.permute.xlu0 %4560
      %4564 = vset.pattern.permute.xlu0 0
      %4565 = vperm.xlu0 %4564, %v4275
      %v4566 = vpop.permute.xlu0 %4565
      %4569 = vset.pattern.permute.xlu0 0
      %4570 = vperm.xlu0 %4569, %v4276
      %v4571 = vpop.permute.xlu0 %4570
      %4574 = vset.pattern.permute.xlu0 0
      %4575 = vperm.xlu0 %4574, %v4277
      %v4576 = vpop.permute.xlu0 %4575
      %4579 = vset.pattern.permute.xlu0 0
      %4580 = vperm.xlu0 %4579, %v4278
      %v4581 = vpop.permute.xlu0 %4580
      %4584 = vset.pattern.permute.xlu0 0
      %4585 = vperm.xlu0 %4584, %v4279
      %v4586 = vpop.permute.xlu0 %4585
      %4589 = vset.pattern.permute.xlu0 0
      %4590 = vperm.xlu0 %4589, %v4280
      %v4591 = vpop.permute.xlu0 %4590
      %4594 = vset.pattern.permute.xlu0 0
      %4595 = vperm.xlu0 %4594, %v4281
      %v4596 = vpop.permute.xlu0 %4595
      %4599 = vset.pattern.permute.xlu0 0
      %4600 = vperm.xlu0 %4599, %v4282
      %v4601 = vpop.permute.xlu0 %4600
      %4604 = vset.pattern.permute.xlu0 0
      %4605 = vperm.xlu0 %4604, %v4283
      %v4606 = vpop.permute.xlu0 %4605
      %4609 = vset.pattern.permute.xlu0 0
      %4610 = vperm.xlu0 %4609, %v4284
      %v4611 = vpop.permute.xlu0 %4610
      %4614 = vset.pattern.permute.xlu0 0
      %4615 = vperm.xlu0 %4614, %v4285
      %v4616 = vpop.permute.xlu0 %4615
      %4619 = vset.pattern.permute.xlu0 0
      %4620 = vperm.xlu0 %4619, %v4286
      %v4621 = vpop.permute.xlu0 %4620
      %4624 = vset.pattern.permute.xlu0 0
      %4625 = vperm.xlu0 %4624, %v4287
      %v4626 = vpop.permute.xlu0 %4625
      %4629 = vset.pattern.permute.xlu0 0
      %4630 = vperm.xlu0 %4629, %v4288
      %v4631 = vpop.permute.xlu0 %4630
      %4634 = vset.pattern.permute.xlu0 0
      %4635 = vperm.xlu0 %4634, %v4289
      %v4636 = vpop.permute.xlu0 %4635
      %4639 = vset.pattern.permute.xlu0 0
      %4640 = vperm.xlu0 %4639, %v4290
      %v4641 = vpop.permute.xlu0 %4640
      %4644 = vset.pattern.permute.xlu0 0
      %4645 = vperm.xlu0 %4644, %v4291
      %v4646 = vpop.permute.xlu0 %4645
      %4649 = vset.pattern.permute.xlu0 0
      %4650 = vperm.xlu0 %4649, %v4292
      %v4651 = vpop.permute.xlu0 %4650
      %4654 = vset.pattern.permute.xlu0 0
      %4655 = vperm.xlu0 %4654, %v4293
      %v4656 = vpop.permute.xlu0 %4655
      %4659 = vset.pattern.permute.xlu0 0
      %4660 = vperm.xlu0 %4659, %v4294
      %v4661 = vpop.permute.xlu0 %4660
      %4664 = vset.pattern.permute.xlu0 0
      %4665 = vperm.xlu0 %4664, %v4295
      %v4666 = vpop.permute.xlu0 %4665
      %4669 = vset.pattern.permute.xlu0 0
      %4670 = vperm.xlu0 %4669, %v4296
      %v4671 = vpop.permute.xlu0 %4670
      %4674 = vset.pattern.permute.xlu0 0
      %4675 = vperm.xlu0 %4674, %v4297
      %v4676 = vpop.permute.xlu0 %4675
      %4679 = vset.pattern.permute.xlu0 0
      %4680 = vperm.xlu0 %4679, %v4298
      %v4681 = vpop.permute.xlu0 %4680
      %4684 = vset.pattern.permute.xlu0 0
      %4685 = vperm.xlu0 %4684, %v4299
      %v4686 = vpop.permute.xlu0 %4685
      %4689 = vset.pattern.permute.xlu0 0
      %4690 = vperm.xlu0 %4689, %v4300
      %v4691 = vpop.permute.xlu0 %4690
      %4694 = vset.pattern.permute.xlu0 0
      %4695 = vperm.xlu0 %4694, %v4301
      %v4696 = vpop.permute.xlu0 %4695
      %4699 = vset.pattern.permute.xlu0 0
      %4700 = vperm.xlu0 %4699, %v4302
      %v4701 = vpop.permute.xlu0 %4700
      %4704 = vset.pattern.permute.xlu0 0
      %4705 = vperm.xlu0 %4704, %v4303
      %v4706 = vpop.permute.xlu0 %4705
      %4709 = vset.pattern.permute.xlu0 0
      %4710 = vperm.xlu0 %4709, %v4304
      %v4711 = vpop.permute.xlu0 %4710
      %4714 = vset.pattern.permute.xlu0 0
      %4715 = vperm.xlu0 %4714, %v4305
      %v4716 = vpop.permute.xlu0 %4715
      %4719 = vset.pattern.permute.xlu0 0
      %4720 = vperm.xlu0 %4719, %v4306
      %v4721 = vpop.permute.xlu0 %4720
      %4724 = vset.pattern.permute.xlu0 0
      %4725 = vperm.xlu0 %4724, %v4307
      %v4726 = vpop.permute.xlu0 %4725
      %4729 = vset.pattern.permute.xlu0 0
      %4730 = vperm.xlu0 %4729, %v4308
      %v4731 = vpop.permute.xlu0 %4730
      %4734 = vset.pattern.permute.xlu0 0
      %4735 = vperm.xlu0 %4734, %v4309
      %v4736 = vpop.permute.xlu0 %4735
      %4739 = vset.pattern.permute.xlu0 0
      %4740 = vperm.xlu0 %4739, %v4310
      %v4741 = vpop.permute.xlu0 %4740
      %4744 = vset.pattern.permute.xlu0 0
      %4745 = vperm.xlu0 %4744, %v4311
      %v4746 = vpop.permute.xlu0 %4745
      %4749 = vset.pattern.permute.xlu0 0
      %4750 = vperm.xlu0 %4749, %v4312
      %v4751 = vpop.permute.xlu0 %4750
      %4754 = vset.pattern.permute.xlu0 0
      %4755 = vperm.xlu0 %4754, %v4313
      %v4756 = vpop.permute.xlu0 %4755
      %4759 = vset.pattern.permute.xlu0 0
      %4760 = vperm.xlu0 %4759, %v4314
      %v4761 = vpop.permute.xlu0 %4760
      %4764 = vset.pattern.permute.xlu0 0
      %4765 = vperm.xlu0 %4764, %v4315
      %v4766 = vpop.permute.xlu0 %4765
      %4769 = vset.pattern.permute.xlu0 0
      %4770 = vperm.xlu0 %4769, %v4316
      %v4771 = vpop.permute.xlu0 %4770
      %4774 = vset.pattern.permute.xlu0 0
      %4775 = vperm.xlu0 %4774, %v4317
      %v4776 = vpop.permute.xlu0 %4775
      %4779 = vset.pattern.permute.xlu0 0
      %4780 = vperm.xlu0 %4779, %v4318
      %v4781 = vpop.permute.xlu0 %4780
      %4784 = vset.pattern.permute.xlu0 0
      %4785 = vperm.xlu0 %4784, %v4319
      %v4786 = vpop.permute.xlu0 %4785
      %4789 = vset.pattern.permute.xlu0 0
      %4790 = vperm.xlu0 %4789, %v4320
      %v4791 = vpop.permute.xlu0 %4790
      %4794 = vset.pattern.permute.xlu0 0
      %4795 = vperm.xlu0 %4794, %v4321
      %v4796 = vpop.permute.xlu0 %4795
      %4799 = vset.pattern.permute.xlu0 0
      %4800 = vperm.xlu0 %4799, %v4322
      %v4801 = vpop.permute.xlu0 %4800
      %4804 = vset.pattern.permute.xlu0 0
      %4805 = vperm.xlu0 %4804, %v4323
      %v4806 = vpop.permute.xlu0 %4805
      %4809 = vset.pattern.permute.xlu0 0
      %4810 = vperm.xlu0 %4809, %v4324
      %v4811 = vpop.permute.xlu0 %4810
      %4814 = vset.pattern.permute.xlu0 0
      %4815 = vperm.xlu0 %4814, %v4325
      %v4816 = vpop.permute.xlu0 %4815
      %4819 = vset.pattern.permute.xlu0 0
      %4820 = vperm.xlu0 %4819, %v4326
      %v4821 = vpop.permute.xlu0 %4820
      %4824 = vset.pattern.permute.xlu0 0
      %4825 = vperm.xlu0 %4824, %v4327
      %v4826 = vpop.permute.xlu0 %4825
      %4829 = vset.pattern.permute.xlu0 0
      %4830 = vperm.xlu0 %4829, %v4328
      %v4831 = vpop.permute.xlu0 %4830
      %4834 = vset.pattern.permute.xlu0 0
      %4835 = vperm.xlu0 %4834, %v4329
      %v4836 = vpop.permute.xlu0 %4835
      %4839 = vset.pattern.permute.xlu0 0
      %4840 = vperm.xlu0 %4839, %v4330
      %v4841 = vpop.permute.xlu0 %4840
      %4844 = vset.pattern.permute.xlu0 0
      %4845 = vperm.xlu0 %4844, %v4331
      %v4846 = vpop.permute.xlu0 %4845
      %4849 = vset.pattern.permute.xlu0 0
      %4850 = vperm.xlu0 %4849, %v4332
      %v4851 = vpop.permute.xlu0 %4850
      %4854 = vset.pattern.permute.xlu0 0
      %4855 = vperm.xlu0 %4854, %v4333
      %v4856 = vpop.permute.xlu0 %4855
      %4859 = vset.pattern.permute.xlu0 0
      %4860 = vperm.xlu0 %4859, %v4334
      %v4861 = vpop.permute.xlu0 %4860
      %4864 = vset.pattern.permute.xlu0 0
      %4865 = vperm.xlu0 %4864, %v4335
      %v4866 = vpop.permute.xlu0 %4865
      %4869 = vset.pattern.permute.xlu0 0
      %4870 = vperm.xlu0 %4869, %v4336
      %v4871 = vpop.permute.xlu0 %4870
      %4874 = vset.pattern.permute.xlu0 0
      %4875 = vperm.xlu0 %4874, %v4337
      %v4876 = vpop.permute.xlu0 %4875
      %4879 = vset.pattern.permute.xlu0 0
      %4880 = vperm.xlu0 %4879, %v4338
      %v4881 = vpop.permute.xlu0 %4880
      %4884 = vset.pattern.permute.xlu0 0
      %4885 = vperm.xlu0 %4884, %v4339
      %v4886 = vpop.permute.xlu0 %4885
      %4889 = vset.pattern.permute.xlu0 0
      %4890 = vperm.xlu0 %4889, %v4340
      %v4891 = vpop.permute.xlu0 %4890
      %4894 = vset.pattern.permute.xlu0 0
      %4895 = vperm.xlu0 %4894, %v4341
      %v4896 = vpop.permute.xlu0 %4895
      %4899 = vset.pattern.permute.xlu0 0
      %4900 = vperm.xlu0 %4899, %v4342
      %v4901 = vpop.permute.xlu0 %4900
      %4904 = vset.pattern.permute.xlu0 0
      %4905 = vperm.xlu0 %4904, %v4343
      %v4906 = vpop.permute.xlu0 %4905
      %4909 = vset.pattern.permute.xlu0 0
      %4910 = vperm.xlu0 %4909, %v4344
      %v4911 = vpop.permute.xlu0 %4910
      %4914 = vset.pattern.permute.xlu0 0
      %4915 = vperm.xlu0 %4914, %v4345
      %v4916 = vpop.permute.xlu0 %4915
      %4919 = vset.pattern.permute.xlu0 0
      %4920 = vperm.xlu0 %4919, %v4346
      %v4921 = vpop.permute.xlu0 %4920
      %4924 = vset.pattern.permute.xlu0 0
      %4925 = vperm.xlu0 %4924, %v4347
      %v4926 = vpop.permute.xlu0 %4925
      %4929 = vset.pattern.permute.xlu0 0
      %4930 = vperm.xlu0 %4929, %v4348
      %v4931 = vpop.permute.xlu0 %4930
      %4934 = vset.pattern.permute.xlu0 0
      %4935 = vperm.xlu0 %4934, %v4349
      %v4936 = vpop.permute.xlu0 %4935
      %4939 = vset.pattern.permute.xlu0 0
      %4940 = vperm.xlu0 %4939, %v4350
      %v4941 = vpop.permute.xlu0 %4940
      %4944 = vset.pattern.permute.xlu0 0
      %4945 = vperm.xlu0 %4944, %v4351
      %v4946 = vpop.permute.xlu0 %4945
      %4949 = vset.pattern.permute.xlu0 0
      %4950 = vperm.xlu0 %4949, %v4352
      %v4951 = vpop.permute.xlu0 %4950
      %4954 = vset.pattern.permute.xlu0 0
      %4955 = vperm.xlu0 %4954, %v4353
      %v4956 = vpop.permute.xlu0 %4955
      %4959 = vset.pattern.permute.xlu0 0
      %4960 = vperm.xlu0 %4959, %v4354
      %v4961 = vpop.permute.xlu0 %4960
      %4964 = vset.pattern.permute.xlu0 0
      %4965 = vperm.xlu0 %4964, %v4355
      %v4966 = vpop.permute.xlu0 %4965
      %4969 = vset.pattern.permute.xlu0 0
      %4970 = vperm.xlu0 %4969, %v4356
      %v4971 = vpop.permute.xlu0 %4970
      %4974 = vset.pattern.permute.xlu0 0
      %4975 = vperm.xlu0 %4974, %v4357
      %v4976 = vpop.permute.xlu0 %4975
      %4979 = vset.pattern.permute.xlu0 0
      %4980 = vperm.xlu0 %4979, %v4358
      %v4981 = vpop.permute.xlu0 %4980
      %4984 = vset.pattern.permute.xlu0 0
      %4985 = vperm.xlu0 %4984, %v4359
      %v4986 = vpop.permute.xlu0 %4985
      %4989 = vset.pattern.permute.xlu0 0
      %4990 = vperm.xlu0 %4989, %v4360
      %v4991 = vpop.permute.xlu0 %4990
      %4994 = vset.pattern.permute.xlu0 0
      %4995 = vperm.xlu0 %4994, %v4361
      %v4996 = vpop.permute.xlu0 %4995
      %4999 = vset.pattern.permute.xlu0 0
      %5000 = vperm.xlu0 %4999, %v4362
      %v5001 = vpop.permute.xlu0 %5000
      %5004 = vset.pattern.permute.xlu0 0
      %5005 = vperm.xlu0 %5004, %v4363
      %v5006 = vpop.permute.xlu0 %5005
      %5009 = vset.pattern.permute.xlu0 0
      %5010 = vperm.xlu0 %5009, %v4364
      %v5011 = vpop.permute.xlu0 %5010
      %5014 = vset.pattern.permute.xlu0 0
      %5015 = vperm.xlu0 %5014, %v4365
      %v5016 = vpop.permute.xlu0 %5015
      %5019 = vset.pattern.permute.xlu0 0
      %5020 = vperm.xlu0 %5019, %v4366
      %v5021 = vpop.permute.xlu0 %5020
      %5024 = vset.pattern.permute.xlu0 0
      %5025 = vperm.xlu0 %5024, %v4367
      %v5026 = vpop.permute.xlu0 %5025
      %5029 = vset.pattern.permute.xlu0 0
      %5030 = vperm.xlu0 %5029, %v4368
      %v5031 = vpop.permute.xlu0 %5030
      %5034 = vset.pattern.permute.xlu0 0
      %5035 = vperm.xlu0 %5034, %v4369
      %v5036 = vpop.permute.xlu0 %5035
      %5039 = vset.pattern.permute.xlu0 0
      %5040 = vperm.xlu0 %5039, %v4370
      %v5041 = vpop.permute.xlu0 %5040
      %5044 = vset.pattern.permute.xlu0 0
      %5045 = vperm.xlu0 %5044, %v4371
      %v5046 = vpop.permute.xlu0 %5045
      %5049 = vset.pattern.permute.xlu0 0
      %5050 = vperm.xlu0 %5049, %v4372
      %v5051 = vpop.permute.xlu0 %5050
      %5054 = vset.pattern.permute.xlu0 0
      %5055 = vperm.xlu0 %5054, %v4373
      %v5056 = vpop.permute.xlu0 %5055
      %5059 = vset.pattern.permute.xlu0 0
      %5060 = vperm.xlu0 %5059, %v4374
      %v5061 = vpop.permute.xlu0 %5060
      %5064 = vset.pattern.permute.xlu0 0
      %5065 = vperm.xlu0 %5064, %v4375
      %v5066 = vpop.permute.xlu0 %5065
      %5069 = vset.pattern.permute.xlu0 0
      %5070 = vperm.xlu0 %5069, %v4376
      %v5071 = vpop.permute.xlu0 %5070
      %5074 = vset.pattern.permute.xlu0 0
      %5075 = vperm.xlu0 %5074, %v4377
      %v5076 = vpop.permute.xlu0 %5075
      %5079 = vset.pattern.permute.xlu0 0
      %5080 = vperm.xlu0 %5079, %v4378
      %v5081 = vpop.permute.xlu0 %5080
      %5084 = vset.pattern.permute.xlu0 0
      %5085 = vperm.xlu0 %5084, %v4379
      %v5086 = vpop.permute.xlu0 %5085
      %5089 = vset.pattern.permute.xlu0 0
      %5090 = vperm.xlu0 %5089, %v4380
      %v5091 = vpop.permute.xlu0 %5090
      %5094 = vset.pattern.permute.xlu0 0
      %5095 = vperm.xlu0 %5094, %v4381
      %v5096 = vpop.permute.xlu0 %5095
      %5099 = vset.pattern.permute.xlu0 0
      %5100 = vperm.xlu0 %5099, %v4382
      %v5101 = vpop.permute.xlu0 %5100
      %5104 = vset.pattern.permute.xlu0 0
      %5105 = vperm.xlu0 %5104, %v4383
      %v5106 = vpop.permute.xlu0 %5105
      %5109 = vset.pattern.permute.xlu0 0
      %5110 = vperm.xlu0 %5109, %v4384
      %v5111 = vpop.permute.xlu0 %5110
      %5114 = vset.pattern.permute.xlu0 0
      %5115 = vperm.xlu0 %5114, %v4385
      %v5116 = vpop.permute.xlu0 %5115
      %5119 = vset.pattern.permute.xlu0 0
      %5120 = vperm.xlu0 %5119, %v4386
      %v5121 = vpop.permute.xlu0 %5120
      %5124 = vset.pattern.permute.xlu0 0
      %5125 = vperm.xlu0 %5124, %v4387
      %v5126 = vpop.permute.xlu0 %5125
      %5129 = vset.pattern.permute.xlu0 0
      %5130 = vperm.xlu0 %5129, %v4388
      %v5131 = vpop.permute.xlu0 %5130
      %5134 = vset.pattern.permute.xlu0 0
      %5135 = vperm.xlu0 %5134, %v4389
      %v5136 = vpop.permute.xlu0 %5135
      %5139 = vset.pattern.permute.xlu0 0
      %5140 = vperm.xlu0 %5139, %v4390
      %v5141 = vpop.permute.xlu0 %5140
      %5144 = vset.pattern.permute.xlu0 0
      %5145 = vperm.xlu0 %5144, %v4391
      %v5146 = vpop.permute.xlu0 %5145
      %5149 = vset.pattern.permute.xlu0 0
      %5150 = vperm.xlu0 %5149, %v4392
      %v5151 = vpop.permute.xlu0 %5150
      %5154 = vset.pattern.permute.xlu0 0
      %5155 = vperm.xlu0 %5154, %v4393
      %v5156 = vpop.permute.xlu0 %5155
      %5159 = vset.pattern.permute.xlu0 0
      %5160 = vperm.xlu0 %5159, %v4394
      %v5161 = vpop.permute.xlu0 %5160
      %5164 = vset.pattern.permute.xlu0 0
      %5165 = vperm.xlu0 %5164, %v4395
      %v5166 = vpop.permute.xlu0 %5165
      %5169 = vset.pattern.permute.xlu0 0
      %5170 = vperm.xlu0 %5169, %v4396
      %v5171 = vpop.permute.xlu0 %5170
      %5174 = vset.pattern.permute.xlu0 0
      %5175 = vperm.xlu0 %5174, %v4397
      %v5176 = vpop.permute.xlu0 %5175
      %5179 = vset.pattern.permute.xlu0 0
      %5180 = vperm.xlu0 %5179, %v4398
      %v5181 = vpop.permute.xlu0 %5180
      %5184 = vset.pattern.permute.xlu0 0
      %5185 = vperm.xlu0 %5184, %v4399
      %v5186 = vpop.permute.xlu0 %5185
      %5189 = vset.pattern.permute.xlu0 0
      %5190 = vperm.xlu0 %5189, %v4400
      %v5191 = vpop.permute.xlu0 %5190
      %5194 = vset.pattern.permute.xlu0 0
      %5195 = vperm.xlu0 %5194, %v4401
      %v5196 = vpop.permute.xlu0 %5195
      %5199 = vset.pattern.permute.xlu0 0
      %5200 = vperm.xlu0 %5199, %v4402
      %v5201 = vpop.permute.xlu0 %5200
      %5204 = vset.pattern.permute.xlu0 0
      %5205 = vperm.xlu0 %5204, %v4403
      %v5206 = vpop.permute.xlu0 %5205
      %5209 = vset.pattern.permute.xlu0 0
      %5210 = vperm.xlu0 %5209, %v4404
      %v5211 = vpop.permute.xlu0 %5210
      %5214 = vset.pattern.permute.xlu0 0
      %5215 = vperm.xlu0 %5214, %v4405
      %v5216 = vpop.permute.xlu0 %5215
      %5219 = vset.pattern.permute.xlu0 0
      %5220 = vperm.xlu0 %5219, %v4406
      %v5221 = vpop.permute.xlu0 %5220
      %5224 = vset.pattern.permute.xlu0 0
      %5225 = vperm.xlu0 %5224, %v4407
      %v5226 = vpop.permute.xlu0 %5225
      %5229 = vset.pattern.permute.xlu0 0
      %5230 = vperm.xlu0 %5229, %v4408
      %v5231 = vpop.permute.xlu0 %5230
      %5234 = vset.pattern.permute.xlu0 0
      %5235 = vperm.xlu0 %5234, %v4409
      %v5236 = vpop.permute.xlu0 %5235
      %5239 = vset.pattern.permute.xlu0 0
      %5240 = vperm.xlu0 %5239, %v4410
      %v5241 = vpop.permute.xlu0 %5240
      %5244 = vset.pattern.permute.xlu0 0
      %5245 = vperm.xlu0 %5244, %v4411
      %v5246 = vpop.permute.xlu0 %5245
      %5249 = vset.pattern.permute.xlu0 0
      %5250 = vperm.xlu0 %5249, %v4412
      %v5251 = vpop.permute.xlu0 %5250
      %5254 = vset.pattern.permute.xlu0 0
      %5255 = vperm.xlu0 %5254, %v4413
      %v5256 = vpop.permute.xlu0 %5255
      %5259 = vset.pattern.permute.xlu0 0
      %5260 = vperm.xlu0 %5259, %v4414
      %v5261 = vpop.permute.xlu0 %5260
      %5264 = vset.pattern.permute.xlu0 0
      %5265 = vperm.xlu0 %5264, %v4415
      %v5266 = vpop.permute.xlu0 %5265
      %5269 = vset.pattern.permute.xlu0 0
      %5270 = vperm.xlu0 %5269, %v4416
      %v5271 = vpop.permute.xlu0 %5270
      %5274 = vset.pattern.permute.xlu0 0
      %5275 = vperm.xlu0 %5274, %v4417
      %v5276 = vpop.permute.xlu0 %5275
      %5279 = vset.pattern.permute.xlu0 0
      %5280 = vperm.xlu0 %5279, %v4418
      %v5281 = vpop.permute.xlu0 %5280
      %5284 = vset.pattern.permute.xlu0 0
      %5285 = vperm.xlu0 %5284, %v4419
      %v5286 = vpop.permute.xlu0 %5285
      %5289 = vset.pattern.permute.xlu0 0
      %5290 = vperm.xlu0 %5289, %v4420
      %v5291 = vpop.permute.xlu0 %5290
      %5294 = vset.pattern.permute.xlu0 0
      %5295 = vperm.xlu0 %5294, %v4421
      %v5296 = vpop.permute.xlu0 %5295
      %5299 = vset.pattern.permute.xlu0 0
      %5300 = vperm.xlu0 %5299, %v4422
      %v5301 = vpop.permute.xlu0 %5300
      %5304 = vset.pattern.permute.xlu0 0
      %5305 = vperm.xlu0 %5304, %v4423
      %v5306 = vpop.permute.xlu0 %5305
      %5309 = vset.pattern.permute.xlu0 0
      %5310 = vperm.xlu0 %5309, %v4424
      %v5311 = vpop.permute.xlu0 %5310
      %5314 = vset.pattern.permute.xlu0 0
      %5315 = vperm.xlu0 %5314, %v4425
      %v5316 = vpop.permute.xlu0 %5315
      %5319 = vset.pattern.permute.xlu0 0
      %5320 = vperm.xlu0 %5319, %v4426
      %v5321 = vpop.permute.xlu0 %5320
      %5324 = vset.pattern.permute.xlu0 0
      %5325 = vperm.xlu0 %5324, %v4427
      %v5326 = vpop.permute.xlu0 %5325
      %5329 = vset.pattern.permute.xlu0 0
      %5330 = vperm.xlu0 %5329, %v4428
      %v5331 = vpop.permute.xlu0 %5330
      %5334 = vset.pattern.permute.xlu0 0
      %5335 = vperm.xlu0 %5334, %v4429
      %v5336 = vpop.permute.xlu0 %5335
      %5339 = vset.pattern.permute.xlu0 0
      %5340 = vperm.xlu0 %5339, %v4430
      %v5341 = vpop.permute.xlu0 %5340
      %5344 = vset.pattern.permute.xlu0 0
      %5345 = vperm.xlu0 %5344, %v4431
      %v5346 = vpop.permute.xlu0 %5345
      %5349 = vset.pattern.permute.xlu0 0
      %5350 = vperm.xlu0 %5349, %v4432
      %v5351 = vpop.permute.xlu0 %5350
      %5354 = vset.pattern.permute.xlu0 0
      %5355 = vperm.xlu0 %5354, %v4433
      %v5356 = vpop.permute.xlu0 %5355
      %5359 = vset.pattern.permute.xlu0 0
      %5360 = vperm.xlu0 %5359, %v4434
      %v5361 = vpop.permute.xlu0 %5360
      %5364 = vset.pattern.permute.xlu0 0
      %5365 = vperm.xlu0 %5364, %v4435
      %v5366 = vpop.permute.xlu0 %5365
      %5369 = vset.pattern.permute.xlu0 0
      %5370 = vperm.xlu0 %5369, %v4436
      %v5371 = vpop.permute.xlu0 %5370
      %5374 = vset.pattern.permute.xlu0 0
      %5375 = vperm.xlu0 %5374, %v4437
      %v5376 = vpop.permute.xlu0 %5375
      %5379 = vset.pattern.permute.xlu0 0
      %5380 = vperm.xlu0 %5379, %v4438
      %v5381 = vpop.permute.xlu0 %5380
      %5384 = vset.pattern.permute.xlu0 0
      %5385 = vperm.xlu0 %5384, %v4439
      %v5386 = vpop.permute.xlu0 %5385
      %5389 = vset.pattern.permute.xlu0 0
      %5390 = vperm.xlu0 %5389, %v4440
      %v5391 = vpop.permute.xlu0 %5390
      %5394 = vset.pattern.permute.xlu0 0
      %5395 = vperm.xlu0 %5394, %v4441
      %v5396 = vpop.permute.xlu0 %5395
      %5399 = vset.pattern.permute.xlu0 0
      %5400 = vperm.xlu0 %5399, %v4442
      %v5401 = vpop.permute.xlu0 %5400
      %v5403 = vadd.f32 %v4059, %v4446
      %v5404 = vadd.f32 %v4060, %v4451
      %v5405 = vadd.f32 %v4061, %v4456
      %v5406 = vadd.f32 %v4062, %v4461
      %v5407 = vadd.f32 %v4063, %v4466
      %v5408 = vadd.f32 %v4064, %v4471
      %v5409 = vadd.f32 %v4065, %v4476
      %v5410 = vadd.f32 %v4066, %v4481
      %v5411 = vadd.f32 %v4067, %v4486
      %v5412 = vadd.f32 %v4068, %v4491
      %v5413 = vadd.f32 %v4069, %v4496
      %v5414 = vadd.f32 %v4070, %v4501
      %v5415 = vadd.f32 %v4071, %v4506
      %v5416 = vadd.f32 %v4072, %v4511
      %v5417 = vadd.f32 %v4073, %v4516
      %v5418 = vadd.f32 %v4074, %v4521
      %v5419 = vadd.f32 %v4075, %v4526
      %v5420 = vadd.f32 %v4076, %v4531
      %v5421 = vadd.f32 %v4077, %v4536
      %v5422 = vadd.f32 %v4078, %v4541
      %v5423 = vadd.f32 %v4079, %v4546
      %v5424 = vadd.f32 %v4080, %v4551
      %v5425 = vadd.f32 %v4081, %v4556
      %v5426 = vadd.f32 %v4082, %v4561
      %v5427 = vadd.f32 %v4083, %v4566
      %v5428 = vadd.f32 %v4084, %v4571
      %v5429 = vadd.f32 %v4085, %v4576
      %v5430 = vadd.f32 %v4086, %v4581
      %v5431 = vadd.f32 %v4087, %v4586
      %v5432 = vadd.f32 %v4088, %v4591
      %v5433 = vadd.f32 %v4089, %v4596
      %v5434 = vadd.f32 %v4090, %v4601
      %v5435 = vadd.f32 %v4091, %v4606
      %v5436 = vadd.f32 %v4092, %v4611
      %v5437 = vadd.f32 %v4093, %v4616
      %v5438 = vadd.f32 %v4094, %v4621
      %v5439 = vadd.f32 %v4095, %v4626
      %v5440 = vadd.f32 %v4096, %v4631
      %v5441 = vadd.f32 %v4097, %v4636
      %v5442 = vadd.f32 %v4098, %v4641
      %v5443 = vadd.f32 %v4099, %v4646
      %v5444 = vadd.f32 %v4100, %v4651
      %v5445 = vadd.f32 %v4101, %v4656
      %v5446 = vadd.f32 %v4102, %v4661
      %v5447 = vadd.f32 %v4103, %v4666
      %v5448 = vadd.f32 %v4104, %v4671
      %v5449 = vadd.f32 %v4105, %v4676
      %v5450 = vadd.f32 %v4106, %v4681
      %v5451 = vadd.f32 %v4107, %v4686
      %v5452 = vadd.f32 %v4108, %v4691
      %v5453 = vadd.f32 %v4109, %v4696
      %v5454 = vadd.f32 %v4110, %v4701
      %v5455 = vadd.f32 %v4111, %v4706
      %v5456 = vadd.f32 %v4112, %v4711
      %v5457 = vadd.f32 %v4113, %v4716
      %v5458 = vadd.f32 %v4114, %v4721
      %v5459 = vadd.f32 %v4115, %v4726
      %v5460 = vadd.f32 %v4116, %v4731
      %v5461 = vadd.f32 %v4117, %v4736
      %v5462 = vadd.f32 %v4118, %v4741
      %v5463 = vadd.f32 %v4119, %v4746
      %v5464 = vadd.f32 %v4120, %v4751
      %v5465 = vadd.f32 %v4121, %v4756
      %v5466 = vadd.f32 %v4122, %v4761
      %v5467 = vadd.f32 %v4123, %v4766
      %v5468 = vadd.f32 %v4124, %v4771
      %v5469 = vadd.f32 %v4125, %v4776
      %v5470 = vadd.f32 %v4126, %v4781
      %v5471 = vadd.f32 %v4127, %v4786
      %v5472 = vadd.f32 %v4128, %v4791
      %v5473 = vadd.f32 %v4129, %v4796
      %v5474 = vadd.f32 %v4130, %v4801
      %v5475 = vadd.f32 %v4131, %v4806
      %v5476 = vadd.f32 %v4132, %v4811
      %v5477 = vadd.f32 %v4133, %v4816
      %v5478 = vadd.f32 %v4134, %v4821
      %v5479 = vadd.f32 %v4135, %v4826
      %v5480 = vadd.f32 %v4136, %v4831
      %v5481 = vadd.f32 %v4137, %v4836
      %v5482 = vadd.f32 %v4138, %v4841
      %v5483 = vadd.f32 %v4139, %v4846
      %v5484 = vadd.f32 %v4140, %v4851
      %v5485 = vadd.f32 %v4141, %v4856
      %v5486 = vadd.f32 %v4142, %v4861
      %v5487 = vadd.f32 %v4143, %v4866
      %v5488 = vadd.f32 %v4144, %v4871
      %v5489 = vadd.f32 %v4145, %v4876
      %v5490 = vadd.f32 %v4146, %v4881
      %v5491 = vadd.f32 %v4147, %v4886
      %v5492 = vadd.f32 %v4148, %v4891
      %v5493 = vadd.f32 %v4149, %v4896
      %v5494 = vadd.f32 %v4150, %v4901
      %v5495 = vadd.f32 %v4151, %v4906
      %v5496 = vadd.f32 %v4152, %v4911
      %v5497 = vadd.f32 %v4153, %v4916
      %v5498 = vadd.f32 %v4154, %v4921
      %v5499 = vadd.f32 %v4155, %v4926
      %v5500 = vadd.f32 %v4156, %v4931
      %v5501 = vadd.f32 %v4157, %v4936
      %v5502 = vadd.f32 %v4158, %v4941
      %v5503 = vadd.f32 %v4159, %v4946
      %v5504 = vadd.f32 %v4160, %v4951
      %v5505 = vadd.f32 %v4161, %v4956
      %v5506 = vadd.f32 %v4162, %v4961
      %v5507 = vadd.f32 %v4163, %v4966
      %v5508 = vadd.f32 %v4164, %v4971
      %v5509 = vadd.f32 %v4165, %v4976
      %v5510 = vadd.f32 %v4166, %v4981
      %v5511 = vadd.f32 %v4167, %v4986
      %v5512 = vadd.f32 %v4168, %v4991
      %v5513 = vadd.f32 %v4169, %v4996
      %v5514 = vadd.f32 %v4170, %v5001
      %v5515 = vadd.f32 %v4171, %v5006
      %v5516 = vadd.f32 %v4172, %v5011
      %v5517 = vadd.f32 %v4173, %v5016
      %v5518 = vadd.f32 %v4174, %v5021
      %v5519 = vadd.f32 %v4175, %v5026
      %v5520 = vadd.f32 %v4176, %v5031
      %v5521 = vadd.f32 %v4177, %v5036
      %v5522 = vadd.f32 %v4178, %v5041
      %v5523 = vadd.f32 %v4179, %v5046
      %v5524 = vadd.f32 %v4180, %v5051
      %v5525 = vadd.f32 %v4181, %v5056
      %v5526 = vadd.f32 %v4182, %v5061
      %v5527 = vadd.f32 %v4183, %v5066
      %v5528 = vadd.f32 %v4184, %v5071
      %v5529 = vadd.f32 %v4185, %v5076
      %v5530 = vadd.f32 %v4186, %v5081
      %v5531 = vadd.f32 %v4187, %v5086
      %v5532 = vadd.f32 %v4188, %v5091
      %v5533 = vadd.f32 %v4189, %v5096
      %v5534 = vadd.f32 %v4190, %v5101
      %v5535 = vadd.f32 %v4191, %v5106
      %v5536 = vadd.f32 %v4192, %v5111
      %v5537 = vadd.f32 %v4193, %v5116
      %v5538 = vadd.f32 %v4194, %v5121
      %v5539 = vadd.f32 %v4195, %v5126
      %v5540 = vadd.f32 %v4196, %v5131
      %v5541 = vadd.f32 %v4197, %v5136
      %v5542 = vadd.f32 %v4198, %v5141
      %v5543 = vadd.f32 %v4199, %v5146
      %v5544 = vadd.f32 %v4200, %v5151
      %v5545 = vadd.f32 %v4201, %v5156
      %v5546 = vadd.f32 %v4202, %v5161
      %v5547 = vadd.f32 %v4203, %v5166
      %v5548 = vadd.f32 %v4204, %v5171
      %v5549 = vadd.f32 %v4205, %v5176
      %v5550 = vadd.f32 %v4206, %v5181
      %v5551 = vadd.f32 %v4207, %v5186
      %v5552 = vadd.f32 %v4208, %v5191
      %v5553 = vadd.f32 %v4209, %v5196
      %v5554 = vadd.f32 %v4210, %v5201
      %v5555 = vadd.f32 %v4211, %v5206
      %v5556 = vadd.f32 %v4212, %v5211
      %v5557 = vadd.f32 %v4213, %v5216
      %v5558 = vadd.f32 %v4214, %v5221
      %v5559 = vadd.f32 %v4215, %v5226
      %v5560 = vadd.f32 %v4216, %v5231
      %v5561 = vadd.f32 %v4217, %v5236
      %v5562 = vadd.f32 %v4218, %v5241
      %v5563 = vadd.f32 %v4219, %v5246
      %v5564 = vadd.f32 %v4220, %v5251
      %v5565 = vadd.f32 %v4221, %v5256
      %v5566 = vadd.f32 %v4222, %v5261
      %v5567 = vadd.f32 %v4223, %v5266
      %v5568 = vadd.f32 %v4224, %v5271
      %v5569 = vadd.f32 %v4225, %v5276
      %v5570 = vadd.f32 %v4226, %v5281
      %v5571 = vadd.f32 %v4227, %v5286
      %v5572 = vadd.f32 %v4228, %v5291
      %v5573 = vadd.f32 %v4229, %v5296
      %v5574 = vadd.f32 %v4230, %v5301
      %v5575 = vadd.f32 %v4231, %v5306
      %v5576 = vadd.f32 %v4232, %v5311
      %v5577 = vadd.f32 %v4233, %v5316
      %v5578 = vadd.f32 %v4234, %v5321
      %v5579 = vadd.f32 %v4235, %v5326
      %v5580 = vadd.f32 %v4236, %v5331
      %v5581 = vadd.f32 %v4237, %v5336
      %v5582 = vadd.f32 %v4238, %v5341
      %v5583 = vadd.f32 %v4239, %v5346
      %v5584 = vadd.f32 %v4240, %v5351
      %v5585 = vadd.f32 %v4241, %v5356
      %v5586 = vadd.f32 %v4242, %v5361
      %v5587 = vadd.f32 %v4243, %v5366
      %v5588 = vadd.f32 %v4244, %v5371
      %v5589 = vadd.f32 %v4245, %v5376
      %v5590 = vadd.f32 %v4246, %v5381
      %v5591 = vadd.f32 %v4247, %v5386
      %v5592 = vadd.f32 %v4248, %v5391
      %v5593 = vadd.f32 %v4249, %v5396
      %v5594 = vadd.f32 %v4250, %v5401
      %5595 = vst.msk [vmem:[%s216] sm:$0xff] %vm410, %v5403
      %5596 = vst.msk [vmem:[%s216 + $0x8] sm:$0xff] %vm410, %v5404
      %5597 = vst.msk [vmem:[%s216 + $0x10] sm:$0xff] %vm410, %v5405
      %5598 = vst.msk [vmem:[%s216 + $0x18] sm:$0xff] %vm410, %v5406
      %5599 = vst.msk [vmem:[%s216 + $0x20] sm:$0xff] %vm410, %v5407
      %5600 = vst.msk [vmem:[%s216 + $0x28] sm:$0xff] %vm410, %v5408
      %5601 = vst.msk [vmem:[%s216 + $0x30] sm:$0xff] %vm410, %v5409
      %5602 = vst.msk [vmem:[%s216 + $0x38] sm:$0xff] %vm410, %v5410
      %5603 = vst.msk [vmem:[%s216 + $0x40] sm:$0xff] %vm410, %v5411
      %5604 = vst.msk [vmem:[%s216 + $0x48] sm:$0xff] %vm410, %v5412
      %5605 = vst.msk [vmem:[%s216 + $0x50] sm:$0xff] %vm410, %v5413
      %5606 = vst.msk [vmem:[%s216 + $0x58] sm:$0xff] %vm410, %v5414
      %5607 = vst.msk [vmem:[%s216 + $0x60] sm:$0xff] %vm410, %v5415
      %5608 = vst.msk [vmem:[%s216 + $0x68] sm:$0xff] %vm410, %v5416
      %5609 = vst.msk [vmem:[%s216 + $0x70] sm:$0xff] %vm410, %v5417
      %5610 = vst.msk [vmem:[%s216 + $0x78] sm:$0xff] %vm410, %v5418
      %5611 = vst.msk [vmem:[%s216 + $0x80] sm:$0xff] %vm410, %v5419
      %5612 = vst.msk [vmem:[%s216 + $0x88] sm:$0xff] %vm410, %v5420
      %5613 = vst.msk [vmem:[%s216 + $0x90] sm:$0xff] %vm410, %v5421
      %5614 = vst.msk [vmem:[%s216 + $0x98] sm:$0xff] %vm410, %v5422
      %5615 = vst.msk [vmem:[%s216 + $0xa0] sm:$0xff] %vm410, %v5423
      %5616 = vst.msk [vmem:[%s216 + $0xa8] sm:$0xff] %vm410, %v5424
      %5617 = vst.msk [vmem:[%s216 + $0xb0] sm:$0xff] %vm410, %v5425
      %5618 = vst.msk [vmem:[%s216 + $0xb8] sm:$0xff] %vm410, %v5426
      %5619 = vst.msk [vmem:[%s216 + $0xc0] sm:$0xff] %vm410, %v5427
      %5620 = vst.msk [vmem:[%s216 + $0xc8] sm:$0xff] %vm410, %v5428
      %5621 = vst.msk [vmem:[%s216 + $0xd0] sm:$0xff] %vm410, %v5429
      %5622 = vst.msk [vmem:[%s216 + $0xd8] sm:$0xff] %vm410, %v5430
      %5623 = vst.msk [vmem:[%s216 + $0xe0] sm:$0xff] %vm410, %v5431
      %5624 = vst.msk [vmem:[%s216 + $0xe8] sm:$0xff] %vm410, %v5432
      %5625 = vst.msk [vmem:[%s216 + $0xf0] sm:$0xff] %vm410, %v5433
      %5626 = vst.msk [vmem:[%s216 + $0xf8] sm:$0xff] %vm410, %v5434
      %5627 = vst.msk [vmem:[%s216 + $0x100] sm:$0xff] %vm410, %v5435
      %5628 = vst.msk [vmem:[%s216 + $0x108] sm:$0xff] %vm410, %v5436
      %5629 = vst.msk [vmem:[%s216 + $0x110] sm:$0xff] %vm410, %v5437
      %5630 = vst.msk [vmem:[%s216 + $0x118] sm:$0xff] %vm410, %v5438
      %5631 = vst.msk [vmem:[%s216 + $0x120] sm:$0xff] %vm410, %v5439
      %5632 = vst.msk [vmem:[%s216 + $0x128] sm:$0xff] %vm410, %v5440
      %5633 = vst.msk [vmem:[%s216 + $0x130] sm:$0xff] %vm410, %v5441
      %5634 = vst.msk [vmem:[%s216 + $0x138] sm:$0xff] %vm410, %v5442
      %5635 = vst.msk [vmem:[%s216 + $0x140] sm:$0xff] %vm410, %v5443
      %5636 = vst.msk [vmem:[%s216 + $0x148] sm:$0xff] %vm410, %v5444
      %5637 = vst.msk [vmem:[%s216 + $0x150] sm:$0xff] %vm410, %v5445
      %5638 = vst.msk [vmem:[%s216 + $0x158] sm:$0xff] %vm410, %v5446
      %5639 = vst.msk [vmem:[%s216 + $0x160] sm:$0xff] %vm410, %v5447
      %5640 = vst.msk [vmem:[%s216 + $0x168] sm:$0xff] %vm410, %v5448
      %5641 = vst.msk [vmem:[%s216 + $0x170] sm:$0xff] %vm410, %v5449
      %5642 = vst.msk [vmem:[%s216 + $0x178] sm:$0xff] %vm410, %v5450
      %5643 = vst.msk [vmem:[%s216 + $0x180] sm:$0xff] %vm410, %v5451
      %5644 = vst.msk [vmem:[%s216 + $0x188] sm:$0xff] %vm410, %v5452
      %5645 = vst.msk [vmem:[%s216 + $0x190] sm:$0xff] %vm410, %v5453
      %5646 = vst.msk [vmem:[%s216 + $0x198] sm:$0xff] %vm410, %v5454
      %5647 = vst.msk [vmem:[%s216 + $0x1a0] sm:$0xff] %vm410, %v5455
      %5648 = vst.msk [vmem:[%s216 + $0x1a8] sm:$0xff] %vm410, %v5456
      %5649 = vst.msk [vmem:[%s216 + $0x1b0] sm:$0xff] %vm410, %v5457
      %5650 = vst.msk [vmem:[%s216 + $0x1b8] sm:$0xff] %vm410, %v5458
      %5651 = vst.msk [vmem:[%s216 + $0x1c0] sm:$0xff] %vm410, %v5459
      %5652 = vst.msk [vmem:[%s216 + $0x1c8] sm:$0xff] %vm410, %v5460
      %5653 = vst.msk [vmem:[%s216 + $0x1d0] sm:$0xff] %vm410, %v5461
      %5654 = vst.msk [vmem:[%s216 + $0x1d8] sm:$0xff] %vm410, %v5462
      %5655 = vst.msk [vmem:[%s216 + $0x1e0] sm:$0xff] %vm410, %v5463
      %5656 = vst.msk [vmem:[%s216 + $0x1e8] sm:$0xff] %vm410, %v5464
      %5657 = vst.msk [vmem:[%s216 + $0x1f0] sm:$0xff] %vm410, %v5465
      %5658 = vst.msk [vmem:[%s216 + $0x1f8] sm:$0xff] %vm410, %v5466
      %5659 = vst.msk [vmem:[%s216 + $0x200] sm:$0xff] %vm410, %v5467
      %5660 = vst.msk [vmem:[%s216 + $0x208] sm:$0xff] %vm410, %v5468
      %5661 = vst.msk [vmem:[%s216 + $0x210] sm:$0xff] %vm410, %v5469
      %5662 = vst.msk [vmem:[%s216 + $0x218] sm:$0xff] %vm410, %v5470
      %5663 = vst.msk [vmem:[%s216 + $0x220] sm:$0xff] %vm410, %v5471
      %5664 = vst.msk [vmem:[%s216 + $0x228] sm:$0xff] %vm410, %v5472
      %5665 = vst.msk [vmem:[%s216 + $0x230] sm:$0xff] %vm410, %v5473
      %5666 = vst.msk [vmem:[%s216 + $0x238] sm:$0xff] %vm410, %v5474
      %5667 = vst.msk [vmem:[%s216 + $0x240] sm:$0xff] %vm410, %v5475
      %5668 = vst.msk [vmem:[%s216 + $0x248] sm:$0xff] %vm410, %v5476
      %5669 = vst.msk [vmem:[%s216 + $0x250] sm:$0xff] %vm410, %v5477
      %5670 = vst.msk [vmem:[%s216 + $0x258] sm:$0xff] %vm410, %v5478
      %5671 = vst.msk [vmem:[%s216 + $0x260] sm:$0xff] %vm410, %v5479
      %5672 = vst.msk [vmem:[%s216 + $0x268] sm:$0xff] %vm410, %v5480
      %5673 = vst.msk [vmem:[%s216 + $0x270] sm:$0xff] %vm410, %v5481
      %5674 = vst.msk [vmem:[%s216 + $0x278] sm:$0xff] %vm410, %v5482
      %5675 = vst.msk [vmem:[%s216 + $0x280] sm:$0xff] %vm410, %v5483
      %5676 = vst.msk [vmem:[%s216 + $0x288] sm:$0xff] %vm410, %v5484
      %5677 = vst.msk [vmem:[%s216 + $0x290] sm:$0xff] %vm410, %v5485
      %5678 = vst.msk [vmem:[%s216 + $0x298] sm:$0xff] %vm410, %v5486
      %5679 = vst.msk [vmem:[%s216 + $0x2a0] sm:$0xff] %vm410, %v5487
      %5680 = vst.msk [vmem:[%s216 + $0x2a8] sm:$0xff] %vm410, %v5488
      %5681 = vst.msk [vmem:[%s216 + $0x2b0] sm:$0xff] %vm410, %v5489
      %5682 = vst.msk [vmem:[%s216 + $0x2b8] sm:$0xff] %vm410, %v5490
      %5683 = vst.msk [vmem:[%s216 + $0x2c0] sm:$0xff] %vm410, %v5491
      %5684 = vst.msk [vmem:[%s216 + $0x2c8] sm:$0xff] %vm410, %v5492
      %5685 = vst.msk [vmem:[%s216 + $0x2d0] sm:$0xff] %vm410, %v5493
      %5686 = vst.msk [vmem:[%s216 + $0x2d8] sm:$0xff] %vm410, %v5494
      %5687 = vst.msk [vmem:[%s216 + $0x2e0] sm:$0xff] %vm410, %v5495
      %5688 = vst.msk [vmem:[%s216 + $0x2e8] sm:$0xff] %vm410, %v5496
      %5689 = vst.msk [vmem:[%s216 + $0x2f0] sm:$0xff] %vm410, %v5497
      %5690 = vst.msk [vmem:[%s216 + $0x2f8] sm:$0xff] %vm410, %v5498
      %5691 = vst.msk [vmem:[%s216 + $0x300] sm:$0xff] %vm410, %v5499
      %5692 = vst.msk [vmem:[%s216 + $0x308] sm:$0xff] %vm410, %v5500
      %5693 = vst.msk [vmem:[%s216 + $0x310] sm:$0xff] %vm410, %v5501
      %5694 = vst.msk [vmem:[%s216 + $0x318] sm:$0xff] %vm410, %v5502
      %5695 = vst.msk [vmem:[%s216 + $0x320] sm:$0xff] %vm410, %v5503
      %5696 = vst.msk [vmem:[%s216 + $0x328] sm:$0xff] %vm410, %v5504
      %5697 = vst.msk [vmem:[%s216 + $0x330] sm:$0xff] %vm410, %v5505
      %5698 = vst.msk [vmem:[%s216 + $0x338] sm:$0xff] %vm410, %v5506
      %5699 = vst.msk [vmem:[%s216 + $0x340] sm:$0xff] %vm410, %v5507
      %5700 = vst.msk [vmem:[%s216 + $0x348] sm:$0xff] %vm410, %v5508
      %5701 = vst.msk [vmem:[%s216 + $0x350] sm:$0xff] %vm410, %v5509
      %5702 = vst.msk [vmem:[%s216 + $0x358] sm:$0xff] %vm410, %v5510
      %5703 = vst.msk [vmem:[%s216 + $0x360] sm:$0xff] %vm410, %v5511
      %5704 = vst.msk [vmem:[%s216 + $0x368] sm:$0xff] %vm410, %v5512
      %5705 = vst.msk [vmem:[%s216 + $0x370] sm:$0xff] %vm410, %v5513
      %5706 = vst.msk [vmem:[%s216 + $0x378] sm:$0xff] %vm410, %v5514
      %5707 = vst.msk [vmem:[%s216 + $0x380] sm:$0xff] %vm410, %v5515
      %5708 = vst.msk [vmem:[%s216 + $0x388] sm:$0xff] %vm410, %v5516
      %5709 = vst.msk [vmem:[%s216 + $0x390] sm:$0xff] %vm410, %v5517
      %5710 = vst.msk [vmem:[%s216 + $0x398] sm:$0xff] %vm410, %v5518
      %5711 = vst.msk [vmem:[%s216 + $0x3a0] sm:$0xff] %vm410, %v5519
      %5712 = vst.msk [vmem:[%s216 + $0x3a8] sm:$0xff] %vm410, %v5520
      %5713 = vst.msk [vmem:[%s216 + $0x3b0] sm:$0xff] %vm410, %v5521
      %5714 = vst.msk [vmem:[%s216 + $0x3b8] sm:$0xff] %vm410, %v5522
      %5715 = vst.msk [vmem:[%s216 + $0x3c0] sm:$0xff] %vm410, %v5523
      %5716 = vst.msk [vmem:[%s216 + $0x3c8] sm:$0xff] %vm410, %v5524
      %5717 = vst.msk [vmem:[%s216 + $0x3d0] sm:$0xff] %vm410, %v5525
      %5718 = vst.msk [vmem:[%s216 + $0x3d8] sm:$0xff] %vm410, %v5526
      %5719 = vst.msk [vmem:[%s216 + $0x3e0] sm:$0xff] %vm410, %v5527
      %5720 = vst.msk [vmem:[%s216 + $0x3e8] sm:$0xff] %vm410, %v5528
      %5721 = vst.msk [vmem:[%s216 + $0x3f0] sm:$0xff] %vm410, %v5529
      %5722 = vst.msk [vmem:[%s216 + $0x3f8] sm:$0xff] %vm410, %v5530
      %5723 = vst.msk [vmem:[%s216 + $0x400] sm:$0xff] %vm410, %v5531
      %5724 = vst.msk [vmem:[%s216 + $0x408] sm:$0xff] %vm410, %v5532
      %5725 = vst.msk [vmem:[%s216 + $0x410] sm:$0xff] %vm410, %v5533
      %5726 = vst.msk [vmem:[%s216 + $0x418] sm:$0xff] %vm410, %v5534
      %5727 = vst.msk [vmem:[%s216 + $0x420] sm:$0xff] %vm410, %v5535
      %5728 = vst.msk [vmem:[%s216 + $0x428] sm:$0xff] %vm410, %v5536
      %5729 = vst.msk [vmem:[%s216 + $0x430] sm:$0xff] %vm410, %v5537
      %5730 = vst.msk [vmem:[%s216 + $0x438] sm:$0xff] %vm410, %v5538
      %5731 = vst.msk [vmem:[%s216 + $0x440] sm:$0xff] %vm410, %v5539
      %5732 = vst.msk [vmem:[%s216 + $0x448] sm:$0xff] %vm410, %v5540
      %5733 = vst.msk [vmem:[%s216 + $0x450] sm:$0xff] %vm410, %v5541
      %5734 = vst.msk [vmem:[%s216 + $0x458] sm:$0xff] %vm410, %v5542
      %5735 = vst.msk [vmem:[%s216 + $0x460] sm:$0xff] %vm410, %v5543
      %5736 = vst.msk [vmem:[%s216 + $0x468] sm:$0xff] %vm410, %v5544
      %5737 = vst.msk [vmem:[%s216 + $0x470] sm:$0xff] %vm410, %v5545
      %5738 = vst.msk [vmem:[%s216 + $0x478] sm:$0xff] %vm410, %v5546
      %5739 = vst.msk [vmem:[%s216 + $0x480] sm:$0xff] %vm410, %v5547
      %5740 = vst.msk [vmem:[%s216 + $0x488] sm:$0xff] %vm410, %v5548
      %5741 = vst.msk [vmem:[%s216 + $0x490] sm:$0xff] %vm410, %v5549
      %5742 = vst.msk [vmem:[%s216 + $0x498] sm:$0xff] %vm410, %v5550
      %5743 = vst.msk [vmem:[%s216 + $0x4a0] sm:$0xff] %vm410, %v5551
      %5744 = vst.msk [vmem:[%s216 + $0x4a8] sm:$0xff] %vm410, %v5552
      %5745 = vst.msk [vmem:[%s216 + $0x4b0] sm:$0xff] %vm410, %v5553
      %5746 = vst.msk [vmem:[%s216 + $0x4b8] sm:$0xff] %vm410, %v5554
      %5747 = vst.msk [vmem:[%s216 + $0x4c0] sm:$0xff] %vm410, %v5555
      %5748 = vst.msk [vmem:[%s216 + $0x4c8] sm:$0xff] %vm410, %v5556
      %5749 = vst.msk [vmem:[%s216 + $0x4d0] sm:$0xff] %vm410, %v5557
      %5750 = vst.msk [vmem:[%s216 + $0x4d8] sm:$0xff] %vm410, %v5558
      %5751 = vst.msk [vmem:[%s216 + $0x4e0] sm:$0xff] %vm410, %v5559
      %5752 = vst.msk [vmem:[%s216 + $0x4e8] sm:$0xff] %vm410, %v5560
      %5753 = vst.msk [vmem:[%s216 + $0x4f0] sm:$0xff] %vm410, %v5561
      %5754 = vst.msk [vmem:[%s216 + $0x4f8] sm:$0xff] %vm410, %v5562
      %5755 = vst.msk [vmem:[%s216 + $0x500] sm:$0xff] %vm410, %v5563
      %5756 = vst.msk [vmem:[%s216 + $0x508] sm:$0xff] %vm410, %v5564
      %5757 = vst.msk [vmem:[%s216 + $0x510] sm:$0xff] %vm410, %v5565
      %5758 = vst.msk [vmem:[%s216 + $0x518] sm:$0xff] %vm410, %v5566
      %5759 = vst.msk [vmem:[%s216 + $0x520] sm:$0xff] %vm410, %v5567
      %5760 = vst.msk [vmem:[%s216 + $0x528] sm:$0xff] %vm410, %v5568
      %5761 = vst.msk [vmem:[%s216 + $0x530] sm:$0xff] %vm410, %v5569
      %5762 = vst.msk [vmem:[%s216 + $0x538] sm:$0xff] %vm410, %v5570
      %5763 = vst.msk [vmem:[%s216 + $0x540] sm:$0xff] %vm410, %v5571
      %5764 = vst.msk [vmem:[%s216 + $0x548] sm:$0xff] %vm410, %v5572
      %5765 = vst.msk [vmem:[%s216 + $0x550] sm:$0xff] %vm410, %v5573
      %5766 = vst.msk [vmem:[%s216 + $0x558] sm:$0xff] %vm410, %v5574
      %5767 = vst.msk [vmem:[%s216 + $0x560] sm:$0xff] %vm410, %v5575
      %5768 = vst.msk [vmem:[%s216 + $0x568] sm:$0xff] %vm410, %v5576
      %5769 = vst.msk [vmem:[%s216 + $0x570] sm:$0xff] %vm410, %v5577
      %5770 = vst.msk [vmem:[%s216 + $0x578] sm:$0xff] %vm410, %v5578
      %5771 = vst.msk [vmem:[%s216 + $0x580] sm:$0xff] %vm410, %v5579
      %5772 = vst.msk [vmem:[%s216 + $0x588] sm:$0xff] %vm410, %v5580
      %5773 = vst.msk [vmem:[%s216 + $0x590] sm:$0xff] %vm410, %v5581
      %5774 = vst.msk [vmem:[%s216 + $0x598] sm:$0xff] %vm410, %v5582
      %5775 = vst.msk [vmem:[%s216 + $0x5a0] sm:$0xff] %vm410, %v5583
      %5776 = vst.msk [vmem:[%s216 + $0x5a8] sm:$0xff] %vm410, %v5584
      %5777 = vst.msk [vmem:[%s216 + $0x5b0] sm:$0xff] %vm410, %v5585
      %5778 = vst.msk [vmem:[%s216 + $0x5b8] sm:$0xff] %vm410, %v5586
      %5779 = vst.msk [vmem:[%s216 + $0x5c0] sm:$0xff] %vm410, %v5587
      %5780 = vst.msk [vmem:[%s216 + $0x5c8] sm:$0xff] %vm410, %v5588
      %5781 = vst.msk [vmem:[%s216 + $0x5d0] sm:$0xff] %vm410, %v5589
      %5782 = vst.msk [vmem:[%s216 + $0x5d8] sm:$0xff] %vm410, %v5590
      %5783 = vst.msk [vmem:[%s216 + $0x5e0] sm:$0xff] %vm410, %v5591
      %5784 = vst.msk [vmem:[%s216 + $0x5e8] sm:$0xff] %vm410, %v5592
      %5785 = vst.msk [vmem:[%s216 + $0x5f0] sm:$0xff] %vm410, %v5593
      %5786 = vst.msk [vmem:[%s216 + $0x5f8] sm:$0xff] %vm410, %v5594
      %s5787 = smul.u32 192, %s14
      %p5788 = scmp.lt.s32.totalorder %s5787, 383
      %s5789 = scalar_select %p5788, %s5787, 383
      %s5790 = smul.addr %s5789, 8
      %s5791 = scalar_lea.vmem %s3, %s5790
      // Predicated region
      $region33: #{tpu_custom_call.1} parent=31 // pred_check
        %p5792 = pneg %p110
      $region34: #{tpu_custom_call.1} parent=31 // pred_check_branch
        %5794 = sbr.rel (%p5792) target = $region36
      $region35: #{tpu_custom_call.1} parent=31 // pred_region
        %s5795 = smul.u32 192, %s14
      $region36: #{tpu_custom_call.1} parent=31 // pred_fallthru
        _
    $region32: #{tpu_custom_call.1} parent=5 // pred_fallthru
      _
    %p5796 = scmp.le.s32.totalorder 2, %s9
    // Predicated region
    $region37: #{tpu_custom_call.1} parent=5 // pred_check
      %p5797 = pneg %p5796
    $region38: #{tpu_custom_call.1} parent=5 // pred_check_branch
      %5799 = sbr.rel (%p5797) target = $region40
    $region39: #{tpu_custom_call.1} parent=5 // pred_region
      %s5800 = ssub.s32 %s9, 2
      // Predicated region
      $region41: #{tpu_custom_call.1} parent=39 // pred_check
        %p5801 = pneg %p116
      $region42: #{tpu_custom_call.1} parent=39 // pred_check_branch
        %5803 = sbr.rel (%p5801) target = $region44
      $region43: #{tpu_custom_call.1} parent=39 // pred_region
        %s5804 = smul.u32 192, %s15
        %p5805 = scmp.lt.s32.totalorder %s5804, 383
        %s5806 = scalar_select %p5805, %s5804, 383
        %s5807 = smul.addr %s5806, 8
        %s5808 = scalar_lea.vmem %s3, %s5807
      $region44: #{tpu_custom_call.1} parent=39 // pred_fallthru
        _
    $region40: #{tpu_custom_call.1} parent=5 // pred_fallthru
      _
  $region6: #{tpu_custom_call.1} parent=0 // loop_footer
    %s13 = sadd.s32 1, %s9
  $region7: #{tpu_custom_call.1} parent=0 // loop_footer_branch
    %8 = sbr.rel target = $region3
  $region8: #{tpu_custom_call.1} parent=0 // loop_exit
    _

</llo_original>
